<compile_context>
chip_gen: v6e
topology: v6e:2x2x1
jax: 0.10.0
libtpu: 0.0.40
codegen_flags: <defaults>
</compile_context>

<pallas_src>
import functools
import numpy as np
import jax
import jax.numpy as jnp
from jax.experimental import pallas as pl
from jax.experimental.pallas import tpu as pltpu


NEG_INF = float(-0.7 * np.finfo(np.float32).max)   # finite "minus infinity" (flash-safe)
VMEM_LIMIT = 32 * 1024 * 1024                      # safe scoped limit on v5e/v6e/v7x


def _round_up(x, m):
    return (x + m - 1) // m * m


def _pick_tile(dim, max_tile, gran):
    """Pick (tile, padded_dim): tile is a multiple of `gran` that divides padded_dim.
    Prefers a divisor tile (no extra padding) over padding up to a tile multiple."""
    dimp = _round_up(dim, gran)
    if dimp <= max_tile:
        return dimp, dimp
    t = (max_tile // gran) * gran
    floor = max(gran, (max_tile // 2 // gran) * gran)
    tt = t
    while tt >= floor:
        if dimp % tt == 0:
            return tt, dimp
        tt -= gran
    return t, _round_up(dimp, t)


def _seq_pad(t):
    # Pad a sequence length once at model entry; 512-aligned when long so that the
    # per-call pads/slices inside pallas_linear / pallas_attention become no-ops.
    return _round_up(t, 512) if t >= 512 else _round_up(t, 8)


# --------------------------------------------------------------------------
# In-kernel GELU (tanh form; tanh routes to the EUP slot instead of ~12 VALU ops).
# --------------------------------------------------------------------------
def _gelu_tanh(x):
    c = 0.7978845608028654  # sqrt(2/pi)
    return 0.5 * x * (1.0 + jnp.tanh(c * (x + 0.044715 * x * x * x)))


# --------------------------------------------------------------------------
# Tiled matmul (+ bias + optional GELU) — bf16 MXU, f32 accumulation
# --------------------------------------------------------------------------
def _matmul_bias_kernel(x_ref, w_ref, b_ref, o_ref, acc_ref, *, activation):
    @pl.when(pl.program_id(2) == 0)
    def _():
        acc_ref[...] = jnp.zeros_like(acc_ref)

    acc_ref[...] += jnp.dot(x_ref[...], w_ref[...], preferred_element_type=jnp.float32)

    @pl.when(pl.program_id(2) == pl.num_programs(2) - 1)
    def _():
        r = acc_ref[...] + b_ref[...]
        if activation == "gelu":
            r = _gelu_tanh(r)
        o_ref[...] = r.astype(o_ref.dtype)


def _matmul_kernel(x_ref, w_ref, o_ref, acc_ref, *, activation):
    @pl.when(pl.program_id(2) == 0)
    def _():
        acc_ref[...] = jnp.zeros_like(acc_ref)

    acc_ref[...] += jnp.dot(x_ref[...], w_ref[...], preferred_element_type=jnp.float32)

    @pl.when(pl.program_id(2) == pl.num_programs(2) - 1)
    def _():
        r = acc_ref[...]
        if activation == "gelu":
            r = _gelu_tanh(r)
        o_ref[...] = r.astype(o_ref.dtype)


def pallas_linear(x, w, b=None, activation=None, out_dtype=jnp.bfloat16,
                  tm_max=512, tn_max=512, tk_max=512):
    """x: (M, K), w: (K, N) [ideally pre-cast bf16], optional b: (N,) -> (M, N).

    Operands go to the MXU in bf16; accumulation stays f32 in a VMEM scratch.
    out_dtype defaults to bf16 (consumers are other bf16 matmuls)."""
    M, K = x.shape
    Kw, N = w.shape
    assert Kw == K, (Kw, K)
    tm, Mp = _pick_tile(M, tm_max, 8)
    tn, Np = _pick_tile(N, tn_max, 128)
    tk, Kp = _pick_tile(K, tk_max, 128)

    xb = x if x.dtype == jnp.bfloat16 else x.astype(jnp.bfloat16)
    wb = w if w.dtype == jnp.bfloat16 else w.astype(jnp.bfloat16)
    if (Mp, Kp) != (M, K):
        xb = jnp.pad(xb, ((0, Mp - M), (0, Kp - K)))
    if (Kp, Np) != (K, N):
        wb = jnp.pad(wb, ((0, Kp - K), (0, Np - N)))

    in_specs = [pl.BlockSpec((tm, tk), lambda i, j, k: (i, k)),
                pl.BlockSpec((tk, tn), lambda i, j, k: (k, j))]
    args = [xb, wb]
    if b is not None:
        bb = b.reshape(1, -1).astype(jnp.float32)
        if bb.shape[1] != Np:
            bb = jnp.pad(bb, ((0, 0), (0, Np - bb.shape[1])))
        in_specs.append(pl.BlockSpec((1, tn), lambda i, j, k: (0, j)))
        args.append(bb)
        kernel = functools.partial(_matmul_bias_kernel, activation=activation)
    else:
        kernel = functools.partial(_matmul_kernel, activation=activation)

    out = pl.pallas_call(
        kernel,
        grid=(Mp // tm, Np // tn, Kp // tk),
        in_specs=in_specs,
        out_specs=pl.BlockSpec((tm, tn), lambda i, j, k: (i, j)),
        out_shape=jax.ShapeDtypeStruct((Mp, Np), out_dtype),
        scratch_shapes=[pltpu.VMEM((tm, tn), jnp.float32)],
        compiler_params=pltpu.CompilerParams(
            dimension_semantics=("parallel", "parallel", "arbitrary"),
            vmem_limit_bytes=VMEM_LIMIT),
    )(*args)
    if (Mp, Np) != (M, N):
        out = out[:M, :N]
    return out


# --------------------------------------------------------------------------
# Row-tiled LayerNorm — one-pass moments, f32 compute, bf16 output
# --------------------------------------------------------------------------
def _layernorm_kernel(x_ref, g_ref, b_ref, o_ref, *, eps):
    x = x_ref[...].astype(jnp.float32)
    mu = jnp.mean(x, axis=-1, keepdims=True)
    ms = jnp.mean(x * x, axis=-1, keepdims=True)
    var = ms - mu * mu
    y = (x - mu) * jax.lax.rsqrt(var + eps) * g_ref[...] + b_ref[...]
    o_ref[...] = y.astype(o_ref.dtype)


def pallas_layernorm(x, gamma, beta, eps=1e-5, out_dtype=jnp.bfloat16, tm_max=512):
    # TODO(synk): fuse LN into the prologue of the following pallas_linear to drop one
    # activation round trip per LN.
    orig_shape = x.shape
    D = orig_shape[-1]
    x2 = x.reshape(-1, D)
    M = x2.shape[0]
    tm, Mp = _pick_tile(M, tm_max, 8)
    if Mp != M:
        x2 = jnp.pad(x2, ((0, Mp - M), (0, 0)))
    out = pl.pallas_call(
        functools.partial(_layernorm_kernel, eps=eps),
        grid=(Mp // tm,),
        in_specs=[pl.BlockSpec((tm, D), lambda i: (i, 0)),
                  pl.BlockSpec((1, D), lambda i: (0, 0)),
                  pl.BlockSpec((1, D), lambda i: (0, 0))],
        out_specs=pl.BlockSpec((tm, D), lambda i: (i, 0)),
        out_shape=jax.ShapeDtypeStruct((Mp, D), out_dtype),
        compiler_params=pltpu.CompilerParams(
            dimension_semantics=("parallel",),
            vmem_limit_bytes=VMEM_LIMIT),
    )(x2, gamma.reshape(1, D).astype(jnp.float32), beta.reshape(1, D).astype(jnp.float32))
    if Mp != M:
        out = out[:M]
    return out.reshape(orig_shape)


# --------------------------------------------------------------------------
# Flash attention, head-major layout: grid=(B*H, Tq tiles, KV tiles).
# Mask (causal / key-valid-length) generated in-kernel from iota; causal path skips
# fully-above-diagonal KV tiles.
# --------------------------------------------------------------------------
def _flash_kernel(q_ref, k_ref, v_ref, o_ref, m_scr, l_scr, acc_scr, *,
                  causal, kv_len, tq, tk):
    qt = pl.program_id(1)
    kv = pl.program_id(2)

    @pl.when(kv == 0)
    def _():
        m_scr[...] = jnp.full(m_scr.shape, NEG_INF, m_scr.dtype)
        l_scr[...] = jnp.zeros_like(l_scr)
        acc_scr[...] = jnp.zeros_like(acc_scr)

    def flash_update():
        q = q_ref[0]          # (tq, dh) bf16; dh**-0.5 already folded into W_q
        kk = k_ref[0]         # (tk, dh) bf16
        vv = v_ref[0]         # (tk, dh) bf16
        s = jax.lax.dot_general(q, kk, (((1,), (1,)), ((), ())),
                                preferred_element_type=jnp.float32)   # (tq, tk)
        if causal or (kv_len is not None):
            col = kv * tk + jax.lax.broadcasted_iota(jnp.int32, (tq, tk), 1)
            keep = None
            if kv_len is not None:
                keep = col < kv_len
            if causal:
                row = qt * tq + jax.lax.broadcasted_iota(jnp.int32, (tq, tk), 0)
                c = col <= row
                keep = c if keep is None else (keep & c)
            s = jnp.where(keep, s, NEG_INF)
        m_prev = m_scr[...]
        m_new = jnp.maximum(m_prev, jnp.max(s, axis=-1, keepdims=True))
        alpha = jnp.exp(m_prev - m_new)
        # bf16 exp: ~2x EUP rate on v6e/v7x; PV matmul consumes bf16 anyway.
        p = jnp.exp((s - m_new).astype(jnp.bfloat16))
        l_scr[...] = alpha * l_scr[...] + jnp.sum(p.astype(jnp.float32),
                                                  axis=-1, keepdims=True)
        acc_scr[...] = alpha * acc_scr[...] + jax.lax.dot_general(
            p, vv, (((1,), (0,)), ((), ())), preferred_element_type=jnp.float32)
        m_scr[...] = m_new

    if causal:
        # Skip KV tiles lying entirely above the causal diagonal for this q tile.
        @pl.when(kv * tk <= qt * tq + (tq - 1))
        def _():
            flash_update()
    else:
        flash_update()

    @pl.when(kv == pl.num_programs(2) - 1)
    def _():
        inv = pl.reciprocal(l_scr[...], approx=True)
        o_ref[0] = (acc_scr[...] * inv).astype(o_ref.dtype)


def pallas_attention(q, k, v, *, causal=False, kv_valid=None, out_dtype=jnp.bfloat16,
                     tq_max=512, tk_max=512):
    """q: (B*H, Tq, dh), k/v: (B*H, Tk, dh) -> (B*H, Tq, dh).
    kv_valid: number of valid keys (None = all); causal: decoder self-attention."""
    BH, Tq, dh = q.shape
    Tk = k.shape[1]
    tq, Tqp = _pick_tile(Tq, tq_max, 8)
    tk, Tkp = _pick_tile(Tk, tk_max, 8)

    qb = q if q.dtype == jnp.bfloat16 else q.astype(jnp.bfloat16)
    kb = k if k.dtype == jnp.bfloat16 else k.astype(jnp.bfloat16)
    vb = v if v.dtype == jnp.bfloat16 else v.astype(jnp.bfloat16)
    if Tqp != Tq:
        qb = jnp.pad(qb, ((0, 0), (0, Tqp - Tq), (0, 0)))
    if Tkp != Tk:
        kb = jnp.pad(kb, ((0, 0), (0, Tkp - Tk), (0, 0)))
        vb = jnp.pad(vb, ((0, 0), (0, Tkp - Tk), (0, 0)))
        if kv_valid is None:
            kv_valid = Tk
    if kv_valid is not None and kv_valid >= Tkp:
        kv_valid = None

    kern = functools.partial(_flash_kernel, causal=causal, kv_len=kv_valid, tq=tq, tk=tk)
    out = pl.pallas_call(
        kern,
        grid=(BH, Tqp // tq, Tkp // tk),
        in_specs=[pl.BlockSpec((1, tq, dh), lambda b, qt, kv: (b, qt, 0)),
                  pl.BlockSpec((1, tk, dh), lambda b, qt, kv: (b, kv, 0)),
                  pl.BlockSpec((1, tk, dh), lambda b, qt, kv: (b, kv, 0))],
        out_specs=pl.BlockSpec((1, tq, dh), lambda b, qt, kv: (b, qt, 0)),
        out_shape=jax.ShapeDtypeStruct((BH, Tqp, dh), out_dtype),
        scratch_shapes=[pltpu.VMEM((tq, 1), jnp.float32),    # running max
                        pltpu.VMEM((tq, 1), jnp.float32),    # running sum
                        pltpu.VMEM((tq, dh), jnp.float32)],  # output accumulator
        compiler_params=pltpu.CompilerParams(
            dimension_semantics=("parallel", "parallel", "arbitrary"),
            vmem_limit_bytes=VMEM_LIMIT),
    )(qb, kb, vb)
    if Tqp != Tq:
        out = out[:, :Tq, :]
    return out


# --------------------------------------------------------------------------
# Model pieces (glue in JAX, hot path in Pallas)
# --------------------------------------------------------------------------
def sinusoids(length, channels, max_timescale=10000):
    assert channels % 2 == 0
    log_inc = np.log(max_timescale) / (channels // 2 - 1)
    inv = jnp.exp(-log_inc * jnp.arange(channels // 2, dtype=jnp.float32))
    scaled = jnp.arange(length, dtype=jnp.float32)[:, None] * inv[None, :]
    return jnp.concatenate([jnp.sin(scaled), jnp.cos(scaled)], axis=1)


def conv1d_gelu(x, w2, b, stride):
    """PyTorch Conv1d(k=3, padding=1) + GELU in NLC layout via bf16 shifted-row taps.
    x: (B, L, C), w2: (3*C, O) bf16 (prepped) -> (B, Lout, O) bf16."""
    # TODO(synk): feed the 3 taps as 3 K-blocks of the matmul grid (per-tap index_map)
    # to avoid materializing the (B*Lout, 3C) im2col buffer entirely.
    B, L, C = x.shape
    K = 3
    xb = x if x.dtype == jnp.bfloat16 else x.astype(jnp.bfloat16)
    xp = jnp.pad(xb, ((0, 0), (1, 1), (0, 0)))
    Lout = (L + 2 - K) // stride + 1
    taps = [xp[:, k: k + (Lout - 1) * stride + 1: stride, :] for k in range(K)]
    cols = jnp.concatenate(taps, axis=-1).reshape(B * Lout, K * C)
    y = pallas_linear(cols, w2, b, activation="gelu")
    return y.reshape(B, Lout, -1)


def _to_head_major(x, n_head):      # (B, T, D) -> (B*H, T, dh)
    B, T, D = x.shape
    dh = D // n_head
    return x.reshape(B, T, n_head, dh).transpose(0, 2, 1, 3).reshape(B * n_head, T, dh)


def _from_head_major(x, n_head):    # (B*H, T, dh) -> (B, T, D)
    BH, T, dh = x.shape
    B = BH // n_head
    return x.reshape(B, n_head, T, dh).transpose(0, 2, 1, 3).reshape(B, T, n_head * dh)


def multi_head_attention(x, xa, p, n_head, causal, kv_valid):
    B, Tq, D = x.shape
    assert D % n_head == 0
    if xa is None:
        # Fused, pre-scaled QKV projection (built once in prepare_params).
        qkv = pallas_linear(x.reshape(B * Tq, D), p["wqkv"], p["bqkv"]).reshape(B, Tq, 3 * D)
        q, k, v = qkv[..., :D], qkv[..., D:2 * D], qkv[..., 2 * D:]
    else:
        Tk = xa.shape[1]
        q = pallas_linear(x.reshape(B * Tq, D), p["wq"], p["bq"]).reshape(B, Tq, D)
        kv = pallas_linear(xa.reshape(B * Tk, D), p["wkv"], p["bkv"]).reshape(B, Tk, 2 * D)
        k, v = kv[..., :D], kv[..., D:]
    qh = _to_head_major(q, n_head)
    kh = _to_head_major(k, n_head)
    vh = _to_head_major(v, n_head)
    oh = pallas_attention(qh, kh, vh, causal=causal, kv_valid=kv_valid)
    o = _from_head_major(oh, n_head)
    return pallas_linear(o.reshape(B * Tq, D), p["wo"], p["bo"]).reshape(B, Tq, D)


def residual_block(x, p, n_head, causal, self_kv=None, xa=None, cross_kv=None):
    x = x + multi_head_attention(
        pallas_layernorm(x, p["attn_ln_g"], p["attn_ln_b"]),
        None, p["attn"], n_head, causal=causal, kv_valid=self_kv)
    if xa is not None:
        x = x + multi_head_attention(
            pallas_layernorm(x, p["cross_ln_g"], p["cross_ln_b"]),
            xa, p["cross"], n_head, causal=False, kv_valid=cross_kv)
    B, T, D = x.shape
    h = pallas_layernorm(x, p["mlp_ln_g"], p["mlp_ln_b"])
    h = pallas_linear(h.reshape(B * T, D), p["mlp_w1"], p["mlp_b1"], activation="gelu")
    h = pallas_linear(h, p["mlp_w2"], p["mlp_b2"])
    return x + h.reshape(B, T, D)


def encoder_forward(mel, p, cfg):
    x = jnp.transpose(mel, (0, 2, 1)).astype(jnp.bfloat16)     # NCL -> NLC once, bf16 once
    x = conv1d_gelu(x, p["conv1_w"], p["conv1_b"], stride=1)
    x = conv1d_gelu(x, p["conv2_w"], p["conv2_b"], stride=2)
    x = x + p["pos_emb"]                                        # sinusoidal pos-emb (bf16)
    B, T, D = x.shape
    Tp = _seq_pad(T)                                            # pad sequence once
    if Tp != T:
        x = jnp.pad(x, ((0, 0), (0, Tp - T), (0, 0)))
    self_kv = T if Tp != T else None                            # mask padded keys in-kernel
    for bp in p["blocks"]:
        x = residual_block(x, bp, cfg["n_audio_head"], causal=False, self_kv=self_kv)
    x = pallas_layernorm(x, p["ln_post_g"], p["ln_post_b"])
    return x, T                                                 # padded features + valid len


def decoder_forward(tokens, xa, xa_valid, p, cfg):
    B, T = tokens.shape
    # token-embedding gather + learned positional embedding (glue, not hot path)
    x = p["tok_emb"][tokens] + p["pos_emb"][:T]                 # offset = 0 (no kv_cache)
    Tp = _round_up(T, 8)                                        # pad sequence once
    if Tp != T:
        x = jnp.pad(x, ((0, 0), (0, Tp - T), (0, 0)))
    cross_kv = xa_valid if xa_valid != xa.shape[1] else None
    for bp in p["blocks"]:
        x = residual_block(x, bp, cfg["n_text_head"], causal=True,
                           xa=xa, cross_kv=cross_kv)
    x = pallas_layernorm(x, p["ln_g"], p["ln_b"])
    return x[:, :T]                                             # slice once at the end


def model_forward(params, mel, tokens, cfg, embeded_audio=None):
    if embeded_audio is None:
        xa, xa_valid = encoder_forward(mel, params["encoder"], cfg)
    else:
        xa = embeded_audio.astype(jnp.bfloat16)
        xa_valid = xa.shape[1]
    dec = decoder_forward(tokens, xa, xa_valid, params["decoder"], cfg)
    B, T, D = dec.shape
    n_cls = cfg["n_timestamps"] + 2                 # TimestampTokenizer.n_cls_tokens
    n_spk = cfg["n_spks"]
    # Fused ts_head + spk_head projection (single matmul), f32 logits.
    logits = pallas_linear(dec.reshape(B * T, D), params["head_w"], params["head_b"],
                           out_dtype=jnp.float32).reshape(B, T, n_cls + n_spk)
    # TODO(synk): forward() in the source calls self.decode(...) which is not defined on
    # the module; we interpret it as decode_featmap and additionally expose the ts/spk
    # head projections used by segemntate()/tsemb2token()/spkemb2token().
    return {
        "audio_features": xa[:, :xa_valid].astype(jnp.float32),
        "decoder_features": dec.astype(jnp.float32),
        "ts_logits": logits[..., :n_cls],
        "spk_logits": logits[..., n_cls:],
    }


# --------------------------------------------------------------------------
# One-time parameter preparation (fusions, scale folding, bf16 casts)
# --------------------------------------------------------------------------
def prepare_params(raw, cfg):
    def prep_attn(a, n_head, cross):
        D = a["wq"].shape[0]
        scale = float(D // n_head) ** -0.5          # fold full 1/sqrt(dh) into W_q / b_q
        out = dict(wo=a["wo"].astype(jnp.bfloat16), bo=a["bo"].astype(jnp.float32))
        if cross:
            out["wq"] = (a["wq"] * scale).astype(jnp.bfloat16)
            out["bq"] = (a["bq"] * scale).astype(jnp.float32)
            out["wkv"] = jnp.concatenate([a["wk"], a["wv"]], axis=1).astype(jnp.bfloat16)
            out["bkv"] = jnp.concatenate(
                [jnp.zeros((D,), jnp.float32), a["bv"]]).astype(jnp.float32)
        else:
            out["wqkv"] = jnp.concatenate(
                [a["wq"] * scale, a["wk"], a["wv"]], axis=1).astype(jnp.bfloat16)
            out["bqkv"] = jnp.concatenate(
                [a["bq"] * scale, jnp.zeros((D,), jnp.float32), a["bv"]]).astype(jnp.float32)
        return out

    def prep_block(b, n_head, cross):
        out = dict(attn_ln_g=b["attn_ln_g"], attn_ln_b=b["attn_ln_b"],
                   attn=prep_attn(b["attn"], n_head, False),
                   mlp_ln_g=b["mlp_ln_g"], mlp_ln_b=b["mlp_ln_b"],
                   mlp_w1=b["mlp_w1"].astype(jnp.bfloat16), mlp_b1=b["mlp_b1"],
                   mlp_w2=b["mlp_w2"].astype(jnp.bfloat16), mlp_b2=b["mlp_b2"])
        if cross:
            out.update(cross_ln_g=b["cross_ln_g"], cross_ln_b=b["cross_ln_b"],
                       cross=prep_attn(b["cross"], n_head, True))
        return out

    def prep_conv(w, b):
        O, C, K = w.shape
        w2 = jnp.transpose(w, (2, 1, 0)).reshape(K * C, O).astype(jnp.bfloat16)
        return w2, b.astype(jnp.float32)

    enc_raw = raw["encoder"]
    c1w, c1b = prep_conv(enc_raw["conv1_w"], enc_raw["conv1_b"])
    c2w, c2b = prep_conv(enc_raw["conv2_w"], enc_raw["conv2_b"])
    enc = dict(conv1_w=c1w, conv1_b=c1b, conv2_w=c2w, conv2_b=c2b,
               pos_emb=enc_raw["pos_emb"].astype(jnp.bfloat16),
               blocks=[prep_block(b, cfg["n_audio_head"], False) for b in enc_raw["blocks"]],
               ln_post_g=enc_raw["ln_post_g"], ln_post_b=enc_raw["ln_post_b"])

    dec_raw = raw["decoder"]
    dec = dict(tok_emb=dec_raw["tok_emb"].astype(jnp.bfloat16),
               pos_emb=dec_raw["pos_emb"].astype(jnp.bfloat16),
               blocks=[prep_block(b, cfg["n_text_head"], True) for b in dec_raw["blocks"]],
               ln_g=dec_raw["ln_g"], ln_b=dec_raw["ln_b"])

    head_w = jnp.concatenate([raw["ts_w"], raw["spk_kernel"]], axis=1).astype(jnp.bfloat16)
    head_b = jnp.concatenate([raw["ts_b"],
                              jnp.zeros((cfg["n_spks"],), jnp.float32)]).astype(jnp.float32)
    return dict(encoder=enc, decoder=dec, head_w=head_w, head_b=head_b)


# --------------------------------------------------------------------------
# Deterministic raw (PyTorch-layout) parameter initialization
# --------------------------------------------------------------------------
def init_params(key, cfg):
    keys = iter(jax.random.split(key, 512))

    def nrm(shape, scale=0.02):
        return (scale * jax.random.normal(next(keys), shape)).astype(jnp.float32)

    def zeros(n):
        return jnp.zeros((n,), jnp.float32)

    def ones(n):
        return jnp.ones((n,), jnp.float32)

    def attn_params(D):
        return dict(wq=nrm((D, D)), bq=zeros(D),
                    wk=nrm((D, D)),                       # key Linear has no bias
                    wv=nrm((D, D)), bv=zeros(D),
                    wo=nrm((D, D)), bo=zeros(D))

    def block_params(D, cross):
        p = dict(attn_ln_g=ones(D), attn_ln_b=zeros(D),
                 attn=attn_params(D),
                 mlp_ln_g=ones(D), mlp_ln_b=zeros(D),
                 mlp_w1=nrm((D, 4 * D)), mlp_b1=zeros(4 * D),
                 mlp_w2=nrm((4 * D, D)), mlp_b2=zeros(D))
        if cross:
            p.update(cross_ln_g=ones(D), cross_ln_b=zeros(D), cross=attn_params(D))
        return p

    Da, Dt = cfg["n_audio_state"], cfg["n_text_state"]
    n_cls = cfg["n_timestamps"] + 2                 # TimestampTokenizer.n_cls_tokens

    enc = dict(conv1_w=nrm((Da, cfg["n_mels"], 3)), conv1_b=zeros(Da),
               conv2_w=nrm((Da, Da, 3)), conv2_b=zeros(Da),
               pos_emb=sinusoids(cfg["n_audio_ctx"], Da),
               blocks=[block_params(Da, False) for _ in range(cfg["n_audio_layer"])],
               ln_post_g=ones(Da), ln_post_b=zeros(Da))
    dec = dict(tok_emb=nrm((cfg["n_vocab"], Dt)),
               pos_emb=nrm((cfg["n_text_ctx"], Dt), scale=1.0),   # nn.init.normal_
               blocks=[block_params(Dt, True) for _ in range(cfg["n_text_layer"])],
               ln_g=ones(Dt), ln_b=zeros(Dt))
    return dict(encoder=enc, decoder=dec,
                ts_w=nrm((Dt, n_cls)), ts_b=zeros(n_cls),
                spk_kernel=nrm((Dt, cfg["n_spks"])))


# --------------------------------------------------------------------------
if __name__ == "__main__":
    cfg = dict(n_mels=16, n_audio_ctx=16, n_audio_state=32, n_audio_head=2,
               n_audio_layer=1,
               n_vocab=14,            # n_timestamps + 2 specials + n_spks
               n_text_ctx=8, n_text_state=32, n_text_head=2, n_text_layer=1,
               n_spks=4, n_timestamps=8)

    key = jax.random.PRNGKey(0)
    k_mel, k_tok, k_par = jax.random.split(key, 3)

    B = 2
    # mel length is 2 * n_audio_ctx so conv2 (stride 2) output matches the pos embedding.
    mel = jax.random.normal(k_mel, (B, cfg["n_mels"], 2 * cfg["n_audio_ctx"]), jnp.float32)
    T_text = 6
    tokens = jax.random.randint(k_tok, (B, T_text), 0, cfg["n_vocab"], dtype=jnp.int32)

    raw_params = init_params(k_par, cfg)
    params = prepare_params(raw_params, cfg)        # one-time fuse / fold / bf16-cast

    fwd = jax.jit(functools.partial(model_forward, cfg=cfg))
    out = fwd(params, mel, tokens)
    jax.block_until_ready(out)
    print("KERNEL_OK")
</pallas_src>

<mosaic_0001>
module attributes {stable_mosaic.version = 11 : i64} {
  func.func @_matmul_bias_kernel(%arg0: i32, %arg1: i32, %arg2: i32, %arg3: memref<64x128xbf16, #tpu.memory_space<vmem>>, %arg4: memref<128x128xbf16, #tpu.memory_space<vmem>>, %arg5: memref<1x128xf32, #tpu.memory_space<vmem>>, %arg6: memref<64x128xbf16, #tpu.memory_space<vmem>>, %arg7: memref<64x128xf32, #tpu.memory_space<vmem>>) attributes {dimension_semantics = [#tpu.dimension_semantics<parallel>, #tpu.dimension_semantics<parallel>, #tpu.dimension_semantics<arbitrary>], iteration_bounds = array<i64: 1, 1, 1>, scalar_prefetch = 0 : i64, scratch_operands = 1 : i64, tpu.core_type = #tpu.core_type<tc>, window_params = [{transform_indices = @transform_0, window_bounds = array<i64: 64, 128>}, {transform_indices = @transform_1, window_bounds = array<i64: 128, 128>}, {transform_indices = @transform_2, window_bounds = array<i64: 1, 128>}, {transform_indices = @transform_3, window_bounds = array<i64: 64, 128>}]} {
    %c0_i32 = arith.constant 0 : i32
    %0 = arith.cmpi eq, %arg2, %c0_i32 : i32
    %1 = arith.extui %0 : i1 to i32
    %c0_i32_0 = arith.constant 0 : i32
    %2 = arith.cmpi ne, %1, %c0_i32_0 : i32
    scf.if %2 {
      %cst_10 = arith.constant 0.000000e+00 : f32
      %12 = vector.broadcast %cst_10 : f32 to vector<64x128xf32>
      %c0_11 = arith.constant 0 : index
      %c0_12 = arith.constant 0 : index
      %13 = vector.load %arg7[%c0_11, %c0_12] : memref<64x128xf32, #tpu.memory_space<vmem>>, vector<64x128xf32>
      tpu.vector_store %arg7[%c0_11, %c0_12], %12 {strides = array<i32>} : memref<64x128xf32, #tpu.memory_space<vmem>>, vector<64x128xf32>,
    } else {
    }
    %c0 = arith.constant 0 : index
    %c0_1 = arith.constant 0 : index
    %3 = vector.load %arg7[%c0, %c0_1] : memref<64x128xf32, #tpu.memory_space<vmem>>, vector<64x128xf32>
    %c0_2 = arith.constant 0 : index
    %c0_3 = arith.constant 0 : index
    %4 = vector.load %arg3[%c0_2, %c0_3] : memref<64x128xbf16, #tpu.memory_space<vmem>>, vector<64x128xbf16>
    %c0_4 = arith.constant 0 : index
    %c0_5 = arith.constant 0 : index
    %5 = vector.load %arg4[%c0_4, %c0_5] : memref<128x128xbf16, #tpu.memory_space<vmem>>, vector<128x128xbf16>
    %cst = arith.constant dense<0.000000e+00> : vector<64x128xf32>
    %6 = tpu.matmul %4, %5, %cst {dimension_numbers = #tpu.dot_dimension_numbers<[1], [0], [0], [1], [0, 0, 1, 1], [], []>} : vector<64x128xbf16>, vector<128x128xbf16>, vector<64x128xf32> -> vector<64x128xf32>
    %7 = arith.addf %3, %6 : vector<64x128xf32>
    %c0_6 = arith.constant 0 : index
    %c0_7 = arith.constant 0 : index
    %8 = vector.load %arg7[%c0_6, %c0_7] : memref<64x128xf32, #tpu.memory_space<vmem>>, vector<64x128xf32>
    tpu.vector_store %arg7[%c0_6, %c0_7], %7 {strides = array<i32>} : memref<64x128xf32, #tpu.memory_space<vmem>>, vector<64x128xf32>,
    %c0_i32_8 = arith.constant 0 : i32
    %9 = arith.cmpi eq, %arg2, %c0_i32_8 : i32
    %10 = arith.extui %9 : i1 to i32
    %c0_i32_9 = arith.constant 0 : i32
    %11 = arith.cmpi ne, %10, %c0_i32_9 : i32
    scf.if %11 {
      %c0_10 = arith.constant 0 : index
      %c0_11 = arith.constant 0 : index
      %12 = vector.load %arg7[%c0_10, %c0_11] : memref<64x128xf32, #tpu.memory_space<vmem>>, vector<64x128xf32>
      %c0_12 = arith.constant 0 : index
      %c0_13 = arith.constant 0 : index
      %13 = vector.load %arg5[%c0_12, %c0_13] : memref<1x128xf32, #tpu.memory_space<vmem>>, vector<1x128xf32>
      %14 = vector.broadcast %13 : vector<1x128xf32> to vector<64x128xf32>
      %15 = arith.addf %12, %14 : vector<64x128xf32>
      %cst_14 = arith.constant 5.000000e-01 : f32
      %16 = vector.broadcast %cst_14 : f32 to vector<64x128xf32>
      %17 = arith.mulf %16, %15 : vector<64x128xf32>
      %cst_15 = arith.constant 4.471500e-02 : f32
      %18 = vector.broadcast %cst_15 : f32 to vector<64x128xf32>
      %19 = arith.mulf %18, %15 : vector<64x128xf32>
      %20 = arith.mulf %19, %15 : vector<64x128xf32>
      %21 = arith.mulf %20, %15 : vector<64x128xf32>
      %22 = arith.addf %15, %21 : vector<64x128xf32>
      %cst_16 = arith.constant 0.797884583 : f32
      %23 = vector.broadcast %cst_16 : f32 to vector<64x128xf32>
      %24 = arith.mulf %23, %22 : vector<64x128xf32>
      %25 = math.tanh %24 : vector<64x128xf32>
      %cst_17 = arith.constant 1.000000e+00 : f32
      %26 = vector.broadcast %cst_17 : f32 to vector<64x128xf32>
      %27 = arith.addf %26, %25 : vector<64x128xf32>
      %28 = arith.mulf %17, %27 : vector<64x128xf32>
      %29 = arith.truncf %28 : vector<64x128xf32> to vector<64x128xbf16>
      %c0_18 = arith.constant 0 : index
      %c0_19 = arith.constant 0 : index
      %30 = vector.load %arg6[%c0_18, %c0_19] : memref<64x128xbf16, #tpu.memory_space<vmem>>, vector<64x128xbf16>
      tpu.vector_store %arg6[%c0_18, %c0_19], %29 {strides = array<i32>} : memref<64x128xbf16, #tpu.memory_space<vmem>>, vector<64x128xbf16>,
    } else {
    }
    return
  }
  func.func @transform_0(%arg0: i32, %arg1: i32, %arg2: i32) -> (i32, i32) {
    %c0_i32 = arith.constant 0 : i32
    return %arg0, %arg2 : i32, i32
  }
  func.func @transform_1(%arg0: i32, %arg1: i32, %arg2: i32) -> (i32, i32) {
    %c0_i32 = arith.constant 0 : i32
    return %arg2, %arg1 : i32, i32
  }
  func.func @transform_2(%arg0: i32, %arg1: i32, %arg2: i32) -> (i32, i32) {
    %c0_i32 = arith.constant 0 : i32
    %c0_i32_0 = arith.constant 0 : i32
    return %c0_i32, %arg1 : i32, i32
  }
  func.func @transform_3(%arg0: i32, %arg1: i32, %arg2: i32) -> (i32, i32) {
    %c0_i32 = arith.constant 0 : i32
    return %arg0, %arg1 : i32, i32
  }
}

module attributes {stable_mosaic.version = 11 : i64} {
  func.func @_matmul_bias_kernel(%arg0: i32, %arg1: i32, %arg2: i32, %arg3: memref<32x128xbf16, #tpu.memory_space<vmem>>, %arg4: memref<128x128xbf16, #tpu.memory_space<vmem>>, %arg5: memref<1x128xf32, #tpu.memory_space<vmem>>, %arg6: memref<32x128xbf16, #tpu.memory_space<vmem>>, %arg7: memref<32x128xf32, #tpu.memory_space<vmem>>) attributes {dimension_semantics = [#tpu.dimension_semantics<parallel>, #tpu.dimension_semantics<parallel>, #tpu.dimension_semantics<arbitrary>], iteration_bounds = array<i64: 1, 1, 1>, scalar_prefetch = 0 : i64, scratch_operands = 1 : i64, tpu.core_type = #tpu.core_type<tc>, window_params = [{transform_indices = @transform_0, window_bounds = array<i64: 32, 128>}, {transform_indices = @transform_1, window_bounds = array<i64: 128, 128>}, {transform_indices = @transform_2, window_bounds = array<i64: 1, 128>}, {transform_indices = @transform_3, window_bounds = array<i64: 32, 128>}]} {
    %c0_i32 = arith.constant 0 : i32
    %0 = arith.cmpi eq, %arg2, %c0_i32 : i32
    %1 = arith.extui %0 : i1 to i32
    %c0_i32_0 = arith.constant 0 : i32
    %2 = arith.cmpi ne, %1, %c0_i32_0 : i32
    scf.if %2 {
      %cst_10 = arith.constant 0.000000e+00 : f32
      %12 = vector.broadcast %cst_10 : f32 to vector<32x128xf32>
      %c0_11 = arith.constant 0 : index
      %c0_12 = arith.constant 0 : index
      %13 = vector.load %arg7[%c0_11, %c0_12] : memref<32x128xf32, #tpu.memory_space<vmem>>, vector<32x128xf32>
      tpu.vector_store %arg7[%c0_11, %c0_12], %12 {strides = array<i32>} : memref<32x128xf32, #tpu.memory_space<vmem>>, vector<32x128xf32>,
    } else {
    }
    %c0 = arith.constant 0 : index
    %c0_1 = arith.constant 0 : index
    %3 = vector.load %arg7[%c0, %c0_1] : memref<32x128xf32, #tpu.memory_space<vmem>>, vector<32x128xf32>
    %c0_2 = arith.constant 0 : index
    %c0_3 = arith.constant 0 : index
    %4 = vector.load %arg3[%c0_2, %c0_3] : memref<32x128xbf16, #tpu.memory_space<vmem>>, vector<32x128xbf16>
    %c0_4 = arith.constant 0 : index
    %c0_5 = arith.constant 0 : index
    %5 = vector.load %arg4[%c0_4, %c0_5] : memref<128x128xbf16, #tpu.memory_space<vmem>>, vector<128x128xbf16>
    %cst = arith.constant dense<0.000000e+00> : vector<32x128xf32>
    %6 = tpu.matmul %4, %5, %cst {dimension_numbers = #tpu.dot_dimension_numbers<[1], [0], [0], [1], [0, 0, 1, 1], [], []>} : vector<32x128xbf16>, vector<128x128xbf16>, vector<32x128xf32> -> vector<32x128xf32>
    %7 = arith.addf %3, %6 : vector<32x128xf32>
    %c0_6 = arith.constant 0 : index
    %c0_7 = arith.constant 0 : index
    %8 = vector.load %arg7[%c0_6, %c0_7] : memref<32x128xf32, #tpu.memory_space<vmem>>, vector<32x128xf32>
    tpu.vector_store %arg7[%c0_6, %c0_7], %7 {strides = array<i32>} : memref<32x128xf32, #tpu.memory_space<vmem>>, vector<32x128xf32>,
    %c0_i32_8 = arith.constant 0 : i32
    %9 = arith.cmpi eq, %arg2, %c0_i32_8 : i32
    %10 = arith.extui %9 : i1 to i32
    %c0_i32_9 = arith.constant 0 : i32
    %11 = arith.cmpi ne, %10, %c0_i32_9 : i32
    scf.if %11 {
      %c0_10 = arith.constant 0 : index
      %c0_11 = arith.constant 0 : index
      %12 = vector.load %arg7[%c0_10, %c0_11] : memref<32x128xf32, #tpu.memory_space<vmem>>, vector<32x128xf32>
      %c0_12 = arith.constant 0 : index
      %c0_13 = arith.constant 0 : index
      %13 = vector.load %arg5[%c0_12, %c0_13] : memref<1x128xf32, #tpu.memory_space<vmem>>, vector<1x128xf32>
      %14 = vector.broadcast %13 : vector<1x128xf32> to vector<32x128xf32>
      %15 = arith.addf %12, %14 : vector<32x128xf32>
      %cst_14 = arith.constant 5.000000e-01 : f32
      %16 = vector.broadcast %cst_14 : f32 to vector<32x128xf32>
      %17 = arith.mulf %16, %15 : vector<32x128xf32>
      %cst_15 = arith.constant 4.471500e-02 : f32
      %18 = vector.broadcast %cst_15 : f32 to vector<32x128xf32>
      %19 = arith.mulf %18, %15 : vector<32x128xf32>
      %20 = arith.mulf %19, %15 : vector<32x128xf32>
      %21 = arith.mulf %20, %15 : vector<32x128xf32>
      %22 = arith.addf %15, %21 : vector<32x128xf32>
      %cst_16 = arith.constant 0.797884583 : f32
      %23 = vector.broadcast %cst_16 : f32 to vector<32x128xf32>
      %24 = arith.mulf %23, %22 : vector<32x128xf32>
      %25 = math.tanh %24 : vector<32x128xf32>
      %cst_17 = arith.constant 1.000000e+00 : f32
      %26 = vector.broadcast %cst_17 : f32 to vector<32x128xf32>
      %27 = arith.addf %26, %25 : vector<32x128xf32>
      %28 = arith.mulf %17, %27 : vector<32x128xf32>
      %29 = arith.truncf %28 : vector<32x128xf32> to vector<32x128xbf16>
      %c0_18 = arith.constant 0 : index
      %c0_19 = arith.constant 0 : index
      %30 = vector.load %arg6[%c0_18, %c0_19] : memref<32x128xbf16, #tpu.memory_space<vmem>>, vector<32x128xbf16>
      tpu.vector_store %arg6[%c0_18, %c0_19], %29 {strides = array<i32>} : memref<32x128xbf16, #tpu.memory_space<vmem>>, vector<32x128xbf16>,
    } else {
    }
    return
  }
  func.func @transform_0(%arg0: i32, %arg1: i32, %arg2: i32) -> (i32, i32) {
    %c0_i32 = arith.constant 0 : i32
    return %arg0, %arg2 : i32, i32
  }
  func.func @transform_1(%arg0: i32, %arg1: i32, %arg2: i32) -> (i32, i32) {
    %c0_i32 = arith.constant 0 : i32
    return %arg2, %arg1 : i32, i32
  }
  func.func @transform_2(%arg0: i32, %arg1: i32, %arg2: i32) -> (i32, i32) {
    %c0_i32 = arith.constant 0 : i32
    %c0_i32_0 = arith.constant 0 : i32
    return %c0_i32, %arg1 : i32, i32
  }
  func.func @transform_3(%arg0: i32, %arg1: i32, %arg2: i32) -> (i32, i32) {
    %c0_i32 = arith.constant 0 : i32
    return %arg0, %arg1 : i32, i32
  }
}

module attributes {stable_mosaic.version = 11 : i64} {
  func.func @_layernorm_kernel(%arg0: i32, %arg1: memref<32x32xbf16, #tpu.memory_space<vmem>>, %arg2: memref<1x32xf32, #tpu.memory_space<vmem>>, %arg3: memref<1x32xf32, #tpu.memory_space<vmem>>, %arg4: memref<32x32xbf16, #tpu.memory_space<vmem>>) attributes {dimension_semantics = [#tpu.dimension_semantics<parallel>], iteration_bounds = array<i64: 1>, scalar_prefetch = 0 : i64, scratch_operands = 0 : i64, tpu.core_type = #tpu.core_type<tc>, window_params = [{transform_indices = @transform_0, window_bounds = array<i64: 32, 32>}, {pipeline_mode = #tpu.pipeline_mode<synchronous>, transform_indices = @transform_1, window_bounds = array<i64: 1, 32>}, {pipeline_mode = #tpu.pipeline_mode<synchronous>, transform_indices = @transform_2, window_bounds = array<i64: 1, 32>}, {transform_indices = @transform_3, window_bounds = array<i64: 32, 32>}]} {
    %c0 = arith.constant 0 : index
    %c0_0 = arith.constant 0 : index
    %0 = vector.load %arg1[%c0, %c0_0] : memref<32x32xbf16, #tpu.memory_space<vmem>>, vector<32x32xbf16>
    %1 = arith.extf %0 : vector<32x32xbf16> to vector<32x32xf32>
    %cst = arith.constant dense<0.000000e+00> : vector<32xf32>
    %2 = vector.multi_reduction <add>, %1, %cst [1] : vector<32x32xf32> to vector<32xf32>
    %3 = vector.shape_cast %2 : vector<32xf32> to vector<32x1xf32>
    %cst_1 = arith.constant 3.200000e+01 : f32
    %4 = vector.broadcast %cst_1 : f32 to vector<32x1xf32>
    %5 = arith.divf %3, %4 : vector<32x1xf32>
    %6 = arith.mulf %1, %1 : vector<32x32xf32>
    %cst_2 = arith.constant dense<0.000000e+00> : vector<32xf32>
    %7 = vector.multi_reduction <add>, %6, %cst_2 [1] : vector<32x32xf32> to vector<32xf32>
    %8 = vector.shape_cast %7 : vector<32xf32> to vector<32x1xf32>
    %cst_3 = arith.constant 3.200000e+01 : f32
    %9 = vector.broadcast %cst_3 : f32 to vector<32x1xf32>
    %10 = arith.divf %8, %9 : vector<32x1xf32>
    %11 = arith.mulf %5, %5 : vector<32x1xf32>
    %12 = arith.subf %10, %11 : vector<32x1xf32>
    %13 = vector.broadcast %5 : vector<32x1xf32> to vector<32x32xf32>
    %14 = arith.subf %1, %13 : vector<32x32xf32>
    %cst_4 = arith.constant 9.99999974E-6 : f32
    %15 = vector.broadcast %cst_4 : f32 to vector<32x1xf32>
    %16 = arith.addf %12, %15 : vector<32x1xf32>
    %17 = math.rsqrt %16 : vector<32x1xf32>
    %18 = vector.broadcast %17 : vector<32x1xf32> to vector<32x32xf32>
    %19 = arith.mulf %14, %18 : vector<32x32xf32>
    %c0_5 = arith.constant 0 : index
    %c0_6 = arith.constant 0 : index
    %20 = vector.load %arg2[%c0_5, %c0_6] : memref<1x32xf32, #tpu.memory_space<vmem>>, vector<1x32xf32>
    %21 = vector.broadcast %20 : vector<1x32xf32> to vector<32x32xf32>
    %22 = arith.mulf %19, %21 : vector<32x32xf32>
    %c0_7 = arith.constant 0 : index
    %c0_8 = arith.constant 0 : index
    %23 = vector.load %arg3[%c0_7, %c0_8] : memref<1x32xf32, #tpu.memory_space<vmem>>, vector<1x32xf32>
    %24 = vector.broadcast %23 : vector<1x32xf32> to vector<32x32xf32>
    %25 = arith.addf %22, %24 : vector<32x32xf32>
    %26 = arith.truncf %25 : vector<32x32xf32> to vector<32x32xbf16>
    %c0_9 = arith.constant 0 : index
    %c0_10 = arith.constant 0 : index
    %27 = vector.load %arg4[%c0_9, %c0_10] : memref<32x32xbf16, #tpu.memory_space<vmem>>, vector<32x32xbf16>
    tpu.vector_store %arg4[%c0_9, %c0_10], %26 {strides = array<i32>} : memref<32x32xbf16, #tpu.memory_space<vmem>>, vector<32x32xbf16>,
    return
  }
  func.func @transform_0(%arg0: i32) -> (i32, i32) {
    %c0_i32 = arith.constant 0 : i32
    %c0_i32_0 = arith.constant 0 : i32
    return %arg0, %c0_i32 : i32, i32
  }
  func.func @transform_1(%arg0: i32) -> (i32, i32) {
    %c0_i32 = arith.constant 0 : i32
    %c0_i32_0 = arith.constant 0 : i32
    %c0_i32_1 = arith.constant 0 : i32
    return %c0_i32, %c0_i32_0 : i32, i32
  }
  func.func @transform_2(%arg0: i32) -> (i32, i32) {
    %c0_i32 = arith.constant 0 : i32
    %c0_i32_0 = arith.constant 0 : i32
    %c0_i32_1 = arith.constant 0 : i32
    return %c0_i32, %c0_i32_0 : i32, i32
  }
  func.func @transform_3(%arg0: i32) -> (i32, i32) {
    %c0_i32 = arith.constant 0 : i32
    %c0_i32_0 = arith.constant 0 : i32
    return %arg0, %c0_i32 : i32, i32
  }
}

module attributes {stable_mosaic.version = 11 : i64} {
  func.func @_matmul_bias_kernel(%arg0: i32, %arg1: i32, %arg2: i32, %arg3: memref<32x128xbf16, #tpu.memory_space<vmem>>, %arg4: memref<128x128xbf16, #tpu.memory_space<vmem>>, %arg5: memref<1x128xf32, #tpu.memory_space<vmem>>, %arg6: memref<32x128xbf16, #tpu.memory_space<vmem>>, %arg7: memref<32x128xf32, #tpu.memory_space<vmem>>) attributes {dimension_semantics = [#tpu.dimension_semantics<parallel>, #tpu.dimension_semantics<parallel>, #tpu.dimension_semantics<arbitrary>], iteration_bounds = array<i64: 1, 1, 1>, scalar_prefetch = 0 : i64, scratch_operands = 1 : i64, tpu.core_type = #tpu.core_type<tc>, window_params = [{transform_indices = @transform_0, window_bounds = array<i64: 32, 128>}, {transform_indices = @transform_1, window_bounds = array<i64: 128, 128>}, {transform_indices = @transform_2, window_bounds = array<i64: 1, 128>}, {transform_indices = @transform_3, window_bounds = array<i64: 32, 128>}]} {
    %c0_i32 = arith.constant 0 : i32
    %0 = arith.cmpi eq, %arg2, %c0_i32 : i32
    %1 = arith.extui %0 : i1 to i32
    %c0_i32_0 = arith.constant 0 : i32
    %2 = arith.cmpi ne, %1, %c0_i32_0 : i32
    scf.if %2 {
      %cst_10 = arith.constant 0.000000e+00 : f32
      %12 = vector.broadcast %cst_10 : f32 to vector<32x128xf32>
      %c0_11 = arith.constant 0 : index
      %c0_12 = arith.constant 0 : index
      %13 = vector.load %arg7[%c0_11, %c0_12] : memref<32x128xf32, #tpu.memory_space<vmem>>, vector<32x128xf32>
      tpu.vector_store %arg7[%c0_11, %c0_12], %12 {strides = array<i32>} : memref<32x128xf32, #tpu.memory_space<vmem>>, vector<32x128xf32>,
    } else {
    }
    %c0 = arith.constant 0 : index
    %c0_1 = arith.constant 0 : index
    %3 = vector.load %arg7[%c0, %c0_1] : memref<32x128xf32, #tpu.memory_space<vmem>>, vector<32x128xf32>
    %c0_2 = arith.constant 0 : index
    %c0_3 = arith.constant 0 : index
    %4 = vector.load %arg3[%c0_2, %c0_3] : memref<32x128xbf16, #tpu.memory_space<vmem>>, vector<32x128xbf16>
    %c0_4 = arith.constant 0 : index
    %c0_5 = arith.constant 0 : index
    %5 = vector.load %arg4[%c0_4, %c0_5] : memref<128x128xbf16, #tpu.memory_space<vmem>>, vector<128x128xbf16>
    %cst = arith.constant dense<0.000000e+00> : vector<32x128xf32>
    %6 = tpu.matmul %4, %5, %cst {dimension_numbers = #tpu.dot_dimension_numbers<[1], [0], [0], [1], [0, 0, 1, 1], [], []>} : vector<32x128xbf16>, vector<128x128xbf16>, vector<32x128xf32> -> vector<32x128xf32>
    %7 = arith.addf %3, %6 : vector<32x128xf32>
    %c0_6 = arith.constant 0 : index
    %c0_7 = arith.constant 0 : index
    %8 = vector.load %arg7[%c0_6, %c0_7] : memref<32x128xf32, #tpu.memory_space<vmem>>, vector<32x128xf32>
    tpu.vector_store %arg7[%c0_6, %c0_7], %7 {strides = array<i32>} : memref<32x128xf32, #tpu.memory_space<vmem>>, vector<32x128xf32>,
    %c0_i32_8 = arith.constant 0 : i32
    %9 = arith.cmpi eq, %arg2, %c0_i32_8 : i32
    %10 = arith.extui %9 : i1 to i32
    %c0_i32_9 = arith.constant 0 : i32
    %11 = arith.cmpi ne, %10, %c0_i32_9 : i32
    scf.if %11 {
      %c0_10 = arith.constant 0 : index
      %c0_11 = arith.constant 0 : index
      %12 = vector.load %arg7[%c0_10, %c0_11] : memref<32x128xf32, #tpu.memory_space<vmem>>, vector<32x128xf32>
      %c0_12 = arith.constant 0 : index
      %c0_13 = arith.constant 0 : index
      %13 = vector.load %arg5[%c0_12, %c0_13] : memref<1x128xf32, #tpu.memory_space<vmem>>, vector<1x128xf32>
      %14 = vector.broadcast %13 : vector<1x128xf32> to vector<32x128xf32>
      %15 = arith.addf %12, %14 : vector<32x128xf32>
      %16 = arith.truncf %15 : vector<32x128xf32> to vector<32x128xbf16>
      %c0_14 = arith.constant 0 : index
      %c0_15 = arith.constant 0 : index
      %17 = vector.load %arg6[%c0_14, %c0_15] : memref<32x128xbf16, #tpu.memory_space<vmem>>, vector<32x128xbf16>
      tpu.vector_store %arg6[%c0_14, %c0_15], %16 {strides = array<i32>} : memref<32x128xbf16, #tpu.memory_space<vmem>>, vector<32x128xbf16>,
    } else {
    }
    return
  }
  func.func @transform_0(%arg0: i32, %arg1: i32, %arg2: i32) -> (i32, i32) {
    %c0_i32 = arith.constant 0 : i32
    return %arg0, %arg2 : i32, i32
  }
  func.func @transform_1(%arg0: i32, %arg1: i32, %arg2: i32) -> (i32, i32) {
    %c0_i32 = arith.constant 0 : i32
    return %arg2, %arg1 : i32, i32
  }
  func.func @transform_2(%arg0: i32, %arg1: i32, %arg2: i32) -> (i32, i32) {
    %c0_i32 = arith.constant 0 : i32
    %c0_i32_0 = arith.constant 0 : i32
    return %c0_i32, %arg1 : i32, i32
  }
  func.func @transform_3(%arg0: i32, %arg1: i32, %arg2: i32) -> (i32, i32) {
    %c0_i32 = arith.constant 0 : i32
    return %arg0, %arg1 : i32, i32
  }
}

module attributes {stable_mosaic.version = 11 : i64} {
  func.func @_flash_kernel(%arg0: i32, %arg1: i32, %arg2: i32, %arg3: memref<1x16x16xbf16, #tpu.memory_space<vmem>>, %arg4: memref<1x16x16xbf16, #tpu.memory_space<vmem>>, %arg5: memref<1x16x16xbf16, #tpu.memory_space<vmem>>, %arg6: memref<1x16x16xbf16, #tpu.memory_space<vmem>>, %arg7: memref<16x1xf32, #tpu.memory_space<vmem>>, %arg8: memref<16x1xf32, #tpu.memory_space<vmem>>, %arg9: memref<16x16xf32, #tpu.memory_space<vmem>>) attributes {dimension_semantics = [#tpu.dimension_semantics<parallel>, #tpu.dimension_semantics<parallel>, #tpu.dimension_semantics<arbitrary>], iteration_bounds = array<i64: 4, 1, 1>, scalar_prefetch = 0 : i64, scratch_operands = 3 : i64, tpu.core_type = #tpu.core_type<tc>, window_params = [{transform_indices = @transform_0, window_bounds = array<i64: 1, 16, 16>}, {transform_indices = @transform_1, window_bounds = array<i64: 1, 16, 16>}, {transform_indices = @transform_2, window_bounds = array<i64: 1, 16, 16>}, {transform_indices = @transform_3, window_bounds = array<i64: 1, 16, 16>}]} {
    %c0_i32 = arith.constant 0 : i32
    %0 = arith.cmpi eq, %arg2, %c0_i32 : i32
    %1 = arith.extui %0 : i1 to i32
    %c0_i32_0 = arith.constant 0 : i32
    %2 = arith.cmpi ne, %1, %c0_i32_0 : i32
    scf.if %2 {
      %cst_26 = arith.constant -2.38197633E+38 : f32
      %37 = vector.broadcast %cst_26 : f32 to vector<16x1xf32>
      %c0_27 = arith.constant 0 : index
      %c0_28 = arith.constant 0 : index
      %38 = vector.load %arg7[%c0_27, %c0_28] : memref<16x1xf32, #tpu.memory_space<vmem>>, vector<16x1xf32>
      tpu.vector_store %arg7[%c0_27, %c0_28], %37 {strides = array<i32>} : memref<16x1xf32, #tpu.memory_space<vmem>>, vector<16x1xf32>,
      %cst_29 = arith.constant 0.000000e+00 : f32
      %39 = vector.broadcast %cst_29 : f32 to vector<16x1xf32>
      %c0_30 = arith.constant 0 : index
      %c0_31 = arith.constant 0 : index
      %40 = vector.load %arg8[%c0_30, %c0_31] : memref<16x1xf32, #tpu.memory_space<vmem>>, vector<16x1xf32>
      tpu.vector_store %arg8[%c0_30, %c0_31], %39 {strides = array<i32>} : memref<16x1xf32, #tpu.memory_space<vmem>>, vector<16x1xf32>,
      %cst_32 = arith.constant 0.000000e+00 : f32
      %41 = vector.broadcast %cst_32 : f32 to vector<16x16xf32>
      %c0_33 = arith.constant 0 : index
      %c0_34 = arith.constant 0 : index
      %42 = vector.load %arg9[%c0_33, %c0_34] : memref<16x16xf32, #tpu.memory_space<vmem>>, vector<16x16xf32>
      tpu.vector_store %arg9[%c0_33, %c0_34], %41 {strides = array<i32>} : memref<16x16xf32, #tpu.memory_space<vmem>>, vector<16x16xf32>,
    } else {
    }
    %c0 = arith.constant 0 : index
    %c0_1 = arith.constant 0 : index
    %c0_2 = arith.constant 0 : index
    %3 = vector.load %arg3[%c0, %c0_1, %c0_2] : memref<1x16x16xbf16, #tpu.memory_space<vmem>>, vector<1x16x16xbf16>
    %4 = vector.shape_cast %3 : vector<1x16x16xbf16> to vector<16x16xbf16>
    %c0_3 = arith.constant 0 : index
    %c0_4 = arith.constant 0 : index
    %c0_5 = arith.constant 0 : index
    %5 = vector.load %arg4[%c0_3, %c0_4, %c0_5] : memref<1x16x16xbf16, #tpu.memory_space<vmem>>, vector<1x16x16xbf16>
    %6 = vector.shape_cast %5 : vector<1x16x16xbf16> to vector<16x16xbf16>
    %c0_6 = arith.constant 0 : index
    %c0_7 = arith.constant 0 : index
    %c0_8 = arith.constant 0 : index
    %7 = vector.load %arg5[%c0_6, %c0_7, %c0_8] : memref<1x16x16xbf16, #tpu.memory_space<vmem>>, vector<1x16x16xbf16>
    %8 = vector.shape_cast %7 : vector<1x16x16xbf16> to vector<16x16xbf16>
    %cst = arith.constant dense<0.000000e+00> : vector<16x16xf32>
    %9 = tpu.matmul %4, %6, %cst {dimension_numbers = #tpu.dot_dimension_numbers<[1], [1], [0], [0], [0, 0, 1, 0], [], []>} : vector<16x16xbf16>, vector<16x16xbf16>, vector<16x16xf32> -> vector<16x16xf32>
    %c0_9 = arith.constant 0 : index
    %c0_10 = arith.constant 0 : index
    %10 = vector.load %arg7[%c0_9, %c0_10] : memref<16x1xf32, #tpu.memory_space<vmem>>, vector<16x1xf32>
    %cst_11 = arith.constant dense<0xFF800000> : vector<16xf32>
    %11 = vector.multi_reduction <maximumf>, %9, %cst_11 [1] : vector<16x16xf32> to vector<16xf32>
    %12 = vector.shape_cast %11 : vector<16xf32> to vector<16x1xf32>
    %13 = arith.maximumf %10, %12 : vector<16x1xf32>
    %14 = arith.subf %10, %13 : vector<16x1xf32>
    %15 = math.exp %14 : vector<16x1xf32>
    %16 = vector.broadcast %13 : vector<16x1xf32> to vector<16x16xf32>
    %17 = arith.subf %9, %16 : vector<16x16xf32>
    %18 = arith.truncf %17 : vector<16x16xf32> to vector<16x16xbf16>
    %19 = math.exp %18 : vector<16x16xbf16>
    %c0_12 = arith.constant 0 : index
    %c0_13 = arith.constant 0 : index
    %20 = vector.load %arg8[%c0_12, %c0_13] : memref<16x1xf32, #tpu.memory_space<vmem>>, vector<16x1xf32>
    %21 = arith.mulf %15, %20 : vector<16x1xf32>
    %22 = arith.extf %19 : vector<16x16xbf16> to vector<16x16xf32>
    %cst_14 = arith.constant dense<0.000000e+00> : vector<16xf32>
    %23 = vector.multi_reduction <add>, %22, %cst_14 [1] : vector<16x16xf32> to vector<16xf32>
    %24 = vector.shape_cast %23 : vector<16xf32> to vector<16x1xf32>
    %25 = arith.addf %21, %24 : vector<16x1xf32>
    %c0_15 = arith.constant 0 : index
    %c0_16 = arith.constant 0 : index
    %26 = vector.load %arg8[%c0_15, %c0_16] : memref<16x1xf32, #tpu.memory_space<vmem>>, vector<16x1xf32>
    tpu.vector_store %arg8[%c0_15, %c0_16], %25 {strides = array<i32>} : memref<16x1xf32, #tpu.memory_space<vmem>>, vector<16x1xf32>,
    %c0_17 = arith.constant 0 : index
    %c0_18 = arith.constant 0 : index
    %27 = vector.load %arg9[%c0_17, %c0_18] : memref<16x16xf32, #tpu.memory_space<vmem>>, vector<16x16xf32>
    %28 = vector.broadcast %15 : vector<16x1xf32> to vector<16x16xf32>
    %29 = arith.mulf %28, %27 : vector<16x16xf32>
    %cst_19 = arith.constant dense<0.000000e+00> : vector<16x16xf32>
    %30 = tpu.matmul %19, %8, %cst_19 {dimension_numbers = #tpu.dot_dimension_numbers<[1], [0], [0], [1], [0, 0, 1, 1], [], []>} : vector<16x16xbf16>, vector<16x16xbf16>, vector<16x16xf32> -> vector<16x16xf32>
    %31 = arith.addf %29, %30 : vector<16x16xf32>
    %c0_20 = arith.constant 0 : index
    %c0_21 = arith.constant 0 : index
    %32 = vector.load %arg9[%c0_20, %c0_21] : memref<16x16xf32, #tpu.memory_space<vmem>>, vector<16x16xf32>
    tpu.vector_store %arg9[%c0_20, %c0_21], %31 {strides = array<i32>} : memref<16x16xf32, #tpu.memory_space<vmem>>, vector<16x16xf32>,
    %c0_22 = arith.constant 0 : index
    %c0_23 = arith.constant 0 : index
    %33 = vector.load %arg7[%c0_22, %c0_23] : memref<16x1xf32, #tpu.memory_space<vmem>>, vector<16x1xf32>
    tpu.vector_store %arg7[%c0_22, %c0_23], %13 {strides = array<i32>} : memref<16x1xf32, #tpu.memory_space<vmem>>, vector<16x1xf32>,
    %c0_i32_24 = arith.constant 0 : i32
    %34 = arith.cmpi eq, %arg2, %c0_i32_24 : i32
    %35 = arith.extui %34 : i1 to i32
    %c0_i32_25 = arith.constant 0 : i32
    %36 = arith.cmpi ne, %35, %c0_i32_25 : i32
    scf.if %36 {
      %c0_26 = arith.constant 0 : index
      %c0_27 = arith.constant 0 : index
      %37 = vector.load %arg8[%c0_26, %c0_27] : memref<16x1xf32, #tpu.memory_space<vmem>>, vector<16x1xf32>
      %38 = tpu.reciprocal %37 {approx = true} : vector<16x1xf32> -> vector<16x1xf32>
      %c0_28 = arith.constant 0 : index
      %c0_29 = arith.constant 0 : index
      %39 = vector.load %arg9[%c0_28, %c0_29] : memref<16x16xf32, #tpu.memory_space<vmem>>, vector<16x16xf32>
      %40 = vector.broadcast %38 : vector<16x1xf32> to vector<16x16xf32>
      %41 = arith.mulf %39, %40 : vector<16x16xf32>
      %42 = arith.truncf %41 : vector<16x16xf32> to vector<16x16xbf16>
      %c0_30 = arith.constant 0 : index
      %c0_31 = arith.constant 0 : index
      %c0_32 = arith.constant 0 : index
      %43 = vector.load %arg6[%c0_30, %c0_31, %c0_32] : memref<1x16x16xbf16, #tpu.memory_space<vmem>>, vector<1x16x16xbf16>
      %44 = vector.shape_cast %43 : vector<1x16x16xbf16> to vector<16x16xbf16>
      %45 = vector.shape_cast %42 : vector<16x16xbf16> to vector<1x16x16xbf16>
      tpu.vector_store %arg6[%c0_30, %c0_31, %c0_32], %45 {strides = array<i32>} : memref<1x16x16xbf16, #tpu.memory_space<vmem>>, vector<1x16x16xbf16>,
    } else {
    }
    return
  }
  func.func @transform_0(%arg0: i32, %arg1: i32, %arg2: i32) -> (i32, i32, i32) {
    %c0_i32 = arith.constant 0 : i32
    %c0_i32_0 = arith.constant 0 : i32
    return %arg0, %arg1, %c0_i32 : i32, i32, i32
  }
  func.func @transform_1(%arg0: i32, %arg1: i32, %arg2: i32) -> (i32, i32, i32) {
    %c0_i32 = arith.constant 0 : i32
    %c0_i32_0 = arith.constant 0 : i32
    return %arg0, %arg2, %c0_i32 : i32, i32, i32
  }
  func.func @transform_2(%arg0: i32, %arg1: i32, %arg2: i32) -> (i32, i32, i32) {
    %c0_i32 = arith.constant 0 : i32
    %c0_i32_0 = arith.constant 0 : i32
    return %arg0, %arg2, %c0_i32 : i32, i32, i32
  }
  func.func @transform_3(%arg0: i32, %arg1: i32, %arg2: i32) -> (i32, i32, i32) {
    %c0_i32 = arith.constant 0 : i32
    %c0_i32_0 = arith.constant 0 : i32
    return %arg0, %arg1, %c0_i32 : i32, i32, i32
  }
}

module attributes {stable_mosaic.version = 11 : i64} {
  func.func @_layernorm_kernel(%arg0: i32, %arg1: memref<16x32xbf16, #tpu.memory_space<vmem>>, %arg2: memref<1x32xf32, #tpu.memory_space<vmem>>, %arg3: memref<1x32xf32, #tpu.memory_space<vmem>>, %arg4: memref<16x32xbf16, #tpu.memory_space<vmem>>) attributes {dimension_semantics = [#tpu.dimension_semantics<parallel>], iteration_bounds = array<i64: 1>, scalar_prefetch = 0 : i64, scratch_operands = 0 : i64, tpu.core_type = #tpu.core_type<tc>, window_params = [{transform_indices = @transform_0, window_bounds = array<i64: 16, 32>}, {pipeline_mode = #tpu.pipeline_mode<synchronous>, transform_indices = @transform_1, window_bounds = array<i64: 1, 32>}, {pipeline_mode = #tpu.pipeline_mode<synchronous>, transform_indices = @transform_2, window_bounds = array<i64: 1, 32>}, {transform_indices = @transform_3, window_bounds = array<i64: 16, 32>}]} {
    %c0 = arith.constant 0 : index
    %c0_0 = arith.constant 0 : index
    %0 = vector.load %arg1[%c0, %c0_0] : memref<16x32xbf16, #tpu.memory_space<vmem>>, vector<16x32xbf16>
    %1 = arith.extf %0 : vector<16x32xbf16> to vector<16x32xf32>
    %cst = arith.constant dense<0.000000e+00> : vector<16xf32>
    %2 = vector.multi_reduction <add>, %1, %cst [1] : vector<16x32xf32> to vector<16xf32>
    %3 = vector.shape_cast %2 : vector<16xf32> to vector<16x1xf32>
    %cst_1 = arith.constant 3.200000e+01 : f32
    %4 = vector.broadcast %cst_1 : f32 to vector<16x1xf32>
    %5 = arith.divf %3, %4 : vector<16x1xf32>
    %6 = arith.mulf %1, %1 : vector<16x32xf32>
    %cst_2 = arith.constant dense<0.000000e+00> : vector<16xf32>
    %7 = vector.multi_reduction <add>, %6, %cst_2 [1] : vector<16x32xf32> to vector<16xf32>
    %8 = vector.shape_cast %7 : vector<16xf32> to vector<16x1xf32>
    %cst_3 = arith.constant 3.200000e+01 : f32
    %9 = vector.broadcast %cst_3 : f32 to vector<16x1xf32>
    %10 = arith.divf %8, %9 : vector<16x1xf32>
    %11 = arith.mulf %5, %5 : vector<16x1xf32>
    %12 = arith.subf %10, %11 : vector<16x1xf32>
    %13 = vector.broadcast %5 : vector<16x1xf32> to vector<16x32xf32>
    %14 = arith.subf %1, %13 : vector<16x32xf32>
    %cst_4 = arith.constant 9.99999974E-6 : f32
    %15 = vector.broadcast %cst_4 : f32 to vector<16x1xf32>
    %16 = arith.addf %12, %15 : vector<16x1xf32>
    %17 = math.rsqrt %16 : vector<16x1xf32>
    %18 = vector.broadcast %17 : vector<16x1xf32> to vector<16x32xf32>
    %19 = arith.mulf %14, %18 : vector<16x32xf32>
    %c0_5 = arith.constant 0 : index
    %c0_6 = arith.constant 0 : index
    %20 = vector.load %arg2[%c0_5, %c0_6] : memref<1x32xf32, #tpu.memory_space<vmem>>, vector<1x32xf32>
    %21 = vector.broadcast %20 : vector<1x32xf32> to vector<16x32xf32>
    %22 = arith.mulf %19, %21 : vector<16x32xf32>
    %c0_7 = arith.constant 0 : index
    %c0_8 = arith.constant 0 : index
    %23 = vector.load %arg3[%c0_7, %c0_8] : memref<1x32xf32, #tpu.memory_space<vmem>>, vector<1x32xf32>
    %24 = vector.broadcast %23 : vector<1x32xf32> to vector<16x32xf32>
    %25 = arith.addf %22, %24 : vector<16x32xf32>
    %26 = arith.truncf %25 : vector<16x32xf32> to vector<16x32xbf16>
    %c0_9 = arith.constant 0 : index
    %c0_10 = arith.constant 0 : index
    %27 = vector.load %arg4[%c0_9, %c0_10] : memref<16x32xbf16, #tpu.memory_space<vmem>>, vector<16x32xbf16>
    tpu.vector_store %arg4[%c0_9, %c0_10], %26 {strides = array<i32>} : memref<16x32xbf16, #tpu.memory_space<vmem>>, vector<16x32xbf16>,
    return
  }
  func.func @transform_0(%arg0: i32) -> (i32, i32) {
    %c0_i32 = arith.constant 0 : i32
    %c0_i32_0 = arith.constant 0 : i32
    return %arg0, %c0_i32 : i32, i32
  }
  func.func @transform_1(%arg0: i32) -> (i32, i32) {
    %c0_i32 = arith.constant 0 : i32
    %c0_i32_0 = arith.constant 0 : i32
    %c0_i32_1 = arith.constant 0 : i32
    return %c0_i32, %c0_i32_0 : i32, i32
  }
  func.func @transform_2(%arg0: i32) -> (i32, i32) {
    %c0_i32 = arith.constant 0 : i32
    %c0_i32_0 = arith.constant 0 : i32
    %c0_i32_1 = arith.constant 0 : i32
    return %c0_i32, %c0_i32_0 : i32, i32
  }
  func.func @transform_3(%arg0: i32) -> (i32, i32) {
    %c0_i32 = arith.constant 0 : i32
    %c0_i32_0 = arith.constant 0 : i32
    return %arg0, %c0_i32 : i32, i32
  }
}

module attributes {stable_mosaic.version = 11 : i64} {
  func.func @_matmul_bias_kernel(%arg0: i32, %arg1: i32, %arg2: i32, %arg3: memref<16x128xbf16, #tpu.memory_space<vmem>>, %arg4: memref<128x128xbf16, #tpu.memory_space<vmem>>, %arg5: memref<1x128xf32, #tpu.memory_space<vmem>>, %arg6: memref<16x128xbf16, #tpu.memory_space<vmem>>, %arg7: memref<16x128xf32, #tpu.memory_space<vmem>>) attributes {dimension_semantics = [#tpu.dimension_semantics<parallel>, #tpu.dimension_semantics<parallel>, #tpu.dimension_semantics<arbitrary>], iteration_bounds = array<i64: 1, 1, 1>, scalar_prefetch = 0 : i64, scratch_operands = 1 : i64, tpu.core_type = #tpu.core_type<tc>, window_params = [{transform_indices = @transform_0, window_bounds = array<i64: 16, 128>}, {transform_indices = @transform_1, window_bounds = array<i64: 128, 128>}, {transform_indices = @transform_2, window_bounds = array<i64: 1, 128>}, {transform_indices = @transform_3, window_bounds = array<i64: 16, 128>}]} {
    %c0_i32 = arith.constant 0 : i32
    %0 = arith.cmpi eq, %arg2, %c0_i32 : i32
    %1 = arith.extui %0 : i1 to i32
    %c0_i32_0 = arith.constant 0 : i32
    %2 = arith.cmpi ne, %1, %c0_i32_0 : i32
    scf.if %2 {
      %cst_10 = arith.constant 0.000000e+00 : f32
      %12 = vector.broadcast %cst_10 : f32 to vector<16x128xf32>
      %c0_11 = arith.constant 0 : index
      %c0_12 = arith.constant 0 : index
      %13 = vector.load %arg7[%c0_11, %c0_12] : memref<16x128xf32, #tpu.memory_space<vmem>>, vector<16x128xf32>
      tpu.vector_store %arg7[%c0_11, %c0_12], %12 {strides = array<i32>} : memref<16x128xf32, #tpu.memory_space<vmem>>, vector<16x128xf32>,
    } else {
    }
    %c0 = arith.constant 0 : index
    %c0_1 = arith.constant 0 : index
    %3 = vector.load %arg7[%c0, %c0_1] : memref<16x128xf32, #tpu.memory_space<vmem>>, vector<16x128xf32>
    %c0_2 = arith.constant 0 : index
    %c0_3 = arith.constant 0 : index
    %4 = vector.load %arg3[%c0_2, %c0_3] : memref<16x128xbf16, #tpu.memory_space<vmem>>, vector<16x128xbf16>
    %c0_4 = arith.constant 0 : index
    %c0_5 = arith.constant 0 : index
    %5 = vector.load %arg4[%c0_4, %c0_5] : memref<128x128xbf16, #tpu.memory_space<vmem>>, vector<128x128xbf16>
    %cst = arith.constant dense<0.000000e+00> : vector<16x128xf32>
    %6 = tpu.matmul %4, %5, %cst {dimension_numbers = #tpu.dot_dimension_numbers<[1], [0], [0], [1], [0, 0, 1, 1], [], []>} : vector<16x128xbf16>, vector<128x128xbf16>, vector<16x128xf32> -> vector<16x128xf32>
    %7 = arith.addf %3, %6 : vector<16x128xf32>
    %c0_6 = arith.constant 0 : index
    %c0_7 = arith.constant 0 : index
    %8 = vector.load %arg7[%c0_6, %c0_7] : memref<16x128xf32, #tpu.memory_space<vmem>>, vector<16x128xf32>
    tpu.vector_store %arg7[%c0_6, %c0_7], %7 {strides = array<i32>} : memref<16x128xf32, #tpu.memory_space<vmem>>, vector<16x128xf32>,
    %c0_i32_8 = arith.constant 0 : i32
    %9 = arith.cmpi eq, %arg2, %c0_i32_8 : i32
    %10 = arith.extui %9 : i1 to i32
    %c0_i32_9 = arith.constant 0 : i32
    %11 = arith.cmpi ne, %10, %c0_i32_9 : i32
    scf.if %11 {
      %c0_10 = arith.constant 0 : index
      %c0_11 = arith.constant 0 : index
      %12 = vector.load %arg7[%c0_10, %c0_11] : memref<16x128xf32, #tpu.memory_space<vmem>>, vector<16x128xf32>
      %c0_12 = arith.constant 0 : index
      %c0_13 = arith.constant 0 : index
      %13 = vector.load %arg5[%c0_12, %c0_13] : memref<1x128xf32, #tpu.memory_space<vmem>>, vector<1x128xf32>
      %14 = vector.broadcast %13 : vector<1x128xf32> to vector<16x128xf32>
      %15 = arith.addf %12, %14 : vector<16x128xf32>
      %16 = arith.truncf %15 : vector<16x128xf32> to vector<16x128xbf16>
      %c0_14 = arith.constant 0 : index
      %c0_15 = arith.constant 0 : index
      %17 = vector.load %arg6[%c0_14, %c0_15] : memref<16x128xbf16, #tpu.memory_space<vmem>>, vector<16x128xbf16>
      tpu.vector_store %arg6[%c0_14, %c0_15], %16 {strides = array<i32>} : memref<16x128xbf16, #tpu.memory_space<vmem>>, vector<16x128xbf16>,
    } else {
    }
    return
  }
  func.func @transform_0(%arg0: i32, %arg1: i32, %arg2: i32) -> (i32, i32) {
    %c0_i32 = arith.constant 0 : i32
    return %arg0, %arg2 : i32, i32
  }
  func.func @transform_1(%arg0: i32, %arg1: i32, %arg2: i32) -> (i32, i32) {
    %c0_i32 = arith.constant 0 : i32
    return %arg2, %arg1 : i32, i32
  }
  func.func @transform_2(%arg0: i32, %arg1: i32, %arg2: i32) -> (i32, i32) {
    %c0_i32 = arith.constant 0 : i32
    %c0_i32_0 = arith.constant 0 : i32
    return %c0_i32, %arg1 : i32, i32
  }
  func.func @transform_3(%arg0: i32, %arg1: i32, %arg2: i32) -> (i32, i32) {
    %c0_i32 = arith.constant 0 : i32
    return %arg0, %arg1 : i32, i32
  }
}

module attributes {stable_mosaic.version = 11 : i64} {
  func.func @_flash_kernel(%arg0: i32, %arg1: i32, %arg2: i32, %arg3: memref<1x8x16xbf16, #tpu.memory_space<vmem>>, %arg4: memref<1x8x16xbf16, #tpu.memory_space<vmem>>, %arg5: memref<1x8x16xbf16, #tpu.memory_space<vmem>>, %arg6: memref<1x8x16xbf16, #tpu.memory_space<vmem>>, %arg7: memref<8x1xf32, #tpu.memory_space<vmem>>, %arg8: memref<8x1xf32, #tpu.memory_space<vmem>>, %arg9: memref<8x16xf32, #tpu.memory_space<vmem>>) attributes {dimension_semantics = [#tpu.dimension_semantics<parallel>, #tpu.dimension_semantics<parallel>, #tpu.dimension_semantics<arbitrary>], iteration_bounds = array<i64: 4, 1, 1>, scalar_prefetch = 0 : i64, scratch_operands = 3 : i64, tpu.core_type = #tpu.core_type<tc>, window_params = [{transform_indices = @transform_0, window_bounds = array<i64: 1, 8, 16>}, {transform_indices = @transform_1, window_bounds = array<i64: 1, 8, 16>}, {transform_indices = @transform_2, window_bounds = array<i64: 1, 8, 16>}, {transform_indices = @transform_3, window_bounds = array<i64: 1, 8, 16>}]} {
    %c0_i32 = arith.constant 0 : i32
    %0 = arith.cmpi eq, %arg2, %c0_i32 : i32
    %1 = arith.extui %0 : i1 to i32
    %c0_i32_0 = arith.constant 0 : i32
    %2 = arith.cmpi ne, %1, %c0_i32_0 : i32
    scf.if %2 {
      %cst = arith.constant -2.38197633E+38 : f32
      %12 = vector.broadcast %cst : f32 to vector<8x1xf32>
      %c0 = arith.constant 0 : index
      %c0_5 = arith.constant 0 : index
      %13 = vector.load %arg7[%c0, %c0_5] : memref<8x1xf32, #tpu.memory_space<vmem>>, vector<8x1xf32>
      tpu.vector_store %arg7[%c0, %c0_5], %12 {strides = array<i32>} : memref<8x1xf32, #tpu.memory_space<vmem>>, vector<8x1xf32>,
      %cst_6 = arith.constant 0.000000e+00 : f32
      %14 = vector.broadcast %cst_6 : f32 to vector<8x1xf32>
      %c0_7 = arith.constant 0 : index
      %c0_8 = arith.constant 0 : index
      %15 = vector.load %arg8[%c0_7, %c0_8] : memref<8x1xf32, #tpu.memory_space<vmem>>, vector<8x1xf32>
      tpu.vector_store %arg8[%c0_7, %c0_8], %14 {strides = array<i32>} : memref<8x1xf32, #tpu.memory_space<vmem>>, vector<8x1xf32>,
      %cst_9 = arith.constant 0.000000e+00 : f32
      %16 = vector.broadcast %cst_9 : f32 to vector<8x16xf32>
      %c0_10 = arith.constant 0 : index
      %c0_11 = arith.constant 0 : index
      %17 = vector.load %arg9[%c0_10, %c0_11] : memref<8x16xf32, #tpu.memory_space<vmem>>, vector<8x16xf32>
      tpu.vector_store %arg9[%c0_10, %c0_11], %16 {strides = array<i32>} : memref<8x16xf32, #tpu.memory_space<vmem>>, vector<8x16xf32>,
    } else {
    }
    %c8_i32 = arith.constant 8 : i32
    %3 = arith.muli %arg2, %c8_i32 : i32
    %c8_i32_1 = arith.constant 8 : i32
    %4 = arith.muli %arg1, %c8_i32_1 : i32
    %c7_i32 = arith.constant 7 : i32
    %5 = arith.addi %4, %c7_i32 : i32
    %6 = arith.cmpi sle, %3, %5 : i32
    %7 = arith.extui %6 : i1 to i32
    %c0_i32_2 = arith.constant 0 : i32
    %8 = arith.cmpi ne, %7, %c0_i32_2 : i32
    scf.if %8 {
      %c0 = arith.constant 0 : index
      %c0_5 = arith.constant 0 : index
      %c0_6 = arith.constant 0 : index
      %12 = vector.load %arg3[%c0, %c0_5, %c0_6] : memref<1x8x16xbf16, #tpu.memory_space<vmem>>, vector<1x8x16xbf16>
      %13 = vector.shape_cast %12 : vector<1x8x16xbf16> to vector<8x16xbf16>
      %c0_7 = arith.constant 0 : index
      %c0_8 = arith.constant 0 : index
      %c0_9 = arith.constant 0 : index
      %14 = vector.load %arg4[%c0_7, %c0_8, %c0_9] : memref<1x8x16xbf16, #tpu.memory_space<vmem>>, vector<1x8x16xbf16>
      %15 = vector.shape_cast %14 : vector<1x8x16xbf16> to vector<8x16xbf16>
      %c0_10 = arith.constant 0 : index
      %c0_11 = arith.constant 0 : index
      %c0_12 = arith.constant 0 : index
      %16 = vector.load %arg5[%c0_10, %c0_11, %c0_12] : memref<1x8x16xbf16, #tpu.memory_space<vmem>>, vector<1x8x16xbf16>
      %17 = vector.shape_cast %16 : vector<1x8x16xbf16> to vector<8x16xbf16>
      %cst = arith.constant dense<0.000000e+00> : vector<8x8xf32>
      %18 = tpu.matmul %13, %15, %cst {dimension_numbers = #tpu.dot_dimension_numbers<[1], [1], [0], [0], [0, 0, 1, 0], [], []>} : vector<8x16xbf16>, vector<8x16xbf16>, vector<8x8xf32> -> vector<8x8xf32>
      %c8_i32_13 = arith.constant 8 : i32
      %19 = arith.muli %arg2, %c8_i32_13 : i32
      %20 = tpu.iota {dimensions = array<i32: 1>} : vector<8x8xi32>
      %21 = vector.broadcast %19 : i32 to vector<8x8xi32>
      %22 = arith.addi %21, %20 : vector<8x8xi32>
      %c8_i32_14 = arith.constant 8 : i32
      %23 = arith.muli %arg1, %c8_i32_14 : i32
      %24 = tpu.iota {dimensions = array<i32: 0>} : vector<8x8xi32>
      %25 = vector.broadcast %23 : i32 to vector<8x8xi32>
      %26 = arith.addi %25, %24 : vector<8x8xi32>
      %27 = arith.cmpi sle, %22, %26 : vector<8x8xi32>
      %cst_15 = arith.constant -2.38197633E+38 : f32
      %28 = vector.broadcast %cst_15 : f32 to vector<8x8xf32>
      %29 = arith.select %27, %18, %28 : vector<8x8xi1>, vector<8x8xf32>
      %c0_16 = arith.constant 0 : index
      %c0_17 = arith.constant 0 : index
      %30 = vector.load %arg7[%c0_16, %c0_17] : memref<8x1xf32, #tpu.memory_space<vmem>>, vector<8x1xf32>
      %cst_18 = arith.constant dense<0xFF800000> : vector<8xf32>
      %31 = vector.multi_reduction <maximumf>, %29, %cst_18 [1] : vector<8x8xf32> to vector<8xf32>
      %32 = vector.shape_cast %31 : vector<8xf32> to vector<8x1xf32>
      %33 = arith.maximumf %30, %32 : vector<8x1xf32>
      %34 = arith.subf %30, %33 : vector<8x1xf32>
      %35 = math.exp %34 : vector<8x1xf32>
      %36 = vector.broadcast %33 : vector<8x1xf32> to vector<8x8xf32>
      %37 = arith.subf %29, %36 : vector<8x8xf32>
      %38 = arith.truncf %37 : vector<8x8xf32> to vector<8x8xbf16>
      %39 = math.exp %38 : vector<8x8xbf16>
      %c0_19 = arith.constant 0 : index
      %c0_20 = arith.constant 0 : index
      %40 = vector.load %arg8[%c0_19, %c0_20] : memref<8x1xf32, #tpu.memory_space<vmem>>, vector<8x1xf32>
      %41 = arith.mulf %35, %40 : vector<8x1xf32>
      %42 = arith.extf %39 : vector<8x8xbf16> to vector<8x8xf32>
      %cst_21 = arith.constant dense<0.000000e+00> : vector<8xf32>
      %43 = vector.multi_reduction <add>, %42, %cst_21 [1] : vector<8x8xf32> to vector<8xf32>
      %44 = vector.shape_cast %43 : vector<8xf32> to vector<8x1xf32>
      %45 = arith.addf %41, %44 : vector<8x1xf32>
      %c0_22 = arith.constant 0 : index
      %c0_23 = arith.constant 0 : index
      %46 = vector.load %arg8[%c0_22, %c0_23] : memref<8x1xf32, #tpu.memory_space<vmem>>, vector<8x1xf32>
      tpu.vector_store %arg8[%c0_22, %c0_23], %45 {strides = array<i32>} : memref<8x1xf32, #tpu.memory_space<vmem>>, vector<8x1xf32>,
      %c0_24 = arith.constant 0 : index
      %c0_25 = arith.constant 0 : index
      %47 = vector.load %arg9[%c0_24, %c0_25] : memref<8x16xf32, #tpu.memory_space<vmem>>, vector<8x16xf32>
      %48 = vector.broadcast %35 : vector<8x1xf32> to vector<8x16xf32>
      %49 = arith.mulf %48, %47 : vector<8x16xf32>
      %cst_26 = arith.constant dense<0.000000e+00> : vector<8x16xf32>
      %50 = tpu.matmul %39, %17, %cst_26 {dimension_numbers = #tpu.dot_dimension_numbers<[1], [0], [0], [1], [0, 0, 1, 1], [], []>} : vector<8x8xbf16>, vector<8x16xbf16>, vector<8x16xf32> -> vector<8x16xf32>
      %51 = arith.addf %49, %50 : vector<8x16xf32>
      %c0_27 = arith.constant 0 : index
      %c0_28 = arith.constant 0 : index
      %52 = vector.load %arg9[%c0_27, %c0_28] : memref<8x16xf32, #tpu.memory_space<vmem>>, vector<8x16xf32>
      tpu.vector_store %arg9[%c0_27, %c0_28], %51 {strides = array<i32>} : memref<8x16xf32, #tpu.memory_space<vmem>>, vector<8x16xf32>,
      %c0_29 = arith.constant 0 : index
      %c0_30 = arith.constant 0 : index
      %53 = vector.load %arg7[%c0_29, %c0_30] : memref<8x1xf32, #tpu.memory_space<vmem>>, vector<8x1xf32>
      tpu.vector_store %arg7[%c0_29, %c0_30], %33 {strides = array<i32>} : memref<8x1xf32, #tpu.memory_space<vmem>>, vector<8x1xf32>,
    } else {
    }
    %c0_i32_3 = arith.constant 0 : i32
    %9 = arith.cmpi eq, %arg2, %c0_i32_3 : i32
    %10 = arith.extui %9 : i1 to i32
    %c0_i32_4 = arith.constant 0 : i32
    %11 = arith.cmpi ne, %10, %c0_i32_4 : i32
    scf.if %11 {
      %c0 = arith.constant 0 : index
      %c0_5 = arith.constant 0 : index
      %12 = vector.load %arg8[%c0, %c0_5] : memref<8x1xf32, #tpu.memory_space<vmem>>, vector<8x1xf32>
      %13 = tpu.reciprocal %12 {approx = true} : vector<8x1xf32> -> vector<8x1xf32>
      %c0_6 = arith.constant 0 : index
      %c0_7 = arith.constant 0 : index
      %14 = vector.load %arg9[%c0_6, %c0_7] : memref<8x16xf32, #tpu.memory_space<vmem>>, vector<8x16xf32>
      %15 = vector.broadcast %13 : vector<8x1xf32> to vector<8x16xf32>
      %16 = arith.mulf %14, %15 : vector<8x16xf32>
      %17 = arith.truncf %16 : vector<8x16xf32> to vector<8x16xbf16>
      %c0_8 = arith.constant 0 : index
      %c0_9 = arith.constant 0 : index
      %c0_10 = arith.constant 0 : index
      %18 = vector.load %arg6[%c0_8, %c0_9, %c0_10] : memref<1x8x16xbf16, #tpu.memory_space<vmem>>, vector<1x8x16xbf16>
      %19 = vector.shape_cast %18 : vector<1x8x16xbf16> to vector<8x16xbf16>
      %20 = vector.shape_cast %17 : vector<8x16xbf16> to vector<1x8x16xbf16>
      tpu.vector_store %arg6[%c0_8, %c0_9, %c0_10], %20 {strides = array<i32>} : memref<1x8x16xbf16, #tpu.memory_space<vmem>>, vector<1x8x16xbf16>,
    } else {
    }
    return
  }
  func.func @transform_0(%arg0: i32, %arg1: i32, %arg2: i32) -> (i32, i32, i32) {
    %c0_i32 = arith.constant 0 : i32
    %c0_i32_0 = arith.constant 0 : i32
    return %arg0, %arg1, %c0_i32 : i32, i32, i32
  }
  func.func @transform_1(%arg0: i32, %arg1: i32, %arg2: i32) -> (i32, i32, i32) {
    %c0_i32 = arith.constant 0 : i32
    %c0_i32_0 = arith.constant 0 : i32
    return %arg0, %arg2, %c0_i32 : i32, i32, i32
  }
  func.func @transform_2(%arg0: i32, %arg1: i32, %arg2: i32) -> (i32, i32, i32) {
    %c0_i32 = arith.constant 0 : i32
    %c0_i32_0 = arith.constant 0 : i32
    return %arg0, %arg2, %c0_i32 : i32, i32, i32
  }
  func.func @transform_3(%arg0: i32, %arg1: i32, %arg2: i32) -> (i32, i32, i32) {
    %c0_i32 = arith.constant 0 : i32
    %c0_i32_0 = arith.constant 0 : i32
    return %arg0, %arg1, %c0_i32 : i32, i32, i32
  }
}

module attributes {stable_mosaic.version = 11 : i64} {
  func.func @_flash_kernel(%arg0: i32, %arg1: i32, %arg2: i32, %arg3: memref<1x8x16xbf16, #tpu.memory_space<vmem>>, %arg4: memref<1x16x16xbf16, #tpu.memory_space<vmem>>, %arg5: memref<1x16x16xbf16, #tpu.memory_space<vmem>>, %arg6: memref<1x8x16xbf16, #tpu.memory_space<vmem>>, %arg7: memref<8x1xf32, #tpu.memory_space<vmem>>, %arg8: memref<8x1xf32, #tpu.memory_space<vmem>>, %arg9: memref<8x16xf32, #tpu.memory_space<vmem>>) attributes {dimension_semantics = [#tpu.dimension_semantics<parallel>, #tpu.dimension_semantics<parallel>, #tpu.dimension_semantics<arbitrary>], iteration_bounds = array<i64: 4, 1, 1>, scalar_prefetch = 0 : i64, scratch_operands = 3 : i64, tpu.core_type = #tpu.core_type<tc>, window_params = [{transform_indices = @transform_0, window_bounds = array<i64: 1, 8, 16>}, {transform_indices = @transform_1, window_bounds = array<i64: 1, 16, 16>}, {transform_indices = @transform_2, window_bounds = array<i64: 1, 16, 16>}, {transform_indices = @transform_3, window_bounds = array<i64: 1, 8, 16>}]} {
    %c0_i32 = arith.constant 0 : i32
    %0 = arith.cmpi eq, %arg2, %c0_i32 : i32
    %1 = arith.extui %0 : i1 to i32
    %c0_i32_0 = arith.constant 0 : i32
    %2 = arith.cmpi ne, %1, %c0_i32_0 : i32
    scf.if %2 {
      %cst_26 = arith.constant -2.38197633E+38 : f32
      %37 = vector.broadcast %cst_26 : f32 to vector<8x1xf32>
      %c0_27 = arith.constant 0 : index
      %c0_28 = arith.constant 0 : index
      %38 = vector.load %arg7[%c0_27, %c0_28] : memref<8x1xf32, #tpu.memory_space<vmem>>, vector<8x1xf32>
      tpu.vector_store %arg7[%c0_27, %c0_28], %37 {strides = array<i32>} : memref<8x1xf32, #tpu.memory_space<vmem>>, vector<8x1xf32>,
      %cst_29 = arith.constant 0.000000e+00 : f32
      %39 = vector.broadcast %cst_29 : f32 to vector<8x1xf32>
      %c0_30 = arith.constant 0 : index
      %c0_31 = arith.constant 0 : index
      %40 = vector.load %arg8[%c0_30, %c0_31] : memref<8x1xf32, #tpu.memory_space<vmem>>, vector<8x1xf32>
      tpu.vector_store %arg8[%c0_30, %c0_31], %39 {strides = array<i32>} : memref<8x1xf32, #tpu.memory_space<vmem>>, vector<8x1xf32>,
      %cst_32 = arith.constant 0.000000e+00 : f32
      %41 = vector.broadcast %cst_32 : f32 to vector<8x16xf32>
      %c0_33 = arith.constant 0 : index
      %c0_34 = arith.constant 0 : index
      %42 = vector.load %arg9[%c0_33, %c0_34] : memref<8x16xf32, #tpu.memory_space<vmem>>, vector<8x16xf32>
      tpu.vector_store %arg9[%c0_33, %c0_34], %41 {strides = array<i32>} : memref<8x16xf32, #tpu.memory_space<vmem>>, vector<8x16xf32>,
    } else {
    }
    %c0 = arith.constant 0 : index
    %c0_1 = arith.constant 0 : index
    %c0_2 = arith.constant 0 : index
    %3 = vector.load %arg3[%c0, %c0_1, %c0_2] : memref<1x8x16xbf16, #tpu.memory_space<vmem>>, vector<1x8x16xbf16>
    %4 = vector.shape_cast %3 : vector<1x8x16xbf16> to vector<8x16xbf16>
    %c0_3 = arith.constant 0 : index
    %c0_4 = arith.constant 0 : index
    %c0_5 = arith.constant 0 : index
    %5 = vector.load %arg4[%c0_3, %c0_4, %c0_5] : memref<1x16x16xbf16, #tpu.memory_space<vmem>>, vector<1x16x16xbf16>
    %6 = vector.shape_cast %5 : vector<1x16x16xbf16> to vector<16x16xbf16>
    %c0_6 = arith.constant 0 : index
    %c0_7 = arith.constant 0 : index
    %c0_8 = arith.constant 0 : index
    %7 = vector.load %arg5[%c0_6, %c0_7, %c0_8] : memref<1x16x16xbf16, #tpu.memory_space<vmem>>, vector<1x16x16xbf16>
    %8 = vector.shape_cast %7 : vector<1x16x16xbf16> to vector<16x16xbf16>
    %cst = arith.constant dense<0.000000e+00> : vector<8x16xf32>
    %9 = tpu.matmul %4, %6, %cst {dimension_numbers = #tpu.dot_dimension_numbers<[1], [1], [0], [0], [0, 0, 1, 0], [], []>} : vector<8x16xbf16>, vector<16x16xbf16>, vector<8x16xf32> -> vector<8x16xf32>
    %c0_9 = arith.constant 0 : index
    %c0_10 = arith.constant 0 : index
    %10 = vector.load %arg7[%c0_9, %c0_10] : memref<8x1xf32, #tpu.memory_space<vmem>>, vector<8x1xf32>
    %cst_11 = arith.constant dense<0xFF800000> : vector<8xf32>
    %11 = vector.multi_reduction <maximumf>, %9, %cst_11 [1] : vector<8x16xf32> to vector<8xf32>
    %12 = vector.shape_cast %11 : vector<8xf32> to vector<8x1xf32>
    %13 = arith.maximumf %10, %12 : vector<8x1xf32>
    %14 = arith.subf %10, %13 : vector<8x1xf32>
    %15 = math.exp %14 : vector<8x1xf32>
    %16 = vector.broadcast %13 : vector<8x1xf32> to vector<8x16xf32>
    %17 = arith.subf %9, %16 : vector<8x16xf32>
    %18 = arith.truncf %17 : vector<8x16xf32> to vector<8x16xbf16>
    %19 = math.exp %18 : vector<8x16xbf16>
    %c0_12 = arith.constant 0 : index
    %c0_13 = arith.constant 0 : index
    %20 = vector.load %arg8[%c0_12, %c0_13] : memref<8x1xf32, #tpu.memory_space<vmem>>, vector<8x1xf32>
    %21 = arith.mulf %15, %20 : vector<8x1xf32>
    %22 = arith.extf %19 : vector<8x16xbf16> to vector<8x16xf32>
    %cst_14 = arith.constant dense<0.000000e+00> : vector<8xf32>
    %23 = vector.multi_reduction <add>, %22, %cst_14 [1] : vector<8x16xf32> to vector<8xf32>
    %24 = vector.shape_cast %23 : vector<8xf32> to vector<8x1xf32>
    %25 = arith.addf %21, %24 : vector<8x1xf32>
    %c0_15 = arith.constant 0 : index
    %c0_16 = arith.constant 0 : index
    %26 = vector.load %arg8[%c0_15, %c0_16] : memref<8x1xf32, #tpu.memory_space<vmem>>, vector<8x1xf32>
    tpu.vector_store %arg8[%c0_15, %c0_16], %25 {strides = array<i32>} : memref<8x1xf32, #tpu.memory_space<vmem>>, vector<8x1xf32>,
    %c0_17 = arith.constant 0 : index
    %c0_18 = arith.constant 0 : index
    %27 = vector.load %arg9[%c0_17, %c0_18] : memref<8x16xf32, #tpu.memory_space<vmem>>, vector<8x16xf32>
    %28 = vector.broadcast %15 : vector<8x1xf32> to vector<8x16xf32>
    %29 = arith.mulf %28, %27 : vector<8x16xf32>
    %cst_19 = arith.constant dense<0.000000e+00> : vector<8x16xf32>
    %30 = tpu.matmul %19, %8, %cst_19 {dimension_numbers = #tpu.dot_dimension_numbers<[1], [0], [0], [1], [0, 0, 1, 1], [], []>} : vector<8x16xbf16>, vector<16x16xbf16>, vector<8x16xf32> -> vector<8x16xf32>
    %31 = arith.addf %29, %30 : vector<8x16xf32>
    %c0_20 = arith.constant 0 : index
    %c0_21 = arith.constant 0 : index
    %32 = vector.load %arg9[%c0_20, %c0_21] : memref<8x16xf32, #tpu.memory_space<vmem>>, vector<8x16xf32>
    tpu.vector_store %arg9[%c0_20, %c0_21], %31 {strides = array<i32>} : memref<8x16xf32, #tpu.memory_space<vmem>>, vector<8x16xf32>,
    %c0_22 = arith.constant 0 : index
    %c0_23 = arith.constant 0 : index
    %33 = vector.load %arg7[%c0_22, %c0_23] : memref<8x1xf32, #tpu.memory_space<vmem>>, vector<8x1xf32>
    tpu.vector_store %arg7[%c0_22, %c0_23], %13 {strides = array<i32>} : memref<8x1xf32, #tpu.memory_space<vmem>>, vector<8x1xf32>,
    %c0_i32_24 = arith.constant 0 : i32
    %34 = arith.cmpi eq, %arg2, %c0_i32_24 : i32
    %35 = arith.extui %34 : i1 to i32
    %c0_i32_25 = arith.constant 0 : i32
    %36 = arith.cmpi ne, %35, %c0_i32_25 : i32
    scf.if %36 {
      %c0_26 = arith.constant 0 : index
      %c0_27 = arith.constant 0 : index
      %37 = vector.load %arg8[%c0_26, %c0_27] : memref<8x1xf32, #tpu.memory_space<vmem>>, vector<8x1xf32>
      %38 = tpu.reciprocal %37 {approx = true} : vector<8x1xf32> -> vector<8x1xf32>
      %c0_28 = arith.constant 0 : index
      %c0_29 = arith.constant 0 : index
      %39 = vector.load %arg9[%c0_28, %c0_29] : memref<8x16xf32, #tpu.memory_space<vmem>>, vector<8x16xf32>
      %40 = vector.broadcast %38 : vector<8x1xf32> to vector<8x16xf32>
      %41 = arith.mulf %39, %40 : vector<8x16xf32>
      %42 = arith.truncf %41 : vector<8x16xf32> to vector<8x16xbf16>
      %c0_30 = arith.constant 0 : index
      %c0_31 = arith.constant 0 : index
      %c0_32 = arith.constant 0 : index
      %43 = vector.load %arg6[%c0_30, %c0_31, %c0_32] : memref<1x8x16xbf16, #tpu.memory_space<vmem>>, vector<1x8x16xbf16>
      %44 = vector.shape_cast %43 : vector<1x8x16xbf16> to vector<8x16xbf16>
      %45 = vector.shape_cast %42 : vector<8x16xbf16> to vector<1x8x16xbf16>
      tpu.vector_store %arg6[%c0_30, %c0_31, %c0_32], %45 {strides = array<i32>} : memref<1x8x16xbf16, #tpu.memory_space<vmem>>, vector<1x8x16xbf16>,
    } else {
    }
    return
  }
  func.func @transform_0(%arg0: i32, %arg1: i32, %arg2: i32) -> (i32, i32, i32) {
    %c0_i32 = arith.constant 0 : i32
    %c0_i32_0 = arith.constant 0 : i32
    return %arg0, %arg1, %c0_i32 : i32, i32, i32
  }
  func.func @transform_1(%arg0: i32, %arg1: i32, %arg2: i32) -> (i32, i32, i32) {
    %c0_i32 = arith.constant 0 : i32
    %c0_i32_0 = arith.constant 0 : i32
    return %arg0, %arg2, %c0_i32 : i32, i32, i32
  }
  func.func @transform_2(%arg0: i32, %arg1: i32, %arg2: i32) -> (i32, i32, i32) {
    %c0_i32 = arith.constant 0 : i32
    %c0_i32_0 = arith.constant 0 : i32
    return %arg0, %arg2, %c0_i32 : i32, i32, i32
  }
  func.func @transform_3(%arg0: i32, %arg1: i32, %arg2: i32) -> (i32, i32, i32) {
    %c0_i32 = arith.constant 0 : i32
    %c0_i32_0 = arith.constant 0 : i32
    return %arg0, %arg1, %c0_i32 : i32, i32, i32
  }
}

module attributes {stable_mosaic.version = 11 : i64} {
  func.func @_matmul_bias_kernel(%arg0: i32, %arg1: i32, %arg2: i32, %arg3: memref<16x128xbf16, #tpu.memory_space<vmem>>, %arg4: memref<128x128xbf16, #tpu.memory_space<vmem>>, %arg5: memref<1x128xf32, #tpu.memory_space<vmem>>, %arg6: memref<16x128xbf16, #tpu.memory_space<vmem>>, %arg7: memref<16x128xf32, #tpu.memory_space<vmem>>) attributes {dimension_semantics = [#tpu.dimension_semantics<parallel>, #tpu.dimension_semantics<parallel>, #tpu.dimension_semantics<arbitrary>], iteration_bounds = array<i64: 1, 1, 1>, scalar_prefetch = 0 : i64, scratch_operands = 1 : i64, tpu.core_type = #tpu.core_type<tc>, window_params = [{transform_indices = @transform_0, window_bounds = array<i64: 16, 128>}, {transform_indices = @transform_1, window_bounds = array<i64: 128, 128>}, {transform_indices = @transform_2, window_bounds = array<i64: 1, 128>}, {transform_indices = @transform_3, window_bounds = array<i64: 16, 128>}]} {
    %c0_i32 = arith.constant 0 : i32
    %0 = arith.cmpi eq, %arg2, %c0_i32 : i32
    %1 = arith.extui %0 : i1 to i32
    %c0_i32_0 = arith.constant 0 : i32
    %2 = arith.cmpi ne, %1, %c0_i32_0 : i32
    scf.if %2 {
      %cst_10 = arith.constant 0.000000e+00 : f32
      %12 = vector.broadcast %cst_10 : f32 to vector<16x128xf32>
      %c0_11 = arith.constant 0 : index
      %c0_12 = arith.constant 0 : index
      %13 = vector.load %arg7[%c0_11, %c0_12] : memref<16x128xf32, #tpu.memory_space<vmem>>, vector<16x128xf32>
      tpu.vector_store %arg7[%c0_11, %c0_12], %12 {strides = array<i32>} : memref<16x128xf32, #tpu.memory_space<vmem>>, vector<16x128xf32>,
    } else {
    }
    %c0 = arith.constant 0 : index
    %c0_1 = arith.constant 0 : index
    %3 = vector.load %arg7[%c0, %c0_1] : memref<16x128xf32, #tpu.memory_space<vmem>>, vector<16x128xf32>
    %c0_2 = arith.constant 0 : index
    %c0_3 = arith.constant 0 : index
    %4 = vector.load %arg3[%c0_2, %c0_3] : memref<16x128xbf16, #tpu.memory_space<vmem>>, vector<16x128xbf16>
    %c0_4 = arith.constant 0 : index
    %c0_5 = arith.constant 0 : index
    %5 = vector.load %arg4[%c0_4, %c0_5] : memref<128x128xbf16, #tpu.memory_space<vmem>>, vector<128x128xbf16>
    %cst = arith.constant dense<0.000000e+00> : vector<16x128xf32>
    %6 = tpu.matmul %4, %5, %cst {dimension_numbers = #tpu.dot_dimension_numbers<[1], [0], [0], [1], [0, 0, 1, 1], [], []>} : vector<16x128xbf16>, vector<128x128xbf16>, vector<16x128xf32> -> vector<16x128xf32>
    %7 = arith.addf %3, %6 : vector<16x128xf32>
    %c0_6 = arith.constant 0 : index
    %c0_7 = arith.constant 0 : index
    %8 = vector.load %arg7[%c0_6, %c0_7] : memref<16x128xf32, #tpu.memory_space<vmem>>, vector<16x128xf32>
    tpu.vector_store %arg7[%c0_6, %c0_7], %7 {strides = array<i32>} : memref<16x128xf32, #tpu.memory_space<vmem>>, vector<16x128xf32>,
    %c0_i32_8 = arith.constant 0 : i32
    %9 = arith.cmpi eq, %arg2, %c0_i32_8 : i32
    %10 = arith.extui %9 : i1 to i32
    %c0_i32_9 = arith.constant 0 : i32
    %11 = arith.cmpi ne, %10, %c0_i32_9 : i32
    scf.if %11 {
      %c0_10 = arith.constant 0 : index
      %c0_11 = arith.constant 0 : index
      %12 = vector.load %arg7[%c0_10, %c0_11] : memref<16x128xf32, #tpu.memory_space<vmem>>, vector<16x128xf32>
      %c0_12 = arith.constant 0 : index
      %c0_13 = arith.constant 0 : index
      %13 = vector.load %arg5[%c0_12, %c0_13] : memref<1x128xf32, #tpu.memory_space<vmem>>, vector<1x128xf32>
      %14 = vector.broadcast %13 : vector<1x128xf32> to vector<16x128xf32>
      %15 = arith.addf %12, %14 : vector<16x128xf32>
      %cst_14 = arith.constant 5.000000e-01 : f32
      %16 = vector.broadcast %cst_14 : f32 to vector<16x128xf32>
      %17 = arith.mulf %16, %15 : vector<16x128xf32>
      %cst_15 = arith.constant 4.471500e-02 : f32
      %18 = vector.broadcast %cst_15 : f32 to vector<16x128xf32>
      %19 = arith.mulf %18, %15 : vector<16x128xf32>
      %20 = arith.mulf %19, %15 : vector<16x128xf32>
      %21 = arith.mulf %20, %15 : vector<16x128xf32>
      %22 = arith.addf %15, %21 : vector<16x128xf32>
      %cst_16 = arith.constant 0.797884583 : f32
      %23 = vector.broadcast %cst_16 : f32 to vector<16x128xf32>
      %24 = arith.mulf %23, %22 : vector<16x128xf32>
      %25 = math.tanh %24 : vector<16x128xf32>
      %cst_17 = arith.constant 1.000000e+00 : f32
      %26 = vector.broadcast %cst_17 : f32 to vector<16x128xf32>
      %27 = arith.addf %26, %25 : vector<16x128xf32>
      %28 = arith.mulf %17, %27 : vector<16x128xf32>
      %29 = arith.truncf %28 : vector<16x128xf32> to vector<16x128xbf16>
      %c0_18 = arith.constant 0 : index
      %c0_19 = arith.constant 0 : index
      %30 = vector.load %arg6[%c0_18, %c0_19] : memref<16x128xbf16, #tpu.memory_space<vmem>>, vector<16x128xbf16>
      tpu.vector_store %arg6[%c0_18, %c0_19], %29 {strides = array<i32>} : memref<16x128xbf16, #tpu.memory_space<vmem>>, vector<16x128xbf16>,
    } else {
    }
    return
  }
  func.func @transform_0(%arg0: i32, %arg1: i32, %arg2: i32) -> (i32, i32) {
    %c0_i32 = arith.constant 0 : i32
    return %arg0, %arg2 : i32, i32
  }
  func.func @transform_1(%arg0: i32, %arg1: i32, %arg2: i32) -> (i32, i32) {
    %c0_i32 = arith.constant 0 : i32
    return %arg2, %arg1 : i32, i32
  }
  func.func @transform_2(%arg0: i32, %arg1: i32, %arg2: i32) -> (i32, i32) {
    %c0_i32 = arith.constant 0 : i32
    %c0_i32_0 = arith.constant 0 : i32
    return %c0_i32, %arg1 : i32, i32
  }
  func.func @transform_3(%arg0: i32, %arg1: i32, %arg2: i32) -> (i32, i32) {
    %c0_i32 = arith.constant 0 : i32
    return %arg0, %arg1 : i32, i32
  }
}

module attributes {stable_mosaic.version = 11 : i64} {
  func.func @_matmul_bias_kernel(%arg0: i32, %arg1: i32, %arg2: i32, %arg3: memref<16x128xbf16, #tpu.memory_space<vmem>>, %arg4: memref<128x128xbf16, #tpu.memory_space<vmem>>, %arg5: memref<1x128xf32, #tpu.memory_space<vmem>>, %arg6: memref<16x128xf32, #tpu.memory_space<vmem>>, %arg7: memref<16x128xf32, #tpu.memory_space<vmem>>) attributes {dimension_semantics = [#tpu.dimension_semantics<parallel>, #tpu.dimension_semantics<parallel>, #tpu.dimension_semantics<arbitrary>], iteration_bounds = array<i64: 1, 1, 1>, scalar_prefetch = 0 : i64, scratch_operands = 1 : i64, tpu.core_type = #tpu.core_type<tc>, window_params = [{transform_indices = @transform_0, window_bounds = array<i64: 16, 128>}, {transform_indices = @transform_1, window_bounds = array<i64: 128, 128>}, {transform_indices = @transform_2, window_bounds = array<i64: 1, 128>}, {transform_indices = @transform_3, window_bounds = array<i64: 16, 128>}]} {
    %c0_i32 = arith.constant 0 : i32
    %0 = arith.cmpi eq, %arg2, %c0_i32 : i32
    %1 = arith.extui %0 : i1 to i32
    %c0_i32_0 = arith.constant 0 : i32
    %2 = arith.cmpi ne, %1, %c0_i32_0 : i32
    scf.if %2 {
      %cst_10 = arith.constant 0.000000e+00 : f32
      %12 = vector.broadcast %cst_10 : f32 to vector<16x128xf32>
      %c0_11 = arith.constant 0 : index
      %c0_12 = arith.constant 0 : index
      %13 = vector.load %arg7[%c0_11, %c0_12] : memref<16x128xf32, #tpu.memory_space<vmem>>, vector<16x128xf32>
      tpu.vector_store %arg7[%c0_11, %c0_12], %12 {strides = array<i32>} : memref<16x128xf32, #tpu.memory_space<vmem>>, vector<16x128xf32>,
    } else {
    }
    %c0 = arith.constant 0 : index
    %c0_1 = arith.constant 0 : index
    %3 = vector.load %arg7[%c0, %c0_1] : memref<16x128xf32, #tpu.memory_space<vmem>>, vector<16x128xf32>
    %c0_2 = arith.constant 0 : index
    %c0_3 = arith.constant 0 : index
    %4 = vector.load %arg3[%c0_2, %c0_3] : memref<16x128xbf16, #tpu.memory_space<vmem>>, vector<16x128xbf16>
    %c0_4 = arith.constant 0 : index
    %c0_5 = arith.constant 0 : index
    %5 = vector.load %arg4[%c0_4, %c0_5] : memref<128x128xbf16, #tpu.memory_space<vmem>>, vector<128x128xbf16>
    %cst = arith.constant dense<0.000000e+00> : vector<16x128xf32>
    %6 = tpu.matmul %4, %5, %cst {dimension_numbers = #tpu.dot_dimension_numbers<[1], [0], [0], [1], [0, 0, 1, 1], [], []>} : vector<16x128xbf16>, vector<128x128xbf16>, vector<16x128xf32> -> vector<16x128xf32>
    %7 = arith.addf %3, %6 : vector<16x128xf32>
    %c0_6 = arith.constant 0 : index
    %c0_7 = arith.constant 0 : index
    %8 = vector.load %arg7[%c0_6, %c0_7] : memref<16x128xf32, #tpu.memory_space<vmem>>, vector<16x128xf32>
    tpu.vector_store %arg7[%c0_6, %c0_7], %7 {strides = array<i32>} : memref<16x128xf32, #tpu.memory_space<vmem>>, vector<16x128xf32>,
    %c0_i32_8 = arith.constant 0 : i32
    %9 = arith.cmpi eq, %arg2, %c0_i32_8 : i32
    %10 = arith.extui %9 : i1 to i32
    %c0_i32_9 = arith.constant 0 : i32
    %11 = arith.cmpi ne, %10, %c0_i32_9 : i32
    scf.if %11 {
      %c0_10 = arith.constant 0 : index
      %c0_11 = arith.constant 0 : index
      %12 = vector.load %arg7[%c0_10, %c0_11] : memref<16x128xf32, #tpu.memory_space<vmem>>, vector<16x128xf32>
      %c0_12 = arith.constant 0 : index
      %c0_13 = arith.constant 0 : index
      %13 = vector.load %arg5[%c0_12, %c0_13] : memref<1x128xf32, #tpu.memory_space<vmem>>, vector<1x128xf32>
      %14 = vector.broadcast %13 : vector<1x128xf32> to vector<16x128xf32>
      %15 = arith.addf %12, %14 : vector<16x128xf32>
      %c0_14 = arith.constant 0 : index
      %c0_15 = arith.constant 0 : index
      %16 = vector.load %arg6[%c0_14, %c0_15] : memref<16x128xf32, #tpu.memory_space<vmem>>, vector<16x128xf32>
      tpu.vector_store %arg6[%c0_14, %c0_15], %15 {strides = array<i32>} : memref<16x128xf32, #tpu.memory_space<vmem>>, vector<16x128xf32>,
    } else {
    }
    return
  }
  func.func @transform_0(%arg0: i32, %arg1: i32, %arg2: i32) -> (i32, i32) {
    %c0_i32 = arith.constant 0 : i32
    return %arg0, %arg2 : i32, i32
  }
  func.func @transform_1(%arg0: i32, %arg1: i32, %arg2: i32) -> (i32, i32) {
    %c0_i32 = arith.constant 0 : i32
    return %arg2, %arg1 : i32, i32
  }
  func.func @transform_2(%arg0: i32, %arg1: i32, %arg2: i32) -> (i32, i32) {
    %c0_i32 = arith.constant 0 : i32
    %c0_i32_0 = arith.constant 0 : i32
    return %c0_i32, %arg1 : i32, i32
  }
  func.func @transform_3(%arg0: i32, %arg1: i32, %arg2: i32) -> (i32, i32) {
    %c0_i32 = arith.constant 0 : i32
    return %arg0, %arg1 : i32, i32
  }
}

</mosaic_0001>

<llo_original>
// kernel: model_forward.26
$region0: #{model_forward.26}
  #allocation0 [shape = 'u32[]', space=smem, size = 0x4, offset = 0x4, fixed_abs, tag = 'smem constant byte address 0x4 - core index']
  #allocation1 [shape = 'u32[144,128]{1,0:T(1,128)}', space=vmem, size = 0x12000, scoped, tag = 'internal scratch']
  %s0 = inlined_call_operand.vmem [shape: bf16[32,32], index: 0, kind: input, shape index: {}]
  %s1 = inlined_call_operand.vmem [shape: f32[1,32], index: 1, kind: input, shape index: {}]
  %s2 = inlined_call_operand.vmem [shape: f32[1,32], index: 2, kind: input, shape index: {}]
  %s3 = inlined_call_operand.vmem [shape: bf16[32,32], index: 3, kind: output, shape index: {}]
  %s4 = sld [smem:[#allocation0]]
  $region22: #{model_forward.26} parent=0
    _
  %s6 = ssub.s32 1, %s4
  %s7 = scalar_select 0, %s6, %s4
  // Predicated region
  $region2: #{model_forward.26} parent=0 // pred_check
    _
  $region3: #{model_forward.26} parent=0 // pred_check_branch
    %9 = sbr.rel (0) target = $region5
  $region4: #{model_forward.26} parent=0 // pred_region
    _
  $region5: #{model_forward.26} parent=0 // pred_fallthru
    _
  // Predicated region
  $region6: #{model_forward.26} parent=0 // pred_check
    _
  $region7: #{model_forward.26} parent=0 // pred_check_branch
    %11 = sbr.rel (0) target = $region9
  $region8: #{model_forward.26} parent=0 // pred_region
    _
  $region9: #{model_forward.26} parent=0 // pred_fallthru
    _
  // Predicated region
  $region10: #{model_forward.26} parent=0 // pred_check
    _
  $region11: #{model_forward.26} parent=0 // pred_check_branch
    %13 = sbr.rel (0) target = $region13
  $region12: #{model_forward.26} parent=0 // pred_region
    _
  $region13: #{model_forward.26} parent=0 // pred_fallthru
    _
  %v14 = vld [vmem:[%s0] sm:$0xf]
  %v15 = vld [vmem:[%s0 + $0x4] sm:$0xf]
  %v16 = vld [vmem:[%s0 + $0x8] sm:$0xf]
  %v17 = vld [vmem:[%s0 + $0xc] sm:$0xf]
  %v18 = vunpack.c.l.bf16 %v14
  %v19 = vunpack.c.l.bf16 %v15
  %v20 = vunpack.c.l.bf16 %v16
  %v21 = vunpack.c.l.bf16 %v17
  %vm22 = vcmask 261120
  %v23 = vsel %vm22, %v18, 0.0
  %24 = vadd.xlane.f32.xlu0 %v23
  %v25 = vpop.xlane.xlu0 %24
  %v26 = vsel %vm22, %v19, 0.0
  %27 = vadd.xlane.f32.xlu0 %v26
  %v28 = vpop.xlane.xlu0 %27
  %v29 = vsel %vm22, %v20, 0.0
  %30 = vadd.xlane.f32.xlu0 %v29
  %v31 = vpop.xlane.xlu0 %30
  %v32 = vsel %vm22, %v21, 0.0
  %33 = vadd.xlane.f32.xlu0 %v32
  %v34 = vpop.xlane.xlu0 %33
  %v35 = vrcp.pop 32.0
  %v36 = vmul.f32 %v25, %v35
  %v37 = vmul.f32 %v28, %v35
  %v38 = vmul.f32 %v31, %v35
  %v39 = vmul.f32 %v34, %v35
  %v40 = vmul.f32 %v18, %v18
  %v41 = vmul.f32 %v19, %v19
  %v42 = vmul.f32 %v20, %v20
  %v43 = vmul.f32 %v21, %v21
  %v44 = vsel %vm22, %v40, 0.0
  %45 = vadd.xlane.f32.xlu0 %v44
  %v46 = vpop.xlane.xlu0 %45
  %v47 = vsel %vm22, %v41, 0.0
  %48 = vadd.xlane.f32.xlu0 %v47
  %v49 = vpop.xlane.xlu0 %48
  %v50 = vsel %vm22, %v42, 0.0
  %51 = vadd.xlane.f32.xlu0 %v50
  %v52 = vpop.xlane.xlu0 %51
  %v53 = vsel %vm22, %v43, 0.0
  %54 = vadd.xlane.f32.xlu0 %v53
  %v55 = vpop.xlane.xlu0 %54
  %v56 = vmul.f32 %v46, %v35
  %v57 = vmul.f32 %v49, %v35
  %v58 = vmul.f32 %v52, %v35
  %v59 = vmul.f32 %v55, %v35
  %v60 = vmul.f32 %v36, %v36
  %v61 = vmul.f32 %v37, %v37
  %v62 = vmul.f32 %v38, %v38
  %v63 = vmul.f32 %v39, %v39
  %v64 = vsub.f32 %v56, %v60
  %v65 = vsub.f32 %v57, %v61
  %v66 = vsub.f32 %v58, %v62
  %v67 = vsub.f32 %v59, %v63
  %v68 = vsub.f32 %v18, %v36
  %v69 = vsub.f32 %v19, %v37
  %v70 = vsub.f32 %v20, %v38
  %v71 = vsub.f32 %v21, %v39
  %v72 = vadd.f32 %v64, 1e-05
  %v73 = vadd.f32 %v65, 1e-05
  %v74 = vadd.f32 %v66, 1e-05
  %v75 = vadd.f32 %v67, 1e-05
  %v76 = vrsqrt.pop %v72
  %v77 = vrsqrt.pop %v73
  %v78 = vrsqrt.pop %v74
  %v79 = vrsqrt.pop %v75
  %v80 = vmul.f32 %v68, %v76
  %v81 = vmul.f32 %v69, %v77
  %v82 = vmul.f32 %v70, %v78
  %v83 = vmul.f32 %v71, %v79
  %v84 = vld [vmem:[%s1] sm:$0x1]
  %v86 = vlaneseq
  %v87 = vshrl.u32 %v86, 7
  %v88 = vsub.s32 0, %v87
  %v89 = vrot.slane %v84, %v88
  %v91 = vmul.f32 %v80, %v89
  %v92 = vmul.f32 %v81, %v89
  %v93 = vmul.f32 %v82, %v89
  %v94 = vmul.f32 %v83, %v89
  %v95 = vld [vmem:[%s2] sm:$0x1]
  %v97 = vlaneseq
  %v98 = vshrl.u32 %v97, 7
  %v99 = vsub.s32 0, %v98
  %v100 = vrot.slane %v95, %v99
  %v102 = vadd.f32 %v91, %v100
  %v103 = vadd.f32 %v92, %v100
  %v104 = vadd.f32 %v93, %v100
  %v105 = vadd.f32 %v94, %v100
  %v106 = vpack.c.bf16 %v103, %v102
  %v107 = vpack.c.bf16 %v105, %v104
  %v110 = vunpack.c.l.b16 %v106
  %v111 = vunpack.c.h.b16 %v106
  %v112 = vunpack.c.l.b16 %v107
  %v113 = vunpack.c.h.b16 %v107
  %v114 = vpack.c.b16 %v110, %v110
  %v115 = vpack.c.b16 %v111, %v111
  %v116 = vpack.c.b16 %v112, %v112
  %v117 = vpack.c.b16 %v113, %v113
  %vm122 = vcmask 257024
  %123 = vst.msk [vmem:[%s3] sm:$0xf] %vm122, %v114
  %124 = vst.msk [vmem:[%s3 + $0x4] sm:$0xf] %vm122, %v115
  %125 = vst.msk [vmem:[%s3 + $0x8] sm:$0xf] %vm122, %v116
  %126 = vst.msk [vmem:[%s3 + $0xc] sm:$0xf] %vm122, %v117
  // Predicated region
  $region14: #{model_forward.26} parent=0 // pred_check
    _
  $region15: #{model_forward.26} parent=0 // pred_check_branch
    %128 = sbr.rel (0) target = $region17
  $region16: #{model_forward.26} parent=0 // pred_region
    _
  $region17: #{model_forward.26} parent=0 // pred_fallthru
    _
  // Predicated region
  $region18: #{model_forward.26} parent=0 // pred_check
    _
  $region19: #{model_forward.26} parent=0 // pred_check_branch
    %130 = sbr.rel (0) target = $region21
  $region20: #{model_forward.26} parent=0 // pred_region
    _
  $region21: #{model_forward.26} parent=0 // pred_fallthru
    _

// kernel: model_forward.25
$region0: #{model_forward.25}
  #allocation0 [shape = 'u32[]', space=smem, size = 0x4, offset = 0x4, fixed_abs, tag = 'smem constant byte address 0x4 - core index']
  #allocation1 [shape = 'u32[144,128]{1,0:T(1,128)}', space=vmem, size = 0x12000, scoped, tag = 'internal scratch']
  #allocation2 [shape = 'f32[32,128]{1,0:T(8,128)}', space=vmem, size = 0x4000, scoped, tag = 'scratch operand']
  %s0 = inlined_call_operand.vmem [shape: bf16[32,128], index: 0, kind: input, shape index: {}]
  %s1 = inlined_call_operand.vmem [shape: bf16[128,128], index: 1, kind: input, shape index: {}]
  %s2 = inlined_call_operand.vmem [shape: f32[1,128], index: 2, kind: input, shape index: {}]
  %s3 = inlined_call_operand.vmem [shape: bf16[32,128], index: 3, kind: output, shape index: {}]
  %s4 = sld [smem:[#allocation0]]
  $region30: #{model_forward.25} parent=0
    _
  %s6 = ssub.s32 1, %s4
  %s7 = scalar_select 0, %s6, %s4
  // Predicated region
  $region2: #{model_forward.25} parent=0 // pred_check
    _
  $region3: #{model_forward.25} parent=0 // pred_check_branch
    %9 = sbr.rel (0) target = $region5
  $region4: #{model_forward.25} parent=0 // pred_region
    _
  $region5: #{model_forward.25} parent=0 // pred_fallthru
    _
  // Predicated region
  $region6: #{model_forward.25} parent=0 // pred_check
    _
  $region7: #{model_forward.25} parent=0 // pred_check_branch
    %11 = sbr.rel (0) target = $region9
  $region8: #{model_forward.25} parent=0 // pred_region
    _
  $region9: #{model_forward.25} parent=0 // pred_fallthru
    _
  // Predicated region
  $region10: #{model_forward.25} parent=0 // pred_check
    _
  $region11: #{model_forward.25} parent=0 // pred_check_branch
    %13 = sbr.rel (0) target = $region13
  $region12: #{model_forward.25} parent=0 // pred_region
    _
  $region13: #{model_forward.25} parent=0 // pred_fallthru
    _
  %p15 = scmp.eq.s32.totalorder 0, 0
  // Predicated region
  $region14: #{model_forward.25} parent=0 // pred_check
    %p16 = pneg %p15
  $region15: #{model_forward.25} parent=0 // pred_check_branch
    %18 = sbr.rel (%p16) target = $region17
  $region16: #{model_forward.25} parent=0 // pred_region
    %19 = vst [vmem:[#allocation2] sm:$0xff] 0.0
    %20 = vst [vmem:[#allocation2 + $0x8] sm:$0xff] 0.0
    %21 = vst [vmem:[#allocation2 + $0x10] sm:$0xff] 0.0
    %22 = vst [vmem:[#allocation2 + $0x18] sm:$0xff] 0.0
  $region17: #{model_forward.25} parent=0 // pred_fallthru
    _
  %v23 = vld [vmem:[#allocation2] sm:$0xff]
  %v24 = vld [vmem:[#allocation2 + $0x8] sm:$0xff]
  %v25 = vld [vmem:[#allocation2 + $0x10] sm:$0xff]
  %v26 = vld [vmem:[#allocation2 + $0x18] sm:$0xff]
  %v27 = vld [vmem:[%s0] sm:$0xf]
  %v28 = vld [vmem:[%s0 + $0x4] sm:$0xf]
  %v29 = vld [vmem:[%s0 + $0x8] sm:$0xf]
  %v30 = vld [vmem:[%s0 + $0xc] sm:$0xf]
  %v31 = vld [vmem:[%s1] sm:$0xf]
  %v32 = vld [vmem:[%s1 + $0x4] sm:$0xf]
  %v33 = vld [vmem:[%s1 + $0x8] sm:$0xf]
  %v34 = vld [vmem:[%s1 + $0xc] sm:$0xf]
  %v35 = vld [vmem:[%s1 + $0x10] sm:$0xf]
  %v36 = vld [vmem:[%s1 + $0x14] sm:$0xf]
  %v37 = vld [vmem:[%s1 + $0x18] sm:$0xf]
  %v38 = vld [vmem:[%s1 + $0x1c] sm:$0xf]
  %v39 = vld [vmem:[%s1 + $0x20] sm:$0xf]
  %v40 = vld [vmem:[%s1 + $0x24] sm:$0xf]
  %v41 = vld [vmem:[%s1 + $0x28] sm:$0xf]
  %v42 = vld [vmem:[%s1 + $0x2c] sm:$0xf]
  %v43 = vld [vmem:[%s1 + $0x30] sm:$0xf]
  %v44 = vld [vmem:[%s1 + $0x34] sm:$0xf]
  %v45 = vld [vmem:[%s1 + $0x38] sm:$0xf]
  %v46 = vld [vmem:[%s1 + $0x3c] sm:$0xf]
  %v51 = vunpack.c.l.b16 %v27
  %v52 = vunpack.c.l.b16 %v28
  %v53 = vunpack.c.l.b16 %v29
  %v54 = vunpack.c.l.b16 %v30
  %v55 = vpack.c.b16 %v52, %v51
  %v56 = vpack.c.b16 %v54, %v53
  %v75 = vunpack.c.l.b16 %v31
  %v76 = vunpack.c.l.b16 %v32
  %v77 = vunpack.c.l.b16 %v33
  %v78 = vunpack.c.l.b16 %v34
  %v79 = vunpack.c.l.b16 %v35
  %v80 = vunpack.c.l.b16 %v36
  %v81 = vunpack.c.l.b16 %v37
  %v82 = vunpack.c.l.b16 %v38
  %v83 = vunpack.c.l.b16 %v39
  %v84 = vunpack.c.l.b16 %v40
  %v85 = vunpack.c.l.b16 %v41
  %v86 = vunpack.c.l.b16 %v42
  %v87 = vunpack.c.l.b16 %v43
  %v88 = vunpack.c.l.b16 %v44
  %v89 = vunpack.c.l.b16 %v45
  %v90 = vunpack.c.l.b16 %v46
  %v91 = vpack.c.b16 %v76, %v75
  %v92 = vpack.c.b16 %v78, %v77
  %v93 = vpack.c.b16 %v80, %v79
  %v94 = vpack.c.b16 %v82, %v81
  %v95 = vpack.c.b16 %v84, %v83
  %v96 = vpack.c.b16 %v86, %v85
  %v97 = vpack.c.b16 %v88, %v87
  %v98 = vpack.c.b16 %v90, %v89
  %107 = vmatprep.subr.bf16.mxu0 0
  %108 = vmatpush1.bf16.msra.mxu0 %v98
  %109 = vmatprep.subr.bf16.mxu0 0
  %110 = vmatpush1.bf16.msra.mxu0 %v97
  %111 = vmatprep.subr.bf16.mxu0 0
  %112 = vmatpush1.bf16.msra.mxu0 %v96
  %113 = vmatprep.subr.bf16.mxu0 0
  %114 = vmatpush1.bf16.msra.mxu0 %v95
  %115 = vmatprep.subr.bf16.mxu0 0
  %116 = vmatpush1.bf16.msra.mxu0 %v94
  %117 = vmatprep.subr.bf16.mxu0 0
  %118 = vmatpush1.bf16.msra.mxu0 %v93
  %119 = vmatprep.subr.bf16.mxu0 0
  %120 = vmatpush1.bf16.msra.mxu0 %v92
  %121 = vmatprep.subr.bf16.mxu0 0
  %122 = vmatpush1.bf16.msra.mxu0 %v91
  %123 = vmatprep.subr.bf16.mxu0 0
  %124 = vmatpush2.bf16.msra.mxu0 0
  %125 = vmatprep.subr.bf16.mxu0 0
  %126 = vmatpush2.bf16.msra.mxu0 0
  %127 = vmatprep.subr.bf16.mxu0 0
  %128 = vmatpush2.bf16.msra.mxu0 0
  %129 = vmatprep.subr.bf16.mxu0 0
  %130 = vmatpush2.bf16.msra.mxu0 0
  %131 = vmatprep.subr.bf16.mxu0 0
  %132 = vmatpush2.bf16.msra.mxu0 0
  %133 = vmatprep.subr.bf16.mxu0 0
  %134 = vmatpush2.bf16.msra.mxu0 0
  %135 = vmatprep.subr.bf16.mxu0 0
  %136 = vmatpush2.bf16.msra.mxu0 0
  %137 = vmatprep.subr.bf16.mxu0 0
  %138 = vmatpush2.bf16.msra.mxu0 0
  %139 = vmatprep.mubr.bf16.mxu0 0
  %140 = vmatmul.mubr.bf16.gmra.mxu0 %v55
  %v141 = vpop.f32.mrf.mxu0
  %v142 = vadd.f32 0.0, %v141
  %v143 = vpop.f32.mrf.mxu0
  %v144 = vpop.f32.mrf.mxu0
  %v145 = vadd.f32 0.0, %v144
  %v146 = vpop.f32.mrf.mxu0
  %147 = vmatprep.mubr.bf16.mxu0 0
  %148 = vmatmul.mubr.bf16.gmra.mxu0 %v56
  %v149 = vpop.f32.mrf.mxu0
  %v150 = vadd.f32 0.0, %v149
  %v151 = vpop.f32.mrf.mxu0
  %v152 = vpop.f32.mrf.mxu0
  %v153 = vadd.f32 0.0, %v152
  %v154 = vpop.f32.mrf.mxu0
  %155 = vdwg.mxu0
  %v156 = vadd.f32 %v23, %v142
  %v157 = vadd.f32 %v24, %v145
  %v158 = vadd.f32 %v25, %v150
  %v159 = vadd.f32 %v26, %v153
  %160 = vst [vmem:[#allocation2] sm:$0xff] %v156
  %161 = vst [vmem:[#allocation2 + $0x8] sm:$0xff] %v157
  %162 = vst [vmem:[#allocation2 + $0x10] sm:$0xff] %v158
  %163 = vst [vmem:[#allocation2 + $0x18] sm:$0xff] %v159
  // Predicated region
  $region18: #{model_forward.25} parent=0 // pred_check
    %p164 = pneg %p15
  $region19: #{model_forward.25} parent=0 // pred_check_branch
    %166 = sbr.rel (%p164) target = $region21
  $region20: #{model_forward.25} parent=0 // pred_region
    %v167 = vld [vmem:[#allocation2] sm:$0xff]
    %v168 = vld [vmem:[#allocation2 + $0x8] sm:$0xff]
    %v169 = vld [vmem:[#allocation2 + $0x10] sm:$0xff]
    %v170 = vld [vmem:[#allocation2 + $0x18] sm:$0xff]
    %v171 = vld [vmem:[%s2] sm:$0x1]
    %v173 = vlaneseq
    %v174 = vshrl.u32 %v173, 7
    %v175 = vsub.s32 0, %v174
    %v176 = vrot.slane %v171, %v175
    %v178 = vadd.f32 %v167, %v176
    %v179 = vadd.f32 %v168, %v176
    %v180 = vadd.f32 %v169, %v176
    %v181 = vadd.f32 %v170, %v176
    %v182 = vmul.f32 %v178, 0.5
    %v183 = vmul.f32 %v179, 0.5
    %v184 = vmul.f32 %v180, 0.5
    %v185 = vmul.f32 %v181, 0.5
    %v186 = vmul.f32 %v178, 0.044715
    %v187 = vmul.f32 %v179, 0.044715
    %v188 = vmul.f32 %v180, 0.044715
    %v189 = vmul.f32 %v181, 0.044715
    %v190 = vmul.f32 %v186, %v178
    %v191 = vmul.f32 %v187, %v179
    %v192 = vmul.f32 %v188, %v180
    %v193 = vmul.f32 %v189, %v181
    %v194 = vmul.f32 %v190, %v178
    %v195 = vmul.f32 %v191, %v179
    %v196 = vmul.f32 %v192, %v180
    %v197 = vmul.f32 %v193, %v181
    %v198 = vadd.f32 %v178, %v194
    %v199 = vadd.f32 %v179, %v195
    %v200 = vadd.f32 %v180, %v196
    %v201 = vadd.f32 %v181, %v197
    %v202 = vmul.f32 %v198, 0.7978846
    %v203 = vmul.f32 %v199, 0.7978846
    %v204 = vmul.f32 %v200, 0.7978846
    %v205 = vmul.f32 %v201, 0.7978846
    %v206 = vtanh.pop %v202
    %v207 = vtanh.pop %v203
    %v208 = vtanh.pop %v204
    %v209 = vtanh.pop %v205
    %v210 = vadd.f32 %v206, 1.0
    %v211 = vadd.f32 %v207, 1.0
    %v212 = vadd.f32 %v208, 1.0
    %v213 = vadd.f32 %v209, 1.0
    %v214 = vmul.f32 %v182, %v210
    %v215 = vmul.f32 %v183, %v211
    %v216 = vmul.f32 %v184, %v212
    %v217 = vmul.f32 %v185, %v213
    %v218 = vpack.c.bf16 %v215, %v214
    %v219 = vpack.c.bf16 %v217, %v216
    %v222 = vunpack.c.l.b16 %v218
    %v223 = vunpack.c.h.b16 %v218
    %v224 = vunpack.c.l.b16 %v219
    %v225 = vunpack.c.h.b16 %v219
    %v226 = vpack.c.b16 %v222, %v222
    %v227 = vpack.c.b16 %v223, %v223
    %v228 = vpack.c.b16 %v224, %v224
    %v229 = vpack.c.b16 %v225, %v225
    %234 = vst [vmem:[%s3] sm:$0xf] %v226
    %235 = vst [vmem:[%s3 + $0x4] sm:$0xf] %v227
    %236 = vst [vmem:[%s3 + $0x8] sm:$0xf] %v228
    %237 = vst [vmem:[%s3 + $0xc] sm:$0xf] %v229
  $region21: #{model_forward.25} parent=0 // pred_fallthru
    _
  // Predicated region
  $region22: #{model_forward.25} parent=0 // pred_check
    _
  $region23: #{model_forward.25} parent=0 // pred_check_branch
    %239 = sbr.rel (0) target = $region25
  $region24: #{model_forward.25} parent=0 // pred_region
    _
  $region25: #{model_forward.25} parent=0 // pred_fallthru
    _
  // Predicated region
  $region26: #{model_forward.25} parent=0 // pred_check
    _
  $region27: #{model_forward.25} parent=0 // pred_check_branch
    %241 = sbr.rel (0) target = $region29
  $region28: #{model_forward.25} parent=0 // pred_region
    _
  $region29: #{model_forward.25} parent=0 // pred_fallthru
    _

// kernel: model_forward.24
$region0: #{model_forward.24}
  #allocation0 [shape = 'u32[]', space=smem, size = 0x4, offset = 0x4, fixed_abs, tag = 'smem constant byte address 0x4 - core index']
  #allocation1 [shape = 'u32[144,128]{1,0:T(1,128)}', space=vmem, size = 0x12000, scoped, tag = 'internal scratch']
  #allocation2 [shape = 'f32[64,128]{1,0:T(8,128)}', space=vmem, size = 0x8000, scoped, tag = 'scratch operand']
  %s0 = inlined_call_operand.vmem [shape: bf16[64,128], index: 0, kind: input, shape index: {}]
  %s1 = inlined_call_operand.vmem [shape: bf16[128,128], index: 1, kind: input, shape index: {}]
  %s2 = inlined_call_operand.vmem [shape: f32[1,128], index: 2, kind: input, shape index: {}]
  %s3 = inlined_call_operand.vmem [shape: bf16[64,128], index: 3, kind: output, shape index: {}]
  %s4 = sld [smem:[#allocation0]]
  $region30: #{model_forward.24} parent=0
    _
  %s6 = ssub.s32 1, %s4
  %s7 = scalar_select 0, %s6, %s4
  // Predicated region
  $region2: #{model_forward.24} parent=0 // pred_check
    _
  $region3: #{model_forward.24} parent=0 // pred_check_branch
    %9 = sbr.rel (0) target = $region5
  $region4: #{model_forward.24} parent=0 // pred_region
    _
  $region5: #{model_forward.24} parent=0 // pred_fallthru
    _
  // Predicated region
  $region6: #{model_forward.24} parent=0 // pred_check
    _
  $region7: #{model_forward.24} parent=0 // pred_check_branch
    %11 = sbr.rel (0) target = $region9
  $region8: #{model_forward.24} parent=0 // pred_region
    _
  $region9: #{model_forward.24} parent=0 // pred_fallthru
    _
  // Predicated region
  $region10: #{model_forward.24} parent=0 // pred_check
    _
  $region11: #{model_forward.24} parent=0 // pred_check_branch
    %13 = sbr.rel (0) target = $region13
  $region12: #{model_forward.24} parent=0 // pred_region
    _
  $region13: #{model_forward.24} parent=0 // pred_fallthru
    _
  %p15 = scmp.eq.s32.totalorder 0, 0
  // Predicated region
  $region14: #{model_forward.24} parent=0 // pred_check
    %p16 = pneg %p15
  $region15: #{model_forward.24} parent=0 // pred_check_branch
    %18 = sbr.rel (%p16) target = $region17
  $region16: #{model_forward.24} parent=0 // pred_region
    %19 = vst [vmem:[#allocation2] sm:$0xff] 0.0
    %20 = vst [vmem:[#allocation2 + $0x8] sm:$0xff] 0.0
    %21 = vst [vmem:[#allocation2 + $0x10] sm:$0xff] 0.0
    %22 = vst [vmem:[#allocation2 + $0x18] sm:$0xff] 0.0
    %23 = vst [vmem:[#allocation2 + $0x20] sm:$0xff] 0.0
    %24 = vst [vmem:[#allocation2 + $0x28] sm:$0xff] 0.0
    %25 = vst [vmem:[#allocation2 + $0x30] sm:$0xff] 0.0
    %26 = vst [vmem:[#allocation2 + $0x38] sm:$0xff] 0.0
  $region17: #{model_forward.24} parent=0 // pred_fallthru
    _
  %v27 = vld [vmem:[#allocation2] sm:$0xff]
  %v28 = vld [vmem:[#allocation2 + $0x8] sm:$0xff]
  %v29 = vld [vmem:[#allocation2 + $0x10] sm:$0xff]
  %v30 = vld [vmem:[#allocation2 + $0x18] sm:$0xff]
  %v31 = vld [vmem:[#allocation2 + $0x20] sm:$0xff]
  %v32 = vld [vmem:[#allocation2 + $0x28] sm:$0xff]
  %v33 = vld [vmem:[#allocation2 + $0x30] sm:$0xff]
  %v34 = vld [vmem:[#allocation2 + $0x38] sm:$0xff]
  %v35 = vld [vmem:[%s0] sm:$0xf]
  %v36 = vld [vmem:[%s0 + $0x4] sm:$0xf]
  %v37 = vld [vmem:[%s0 + $0x8] sm:$0xf]
  %v38 = vld [vmem:[%s0 + $0xc] sm:$0xf]
  %v39 = vld [vmem:[%s0 + $0x10] sm:$0xf]
  %v40 = vld [vmem:[%s0 + $0x14] sm:$0xf]
  %v41 = vld [vmem:[%s0 + $0x18] sm:$0xf]
  %v42 = vld [vmem:[%s0 + $0x1c] sm:$0xf]
  %v43 = vld [vmem:[%s1] sm:$0xf]
  %v44 = vld [vmem:[%s1 + $0x4] sm:$0xf]
  %v45 = vld [vmem:[%s1 + $0x8] sm:$0xf]
  %v46 = vld [vmem:[%s1 + $0xc] sm:$0xf]
  %v47 = vld [vmem:[%s1 + $0x10] sm:$0xf]
  %v48 = vld [vmem:[%s1 + $0x14] sm:$0xf]
  %v49 = vld [vmem:[%s1 + $0x18] sm:$0xf]
  %v50 = vld [vmem:[%s1 + $0x1c] sm:$0xf]
  %v51 = vld [vmem:[%s1 + $0x20] sm:$0xf]
  %v52 = vld [vmem:[%s1 + $0x24] sm:$0xf]
  %v53 = vld [vmem:[%s1 + $0x28] sm:$0xf]
  %v54 = vld [vmem:[%s1 + $0x2c] sm:$0xf]
  %v55 = vld [vmem:[%s1 + $0x30] sm:$0xf]
  %v56 = vld [vmem:[%s1 + $0x34] sm:$0xf]
  %v57 = vld [vmem:[%s1 + $0x38] sm:$0xf]
  %v58 = vld [vmem:[%s1 + $0x3c] sm:$0xf]
  %v67 = vunpack.c.l.b16 %v35
  %v68 = vunpack.c.l.b16 %v36
  %v69 = vunpack.c.l.b16 %v37
  %v70 = vunpack.c.l.b16 %v38
  %v71 = vunpack.c.l.b16 %v39
  %v72 = vunpack.c.l.b16 %v40
  %v73 = vunpack.c.l.b16 %v41
  %v74 = vunpack.c.l.b16 %v42
  %v75 = vpack.c.b16 %v68, %v67
  %v76 = vpack.c.b16 %v70, %v69
  %v77 = vpack.c.b16 %v72, %v71
  %v78 = vpack.c.b16 %v74, %v73
  %v99 = vunpack.c.l.b16 %v43
  %v100 = vunpack.c.l.b16 %v44
  %v101 = vunpack.c.l.b16 %v45
  %v102 = vunpack.c.l.b16 %v46
  %v103 = vunpack.c.l.b16 %v47
  %v104 = vunpack.c.l.b16 %v48
  %v105 = vunpack.c.l.b16 %v49
  %v106 = vunpack.c.l.b16 %v50
  %v107 = vunpack.c.l.b16 %v51
  %v108 = vunpack.c.l.b16 %v52
  %v109 = vunpack.c.l.b16 %v53
  %v110 = vunpack.c.l.b16 %v54
  %v111 = vunpack.c.l.b16 %v55
  %v112 = vunpack.c.l.b16 %v56
  %v113 = vunpack.c.l.b16 %v57
  %v114 = vunpack.c.l.b16 %v58
  %v115 = vpack.c.b16 %v100, %v99
  %v116 = vpack.c.b16 %v102, %v101
  %v117 = vpack.c.b16 %v104, %v103
  %v118 = vpack.c.b16 %v106, %v105
  %v119 = vpack.c.b16 %v108, %v107
  %v120 = vpack.c.b16 %v110, %v109
  %v121 = vpack.c.b16 %v112, %v111
  %v122 = vpack.c.b16 %v114, %v113
  %131 = vmatprep.subr.bf16.mxu0 0
  %132 = vmatpush1.bf16.msra.mxu0 %v122
  %133 = vmatprep.subr.bf16.mxu0 0
  %134 = vmatpush1.bf16.msra.mxu0 %v121
  %135 = vmatprep.subr.bf16.mxu0 0
  %136 = vmatpush1.bf16.msra.mxu0 %v120
  %137 = vmatprep.subr.bf16.mxu0 0
  %138 = vmatpush1.bf16.msra.mxu0 %v119
  %139 = vmatprep.subr.bf16.mxu0 0
  %140 = vmatpush1.bf16.msra.mxu0 %v118
  %141 = vmatprep.subr.bf16.mxu0 0
  %142 = vmatpush1.bf16.msra.mxu0 %v117
  %143 = vmatprep.subr.bf16.mxu0 0
  %144 = vmatpush1.bf16.msra.mxu0 %v116
  %145 = vmatprep.subr.bf16.mxu0 0
  %146 = vmatpush1.bf16.msra.mxu0 %v115
  %147 = vmatprep.subr.bf16.mxu0 0
  %148 = vmatpush2.bf16.msra.mxu0 0
  %149 = vmatprep.subr.bf16.mxu0 0
  %150 = vmatpush2.bf16.msra.mxu0 0
  %151 = vmatprep.subr.bf16.mxu0 0
  %152 = vmatpush2.bf16.msra.mxu0 0
  %153 = vmatprep.subr.bf16.mxu0 0
  %154 = vmatpush2.bf16.msra.mxu0 0
  %155 = vmatprep.subr.bf16.mxu0 0
  %156 = vmatpush2.bf16.msra.mxu0 0
  %157 = vmatprep.subr.bf16.mxu0 0
  %158 = vmatpush2.bf16.msra.mxu0 0
  %159 = vmatprep.subr.bf16.mxu0 0
  %160 = vmatpush2.bf16.msra.mxu0 0
  %161 = vmatprep.subr.bf16.mxu0 0
  %162 = vmatpush2.bf16.msra.mxu0 0
  %163 = vmatprep.mubr.bf16.mxu0 0
  %164 = vmatmul.mubr.bf16.gmra.mxu0 %v75
  %v165 = vpop.f32.mrf.mxu0
  %v166 = vadd.f32 0.0, %v165
  %v167 = vpop.f32.mrf.mxu0
  %v168 = vpop.f32.mrf.mxu0
  %v169 = vadd.f32 0.0, %v168
  %v170 = vpop.f32.mrf.mxu0
  %171 = vmatprep.mubr.bf16.mxu0 0
  %172 = vmatmul.mubr.bf16.gmra.mxu0 %v76
  %v173 = vpop.f32.mrf.mxu0
  %v174 = vadd.f32 0.0, %v173
  %v175 = vpop.f32.mrf.mxu0
  %v176 = vpop.f32.mrf.mxu0
  %v177 = vadd.f32 0.0, %v176
  %v178 = vpop.f32.mrf.mxu0
  %179 = vmatprep.mubr.bf16.mxu0 0
  %180 = vmatmul.mubr.bf16.gmra.mxu0 %v77
  %v181 = vpop.f32.mrf.mxu0
  %v182 = vadd.f32 0.0, %v181
  %v183 = vpop.f32.mrf.mxu0
  %v184 = vpop.f32.mrf.mxu0
  %v185 = vadd.f32 0.0, %v184
  %v186 = vpop.f32.mrf.mxu0
  %187 = vmatprep.mubr.bf16.mxu0 0
  %188 = vmatmul.mubr.bf16.gmra.mxu0 %v78
  %v189 = vpop.f32.mrf.mxu0
  %v190 = vadd.f32 0.0, %v189
  %v191 = vpop.f32.mrf.mxu0
  %v192 = vpop.f32.mrf.mxu0
  %v193 = vadd.f32 0.0, %v192
  %v194 = vpop.f32.mrf.mxu0
  %195 = vdwg.mxu0
  %v196 = vadd.f32 %v27, %v166
  %v197 = vadd.f32 %v28, %v169
  %v198 = vadd.f32 %v29, %v174
  %v199 = vadd.f32 %v30, %v177
  %v200 = vadd.f32 %v31, %v182
  %v201 = vadd.f32 %v32, %v185
  %v202 = vadd.f32 %v33, %v190
  %v203 = vadd.f32 %v34, %v193
  %204 = vst [vmem:[#allocation2] sm:$0xff] %v196
  %205 = vst [vmem:[#allocation2 + $0x8] sm:$0xff] %v197
  %206 = vst [vmem:[#allocation2 + $0x10] sm:$0xff] %v198
  %207 = vst [vmem:[#allocation2 + $0x18] sm:$0xff] %v199
  %208 = vst [vmem:[#allocation2 + $0x20] sm:$0xff] %v200
  %209 = vst [vmem:[#allocation2 + $0x28] sm:$0xff] %v201
  %210 = vst [vmem:[#allocation2 + $0x30] sm:$0xff] %v202
  %211 = vst [vmem:[#allocation2 + $0x38] sm:$0xff] %v203
  // Predicated region
  $region18: #{model_forward.24} parent=0 // pred_check
    %p212 = pneg %p15
  $region19: #{model_forward.24} parent=0 // pred_check_branch
    %214 = sbr.rel (%p212) target = $region21
  $region20: #{model_forward.24} parent=0 // pred_region
    %v215 = vld [vmem:[#allocation2] sm:$0xff]
    %v216 = vld [vmem:[#allocation2 + $0x8] sm:$0xff]
    %v217 = vld [vmem:[#allocation2 + $0x10] sm:$0xff]
    %v218 = vld [vmem:[#allocation2 + $0x18] sm:$0xff]
    %v219 = vld [vmem:[#allocation2 + $0x20] sm:$0xff]
    %v220 = vld [vmem:[#allocation2 + $0x28] sm:$0xff]
    %v221 = vld [vmem:[#allocation2 + $0x30] sm:$0xff]
    %v222 = vld [vmem:[#allocation2 + $0x38] sm:$0xff]
    %v223 = vld [vmem:[%s2] sm:$0x1]
    %v225 = vlaneseq
    %v226 = vshrl.u32 %v225, 7
    %v227 = vsub.s32 0, %v226
    %v228 = vrot.slane %v223, %v227
    %v230 = vadd.f32 %v215, %v228
    %v231 = vadd.f32 %v216, %v228
    %v232 = vadd.f32 %v217, %v228
    %v233 = vadd.f32 %v218, %v228
    %v234 = vadd.f32 %v219, %v228
    %v235 = vadd.f32 %v220, %v228
    %v236 = vadd.f32 %v221, %v228
    %v237 = vadd.f32 %v222, %v228
    %v238 = vmul.f32 %v230, 0.5
    %v239 = vmul.f32 %v231, 0.5
    %v240 = vmul.f32 %v232, 0.5
    %v241 = vmul.f32 %v233, 0.5
    %v242 = vmul.f32 %v234, 0.5
    %v243 = vmul.f32 %v235, 0.5
    %v244 = vmul.f32 %v236, 0.5
    %v245 = vmul.f32 %v237, 0.5
    %v246 = vmul.f32 %v230, 0.044715
    %v247 = vmul.f32 %v231, 0.044715
    %v248 = vmul.f32 %v232, 0.044715
    %v249 = vmul.f32 %v233, 0.044715
    %v250 = vmul.f32 %v234, 0.044715
    %v251 = vmul.f32 %v235, 0.044715
    %v252 = vmul.f32 %v236, 0.044715
    %v253 = vmul.f32 %v237, 0.044715
    %v254 = vmul.f32 %v246, %v230
    %v255 = vmul.f32 %v247, %v231
    %v256 = vmul.f32 %v248, %v232
    %v257 = vmul.f32 %v249, %v233
    %v258 = vmul.f32 %v250, %v234
    %v259 = vmul.f32 %v251, %v235
    %v260 = vmul.f32 %v252, %v236
    %v261 = vmul.f32 %v253, %v237
    %v262 = vmul.f32 %v254, %v230
    %v263 = vmul.f32 %v255, %v231
    %v264 = vmul.f32 %v256, %v232
    %v265 = vmul.f32 %v257, %v233
    %v266 = vmul.f32 %v258, %v234
    %v267 = vmul.f32 %v259, %v235
    %v268 = vmul.f32 %v260, %v236
    %v269 = vmul.f32 %v261, %v237
    %v270 = vadd.f32 %v230, %v262
    %v271 = vadd.f32 %v231, %v263
    %v272 = vadd.f32 %v232, %v264
    %v273 = vadd.f32 %v233, %v265
    %v274 = vadd.f32 %v234, %v266
    %v275 = vadd.f32 %v235, %v267
    %v276 = vadd.f32 %v236, %v268
    %v277 = vadd.f32 %v237, %v269
    %v278 = vmul.f32 %v270, 0.7978846
    %v279 = vmul.f32 %v271, 0.7978846
    %v280 = vmul.f32 %v272, 0.7978846
    %v281 = vmul.f32 %v273, 0.7978846
    %v282 = vmul.f32 %v274, 0.7978846
    %v283 = vmul.f32 %v275, 0.7978846
    %v284 = vmul.f32 %v276, 0.7978846
    %v285 = vmul.f32 %v277, 0.7978846
    %v286 = vtanh.pop %v278
    %v287 = vtanh.pop %v279
    %v288 = vtanh.pop %v280
    %v289 = vtanh.pop %v281
    %v290 = vtanh.pop %v282
    %v291 = vtanh.pop %v283
    %v292 = vtanh.pop %v284
    %v293 = vtanh.pop %v285
    %v294 = vadd.f32 %v286, 1.0
    %v295 = vadd.f32 %v287, 1.0
    %v296 = vadd.f32 %v288, 1.0
    %v297 = vadd.f32 %v289, 1.0
    %v298 = vadd.f32 %v290, 1.0
    %v299 = vadd.f32 %v291, 1.0
    %v300 = vadd.f32 %v292, 1.0
    %v301 = vadd.f32 %v293, 1.0
    %v302 = vmul.f32 %v238, %v294
    %v303 = vmul.f32 %v239, %v295
    %v304 = vmul.f32 %v240, %v296
    %v305 = vmul.f32 %v241, %v297
    %v306 = vmul.f32 %v242, %v298
    %v307 = vmul.f32 %v243, %v299
    %v308 = vmul.f32 %v244, %v300
    %v309 = vmul.f32 %v245, %v301
    %v310 = vpack.c.bf16 %v303, %v302
    %v311 = vpack.c.bf16 %v305, %v304
    %v312 = vpack.c.bf16 %v307, %v306
    %v313 = vpack.c.bf16 %v309, %v308
    %v318 = vunpack.c.l.b16 %v310
    %v319 = vunpack.c.h.b16 %v310
    %v320 = vunpack.c.l.b16 %v311
    %v321 = vunpack.c.h.b16 %v311
    %v322 = vunpack.c.l.b16 %v312
    %v323 = vunpack.c.h.b16 %v312
    %v324 = vunpack.c.l.b16 %v313
    %v325 = vunpack.c.h.b16 %v313
    %v326 = vpack.c.b16 %v318, %v318
    %v327 = vpack.c.b16 %v319, %v319
    %v328 = vpack.c.b16 %v320, %v320
    %v329 = vpack.c.b16 %v321, %v321
    %v330 = vpack.c.b16 %v322, %v322
    %v331 = vpack.c.b16 %v323, %v323
    %v332 = vpack.c.b16 %v324, %v324
    %v333 = vpack.c.b16 %v325, %v325
    %342 = vst [vmem:[%s3] sm:$0xf] %v326
    %343 = vst [vmem:[%s3 + $0x4] sm:$0xf] %v327
    %344 = vst [vmem:[%s3 + $0x8] sm:$0xf] %v328
    %345 = vst [vmem:[%s3 + $0xc] sm:$0xf] %v329
    %346 = vst [vmem:[%s3 + $0x10] sm:$0xf] %v330
    %347 = vst [vmem:[%s3 + $0x14] sm:$0xf] %v331
    %348 = vst [vmem:[%s3 + $0x18] sm:$0xf] %v332
    %349 = vst [vmem:[%s3 + $0x1c] sm:$0xf] %v333
  $region21: #{model_forward.24} parent=0 // pred_fallthru
    _
  // Predicated region
  $region22: #{model_forward.24} parent=0 // pred_check
    _
  $region23: #{model_forward.24} parent=0 // pred_check_branch
    %351 = sbr.rel (0) target = $region25
  $region24: #{model_forward.24} parent=0 // pred_region
    _
  $region25: #{model_forward.24} parent=0 // pred_fallthru
    _
  // Predicated region
  $region26: #{model_forward.24} parent=0 // pred_check
    _
  $region27: #{model_forward.24} parent=0 // pred_check_branch
    %353 = sbr.rel (0) target = $region29
  $region28: #{model_forward.24} parent=0 // pred_region
    _
  $region29: #{model_forward.24} parent=0 // pred_fallthru
    _

// kernel: model_forward.27
$region0: #{model_forward.27}
  #allocation0 [shape = 'u32[]', space=smem, size = 0x4, offset = 0x4, fixed_abs, tag = 'smem constant byte address 0x4 - core index']
  #allocation1 [shape = 'u32[144,128]{1,0:T(1,128)}', space=vmem, size = 0x12000, scoped, tag = 'internal scratch']
  #allocation2 [shape = 'f32[32,128]{1,0:T(8,128)}', space=vmem, size = 0x4000, scoped, tag = 'scratch operand']
  %s0 = inlined_call_operand.vmem [shape: bf16[32,128], index: 0, kind: input, shape index: {}]
  %s1 = inlined_call_operand.vmem [shape: bf16[128,128], index: 1, kind: input, shape index: {}]
  %s2 = inlined_call_operand.vmem [shape: f32[1,128], index: 2, kind: input, shape index: {}]
  %s3 = inlined_call_operand.vmem [shape: bf16[32,128], index: 3, kind: output, shape index: {}]
  %s4 = sld [smem:[#allocation0]]
  $region30: #{model_forward.27} parent=0
    _
  %s6 = ssub.s32 1, %s4
  %s7 = scalar_select 0, %s6, %s4
  // Predicated region
  $region2: #{model_forward.27} parent=0 // pred_check
    _
  $region3: #{model_forward.27} parent=0 // pred_check_branch
    %9 = sbr.rel (0) target = $region5
  $region4: #{model_forward.27} parent=0 // pred_region
    _
  $region5: #{model_forward.27} parent=0 // pred_fallthru
    _
  // Predicated region
  $region6: #{model_forward.27} parent=0 // pred_check
    _
  $region7: #{model_forward.27} parent=0 // pred_check_branch
    %11 = sbr.rel (0) target = $region9
  $region8: #{model_forward.27} parent=0 // pred_region
    _
  $region9: #{model_forward.27} parent=0 // pred_fallthru
    _
  // Predicated region
  $region10: #{model_forward.27} parent=0 // pred_check
    _
  $region11: #{model_forward.27} parent=0 // pred_check_branch
    %13 = sbr.rel (0) target = $region13
  $region12: #{model_forward.27} parent=0 // pred_region
    _
  $region13: #{model_forward.27} parent=0 // pred_fallthru
    _
  %p15 = scmp.eq.s32.totalorder 0, 0
  // Predicated region
  $region14: #{model_forward.27} parent=0 // pred_check
    %p16 = pneg %p15
  $region15: #{model_forward.27} parent=0 // pred_check_branch
    %18 = sbr.rel (%p16) target = $region17
  $region16: #{model_forward.27} parent=0 // pred_region
    %19 = vst [vmem:[#allocation2] sm:$0xff] 0.0
    %20 = vst [vmem:[#allocation2 + $0x8] sm:$0xff] 0.0
    %21 = vst [vmem:[#allocation2 + $0x10] sm:$0xff] 0.0
    %22 = vst [vmem:[#allocation2 + $0x18] sm:$0xff] 0.0
  $region17: #{model_forward.27} parent=0 // pred_fallthru
    _
  %v23 = vld [vmem:[#allocation2] sm:$0xff]
  %v24 = vld [vmem:[#allocation2 + $0x8] sm:$0xff]
  %v25 = vld [vmem:[#allocation2 + $0x10] sm:$0xff]
  %v26 = vld [vmem:[#allocation2 + $0x18] sm:$0xff]
  %v27 = vld [vmem:[%s0] sm:$0xf]
  %v28 = vld [vmem:[%s0 + $0x4] sm:$0xf]
  %v29 = vld [vmem:[%s0 + $0x8] sm:$0xf]
  %v30 = vld [vmem:[%s0 + $0xc] sm:$0xf]
  %v31 = vld [vmem:[%s1] sm:$0xf]
  %v32 = vld [vmem:[%s1 + $0x4] sm:$0xf]
  %v33 = vld [vmem:[%s1 + $0x8] sm:$0xf]
  %v34 = vld [vmem:[%s1 + $0xc] sm:$0xf]
  %v35 = vld [vmem:[%s1 + $0x10] sm:$0xf]
  %v36 = vld [vmem:[%s1 + $0x14] sm:$0xf]
  %v37 = vld [vmem:[%s1 + $0x18] sm:$0xf]
  %v38 = vld [vmem:[%s1 + $0x1c] sm:$0xf]
  %v39 = vld [vmem:[%s1 + $0x20] sm:$0xf]
  %v40 = vld [vmem:[%s1 + $0x24] sm:$0xf]
  %v41 = vld [vmem:[%s1 + $0x28] sm:$0xf]
  %v42 = vld [vmem:[%s1 + $0x2c] sm:$0xf]
  %v43 = vld [vmem:[%s1 + $0x30] sm:$0xf]
  %v44 = vld [vmem:[%s1 + $0x34] sm:$0xf]
  %v45 = vld [vmem:[%s1 + $0x38] sm:$0xf]
  %v46 = vld [vmem:[%s1 + $0x3c] sm:$0xf]
  %v51 = vunpack.c.l.b16 %v27
  %v52 = vunpack.c.l.b16 %v28
  %v53 = vunpack.c.l.b16 %v29
  %v54 = vunpack.c.l.b16 %v30
  %v55 = vpack.c.b16 %v52, %v51
  %v56 = vpack.c.b16 %v54, %v53
  %v75 = vunpack.c.l.b16 %v31
  %v76 = vunpack.c.l.b16 %v32
  %v77 = vunpack.c.l.b16 %v33
  %v78 = vunpack.c.l.b16 %v34
  %v79 = vunpack.c.l.b16 %v35
  %v80 = vunpack.c.l.b16 %v36
  %v81 = vunpack.c.l.b16 %v37
  %v82 = vunpack.c.l.b16 %v38
  %v83 = vunpack.c.l.b16 %v39
  %v84 = vunpack.c.l.b16 %v40
  %v85 = vunpack.c.l.b16 %v41
  %v86 = vunpack.c.l.b16 %v42
  %v87 = vunpack.c.l.b16 %v43
  %v88 = vunpack.c.l.b16 %v44
  %v89 = vunpack.c.l.b16 %v45
  %v90 = vunpack.c.l.b16 %v46
  %v91 = vpack.c.b16 %v76, %v75
  %v92 = vpack.c.b16 %v78, %v77
  %v93 = vpack.c.b16 %v80, %v79
  %v94 = vpack.c.b16 %v82, %v81
  %v95 = vpack.c.b16 %v84, %v83
  %v96 = vpack.c.b16 %v86, %v85
  %v97 = vpack.c.b16 %v88, %v87
  %v98 = vpack.c.b16 %v90, %v89
  %107 = vmatprep.subr.bf16.mxu0 0
  %108 = vmatpush1.bf16.msra.mxu0 %v98
  %109 = vmatprep.subr.bf16.mxu0 0
  %110 = vmatpush1.bf16.msra.mxu0 %v97
  %111 = vmatprep.subr.bf16.mxu0 0
  %112 = vmatpush1.bf16.msra.mxu0 %v96
  %113 = vmatprep.subr.bf16.mxu0 0
  %114 = vmatpush1.bf16.msra.mxu0 %v95
  %115 = vmatprep.subr.bf16.mxu0 0
  %116 = vmatpush1.bf16.msra.mxu0 %v94
  %117 = vmatprep.subr.bf16.mxu0 0
  %118 = vmatpush1.bf16.msra.mxu0 %v93
  %119 = vmatprep.subr.bf16.mxu0 0
  %120 = vmatpush1.bf16.msra.mxu0 %v92
  %121 = vmatprep.subr.bf16.mxu0 0
  %122 = vmatpush1.bf16.msra.mxu0 %v91
  %123 = vmatprep.subr.bf16.mxu0 0
  %124 = vmatpush2.bf16.msra.mxu0 0
  %125 = vmatprep.subr.bf16.mxu0 0
  %126 = vmatpush2.bf16.msra.mxu0 0
  %127 = vmatprep.subr.bf16.mxu0 0
  %128 = vmatpush2.bf16.msra.mxu0 0
  %129 = vmatprep.subr.bf16.mxu0 0
  %130 = vmatpush2.bf16.msra.mxu0 0
  %131 = vmatprep.subr.bf16.mxu0 0
  %132 = vmatpush2.bf16.msra.mxu0 0
  %133 = vmatprep.subr.bf16.mxu0 0
  %134 = vmatpush2.bf16.msra.mxu0 0
  %135 = vmatprep.subr.bf16.mxu0 0
  %136 = vmatpush2.bf16.msra.mxu0 0
  %137 = vmatprep.subr.bf16.mxu0 0
  %138 = vmatpush2.bf16.msra.mxu0 0
  %139 = vmatprep.mubr.bf16.mxu0 0
  %140 = vmatmul.mubr.bf16.gmra.mxu0 %v55
  %v141 = vpop.f32.mrf.mxu0
  %v142 = vadd.f32 0.0, %v141
  %v143 = vpop.f32.mrf.mxu0
  %v144 = vpop.f32.mrf.mxu0
  %v145 = vadd.f32 0.0, %v144
  %v146 = vpop.f32.mrf.mxu0
  %147 = vmatprep.mubr.bf16.mxu0 0
  %148 = vmatmul.mubr.bf16.gmra.mxu0 %v56
  %v149 = vpop.f32.mrf.mxu0
  %v150 = vadd.f32 0.0, %v149
  %v151 = vpop.f32.mrf.mxu0
  %v152 = vpop.f32.mrf.mxu0
  %v153 = vadd.f32 0.0, %v152
  %v154 = vpop.f32.mrf.mxu0
  %155 = vdwg.mxu0
  %v156 = vadd.f32 %v23, %v142
  %v157 = vadd.f32 %v24, %v145
  %v158 = vadd.f32 %v25, %v150
  %v159 = vadd.f32 %v26, %v153
  %160 = vst [vmem:[#allocation2] sm:$0xff] %v156
  %161 = vst [vmem:[#allocation2 + $0x8] sm:$0xff] %v157
  %162 = vst [vmem:[#allocation2 + $0x10] sm:$0xff] %v158
  %163 = vst [vmem:[#allocation2 + $0x18] sm:$0xff] %v159
  // Predicated region
  $region18: #{model_forward.27} parent=0 // pred_check
    %p164 = pneg %p15
  $region19: #{model_forward.27} parent=0 // pred_check_branch
    %166 = sbr.rel (%p164) target = $region21
  $region20: #{model_forward.27} parent=0 // pred_region
    %v167 = vld [vmem:[#allocation2] sm:$0xff]
    %v168 = vld [vmem:[#allocation2 + $0x8] sm:$0xff]
    %v169 = vld [vmem:[#allocation2 + $0x10] sm:$0xff]
    %v170 = vld [vmem:[#allocation2 + $0x18] sm:$0xff]
    %v171 = vld [vmem:[%s2] sm:$0x1]
    %v173 = vlaneseq
    %v174 = vshrl.u32 %v173, 7
    %v175 = vsub.s32 0, %v174
    %v176 = vrot.slane %v171, %v175
    %v178 = vadd.f32 %v167, %v176
    %v179 = vadd.f32 %v168, %v176
    %v180 = vadd.f32 %v169, %v176
    %v181 = vadd.f32 %v170, %v176
    %v182 = vpack.c.bf16 %v179, %v178
    %v183 = vpack.c.bf16 %v181, %v180
    %v186 = vunpack.c.l.b16 %v182
    %v187 = vunpack.c.h.b16 %v182
    %v188 = vunpack.c.l.b16 %v183
    %v189 = vunpack.c.h.b16 %v183
    %v190 = vpack.c.b16 %v186, %v186
    %v191 = vpack.c.b16 %v187, %v187
    %v192 = vpack.c.b16 %v188, %v188
    %v193 = vpack.c.b16 %v189, %v189
    %198 = vst [vmem:[%s3] sm:$0xf] %v190
    %199 = vst [vmem:[%s3 + $0x4] sm:$0xf] %v191
    %200 = vst [vmem:[%s3 + $0x8] sm:$0xf] %v192
    %201 = vst [vmem:[%s3 + $0xc] sm:$0xf] %v193
  $region21: #{model_forward.27} parent=0 // pred_fallthru
    _
  // Predicated region
  $region22: #{model_forward.27} parent=0 // pred_check
    _
  $region23: #{model_forward.27} parent=0 // pred_check_branch
    %203 = sbr.rel (0) target = $region25
  $region24: #{model_forward.27} parent=0 // pred_region
    _
  $region25: #{model_forward.27} parent=0 // pred_fallthru
    _
  // Predicated region
  $region26: #{model_forward.27} parent=0 // pred_check
    _
  $region27: #{model_forward.27} parent=0 // pred_check_branch
    %205 = sbr.rel (0) target = $region29
  $region28: #{model_forward.27} parent=0 // pred_region
    _
  $region29: #{model_forward.27} parent=0 // pred_fallthru
    _

// kernel: model_forward.28
$region0: #{model_forward.28}
  #allocation0 [shape = 'u32[]', space=smem, size = 0x4, offset = 0x4, fixed_abs, tag = 'smem constant byte address 0x4 - core index']
  #allocation1 [shape = 'u32[144,128]{1,0:T(1,128)}', space=vmem, size = 0x12000, scoped, tag = 'internal scratch']
  #allocation2 [shape = 'f32[16,1]{1,0:T(8,128)}', space=vmem, size = 0x2000, scoped, tag = 'scratch operand']
  #allocation3 [shape = 'f32[16,1]{1,0:T(8,128)}', space=vmem, size = 0x2000, scoped, tag = 'scratch operand']
  #allocation4 [shape = 'f32[16,16]{1,0:T(8,128)}', space=vmem, size = 0x2000, scoped, tag = 'scratch operand']
  %s0 = inlined_call_operand.vmem [shape: bf16[4,16,16], index: 0, kind: input, shape index: {}]
  %s1 = inlined_call_operand.vmem [shape: bf16[4,16,16], index: 1, kind: input, shape index: {}]
  %s2 = inlined_call_operand.vmem [shape: bf16[4,16,16], index: 2, kind: input, shape index: {}]
  %s3 = inlined_call_operand.vmem [shape: bf16[4,16,16], index: 3, kind: output, shape index: {}]
  %s4 = sld [smem:[#allocation0]]
  $region53: #{model_forward.28} parent=0
    _
  %s6 = ssub.s32 1, %s4
  %s7 = scalar_select 0, %s6, %s4
  loop: start=0, step=1, limit=6
  $region2: #{model_forward.28} parent=0 // loop_pre_header
    _
  $region3: #{model_forward.28} parent=0 // loop_header
    %s9 = sphi 0, %s13
    %p10 = scmp.ge.s32.totalorder %s9, 6
    %s16 = sphi 0, %s35
    %s17 = sphi 0, %s31
    %s18 = sphi 0, %s27
    %s19 = sphi 0, %s16
    %s20 = sphi 0, %s17
    %s21 = sphi 0, %s18
    %s22 = sphi 0, %s19
    %s23 = sphi 0, %s20
    %s24 = sphi 0, %s21
    %s40 = sphi 0, %s42
    %s43 = sphi 0, %s40
    %s44 = sphi 0, %s43
    %s60 = sphi 0, %s44
    %s68 = sphi 0, %s70
    %s71 = sphi 0, %s68
    %s72 = sphi 0, %s71
    %s88 = sphi 0, %s72
    %s96 = sphi 0, %s98
    %s99 = sphi 0, %s96
    %s100 = sphi 0, %s99
    %s116 = sphi 0, %s100
    %s124 = sphi 0, %s126
    %s127 = sphi 0, %s124
    %s128 = sphi 0, %s127
    %s144 = sphi 0, %s128
  $region4: #{model_forward.28} parent=0 // loop_header_branch
    %12 = sbr.rel (%p10) target = $region8
  $region5: #{model_forward.28} parent=0 // loop_body
    %s14 = ssub.s32 %s9, 1
    %s15 = ssub.s32 %s9, 2
    %s25 = sadd.s32 1, %s18
    %p26 = scmp.ge.s32.totalorder %s25, 1
    %s27 = scalar_select %p26, 0, %s25
    %s28 = sadd.s32 1, %s17
    %s29 = scalar_select %p26, %s28, %s17
    %p30 = scmp.ge.s32.totalorder %s29, 1
    %s31 = scalar_select %p30, 0, %s29
    %s32 = sadd.s32 1, %s16
    %s33 = scalar_select %p30, %s32, %s16
    %p34 = scmp.ge.s32.totalorder %s33, 4
    %s35 = scalar_select %p34, 0, %s33
    %s36 = ssub.s32 %s16, %s35
    %s37 = ssub.s32 %s17, %s31
    %s38 = sor.u32 %s36, %s37
    %p39 = scmp.eq.s32.totalorder %s38, 0
    %s41 = sadd.s32 %s40, 1
    %s42 = scalar_select %p39, %s40, %s41
    %p45 = pneg %p39
    %p46 = scmp.eq.s32.totalorder %s9, 3
    %p47 = por %p45, %p46
    %p48 = scmp.ne.s32.totalorder %s40, %s43
    %p49 = scmp.eq.s32.totalorder %s9, 0
    %p50 = por %p48, %p49
    %p51 = scmp.ne.s32.totalorder %s40, %s43
    %p52 = scmp.eq.s32.totalorder %s14, 3
    %p53 = por %p51, %p52
    %p54 = scmp.ne.s32.totalorder %s43, %s44
    %p55 = scmp.eq.s32.totalorder %s14, 0
    %p56 = por %p54, %p55
    %p57 = scmp.ne.s32.totalorder %s43, %s44
    %p58 = scmp.eq.s32.totalorder %s15, 3
    %p59 = por %p57, %p58
    %p61 = scmp.ne.s32.totalorder %s44, %s60
    %p62 = scmp.eq.s32.totalorder %s15, 0
    %p63 = por %p61, %p62
    %s64 = ssub.s32 %s16, %s35
    %s65 = ssub.s32 %s18, %s27
    %s66 = sor.u32 %s64, %s65
    %p67 = scmp.eq.s32.totalorder %s66, 0
    %s69 = sadd.s32 %s68, 1
    %s70 = scalar_select %p67, %s68, %s69
    %p73 = pneg %p67
    %p74 = scmp.eq.s32.totalorder %s9, 3
    %p75 = por %p73, %p74
    %p76 = scmp.ne.s32.totalorder %s68, %s71
    %p77 = scmp.eq.s32.totalorder %s9, 0
    %p78 = por %p76, %p77
    %p79 = scmp.ne.s32.totalorder %s68, %s71
    %p80 = scmp.eq.s32.totalorder %s14, 3
    %p81 = por %p79, %p80
    %p82 = scmp.ne.s32.totalorder %s71, %s72
    %p83 = scmp.eq.s32.totalorder %s14, 0
    %p84 = por %p82, %p83
    %p85 = scmp.ne.s32.totalorder %s71, %s72
    %p86 = scmp.eq.s32.totalorder %s15, 3
    %p87 = por %p85, %p86
    %p89 = scmp.ne.s32.totalorder %s72, %s88
    %p90 = scmp.eq.s32.totalorder %s15, 0
    %p91 = por %p89, %p90
    %s92 = ssub.s32 %s16, %s35
    %s93 = ssub.s32 %s18, %s27
    %s94 = sor.u32 %s92, %s93
    %p95 = scmp.eq.s32.totalorder %s94, 0
    %s97 = sadd.s32 %s96, 1
    %s98 = scalar_select %p95, %s96, %s97
    %p101 = pneg %p95
    %p102 = scmp.eq.s32.totalorder %s9, 3
    %p103 = por %p101, %p102
    %p104 = scmp.ne.s32.totalorder %s96, %s99
    %p105 = scmp.eq.s32.totalorder %s9, 0
    %p106 = por %p104, %p105
    %p107 = scmp.ne.s32.totalorder %s96, %s99
    %p108 = scmp.eq.s32.totalorder %s14, 3
    %p109 = por %p107, %p108
    %p110 = scmp.ne.s32.totalorder %s99, %s100
    %p111 = scmp.eq.s32.totalorder %s14, 0
    %p112 = por %p110, %p111
    %p113 = scmp.ne.s32.totalorder %s99, %s100
    %p114 = scmp.eq.s32.totalorder %s15, 3
    %p115 = por %p113, %p114
    %p117 = scmp.ne.s32.totalorder %s100, %s116
    %p118 = scmp.eq.s32.totalorder %s15, 0
    %p119 = por %p117, %p118
    %s120 = ssub.s32 %s16, %s35
    %s121 = ssub.s32 %s17, %s31
    %s122 = sor.u32 %s120, %s121
    %p123 = scmp.eq.s32.totalorder %s122, 0
    %s125 = sadd.s32 %s124, 1
    %s126 = scalar_select %p123, %s124, %s125
    %p129 = pneg %p123
    %p130 = scmp.eq.s32.totalorder %s9, 3
    %p131 = por %p129, %p130
    %p132 = scmp.ne.s32.totalorder %s124, %s127
    %p133 = scmp.eq.s32.totalorder %s9, 0
    %p134 = por %p132, %p133
    %p135 = scmp.ne.s32.totalorder %s124, %s127
    %p136 = scmp.eq.s32.totalorder %s14, 3
    %p137 = por %p135, %p136
    %p138 = scmp.ne.s32.totalorder %s127, %s128
    %p139 = scmp.eq.s32.totalorder %s14, 0
    %p140 = por %p138, %p139
    %p141 = scmp.ne.s32.totalorder %s127, %s128
    %p142 = scmp.eq.s32.totalorder %s15, 3
    %p143 = por %p141, %p142
    %p145 = scmp.ne.s32.totalorder %s128, %s144
    %p146 = scmp.eq.s32.totalorder %s15, 0
    %p147 = por %p145, %p146
    %p148 = scmp.le.s32.totalorder 1, %s9
    %p149 = scmp.lt.s32.totalorder %s9, 5
    %p150 = pnand %p148, %p149
    %p151 = pneg %p150
    // Predicated region
    $region9: #{model_forward.28} parent=5 // pred_check
      _
    $region10: #{model_forward.28} parent=5 // pred_check_branch
      %153 = sbr.rel (%p150) target = $region12
    $region11: #{model_forward.28} parent=5 // pred_region
      %s154 = ssub.s32 %s9, 1
    $region12: #{model_forward.28} parent=5 // pred_fallthru
      _
    %p155 = scmp.lt.s32.totalorder %s9, 4
    // Predicated region
    $region13: #{model_forward.28} parent=5 // pred_check
      %p156 = pneg %p155
    $region14: #{model_forward.28} parent=5 // pred_check_branch
      %158 = sbr.rel (%p156) target = $region16
    $region15: #{model_forward.28} parent=5 // pred_region
      // Predicated region
      $region17: #{model_forward.28} parent=15 // pred_check
        %p159 = pneg %p50
      $region18: #{model_forward.28} parent=15 // pred_check_branch
        %161 = sbr.rel (%p159) target = $region20
      $region19: #{model_forward.28} parent=15 // pred_region
        %s162 = smul.u32 2, %s17
        %p163 = scmp.lt.s32.totalorder %s16, 3
        %s164 = scalar_select %p163, %s16, 3
        %p165 = scmp.lt.s32.totalorder %s162, 1
        %s166 = scalar_select %p165, %s162, 1
        %s167 = smul.addr %s164, 2
        %s168 = sadd.s32 %s166, %s167
        %s169 = smul.addr %s168, 4
        %s170 = scalar_lea.vmem %s0, %s169
        %s171 = smul.u32 2, %s17
      $region20: #{model_forward.28} parent=15 // pred_fallthru
        _
      // Predicated region
      $region21: #{model_forward.28} parent=15 // pred_check
        %p172 = pneg %p78
      $region22: #{model_forward.28} parent=15 // pred_check_branch
        %174 = sbr.rel (%p172) target = $region24
      $region23: #{model_forward.28} parent=15 // pred_region
        %s175 = smul.u32 2, %s18
        %p176 = scmp.lt.s32.totalorder %s16, 3
        %s177 = scalar_select %p176, %s16, 3
        %p178 = scmp.lt.s32.totalorder %s175, 1
        %s179 = scalar_select %p178, %s175, 1
        %s180 = smul.addr %s177, 2
        %s181 = sadd.s32 %s179, %s180
        %s182 = smul.addr %s181, 4
        %s183 = scalar_lea.vmem %s1, %s182
        %s184 = smul.u32 2, %s18
      $region24: #{model_forward.28} parent=15 // pred_fallthru
        _
      // Predicated region
      $region25: #{model_forward.28} parent=15 // pred_check
        %p185 = pneg %p106
      $region26: #{model_forward.28} parent=15 // pred_check_branch
        %187 = sbr.rel (%p185) target = $region28
      $region27: #{model_forward.28} parent=15 // pred_region
        %s188 = smul.u32 2, %s18
        %p189 = scmp.lt.s32.totalorder %s16, 3
        %s190 = scalar_select %p189, %s16, 3
        %p191 = scmp.lt.s32.totalorder %s188, 1
        %s192 = scalar_select %p191, %s188, 1
        %s193 = smul.addr %s190, 2
        %s194 = sadd.s32 %s192, %s193
        %s195 = smul.addr %s194, 4
        %s196 = scalar_lea.vmem %s2, %s195
        %s197 = smul.u32 2, %s18
      $region28: #{model_forward.28} parent=15 // pred_fallthru
        _
    $region16: #{model_forward.28} parent=5 // pred_fallthru
      _
    %p198 = scmp.le.s32.totalorder 1, %s9
    %p199 = scmp.lt.s32.totalorder %s9, 5
    %p200 = pnand %p198, %p199
    %p201 = pneg %p200
    // Predicated region
    $region29: #{model_forward.28} parent=5 // pred_check
      _
    $region30: #{model_forward.28} parent=5 // pred_check_branch
      %203 = sbr.rel (%p200) target = $region32
    $region31: #{model_forward.28} parent=5 // pred_region
      %s204 = ssub.s32 %s9, 1
      %s205 = smul.u32 2, %s20
      %p206 = scmp.lt.s32.totalorder %s19, 3
      %s207 = scalar_select %p206, %s19, 3
      %p208 = scmp.lt.s32.totalorder %s205, 1
      %s209 = scalar_select %p208, %s205, 1
      %s210 = smul.addr %s207, 2
      %s211 = sadd.s32 %s209, %s210
      %s212 = smul.addr %s211, 4
      %s213 = scalar_lea.vmem %s0, %s212
      %p214 = pneg %p56
      %p215 = pneg %p53
      %s216 = smul.u32 2, %s21
      %p217 = scmp.lt.s32.totalorder %s19, 3
      %s218 = scalar_select %p217, %s19, 3
      %p219 = scmp.lt.s32.totalorder %s216, 1
      %s220 = scalar_select %p219, %s216, 1
      %s221 = smul.addr %s218, 2
      %s222 = sadd.s32 %s220, %s221
      %s223 = smul.addr %s222, 4
      %s224 = scalar_lea.vmem %s1, %s223
      %p225 = pneg %p84
      %p226 = pneg %p81
      %s227 = smul.u32 2, %s21
      %p228 = scmp.lt.s32.totalorder %s19, 3
      %s229 = scalar_select %p228, %s19, 3
      %p230 = scmp.lt.s32.totalorder %s227, 1
      %s231 = scalar_select %p230, %s227, 1
      %s232 = smul.addr %s229, 2
      %s233 = sadd.s32 %s231, %s232
      %s234 = smul.addr %s233, 4
      %s235 = scalar_lea.vmem %s2, %s234
      %p236 = pneg %p112
      %p237 = pneg %p109
      %p238 = pneg %p140
      %p239 = pneg %p137
      %s240 = smul.u32 2, %s20
      %p241 = scmp.lt.s32.totalorder %s19, 3
      %s242 = scalar_select %p241, %s19, 3
      %p243 = scmp.lt.s32.totalorder %s240, 1
      %s244 = scalar_select %p243, %s240, 1
      %s245 = smul.addr %s242, 2
      %s246 = sadd.s32 %s244, %s245
      %s247 = smul.addr %s246, 4
      %s248 = scalar_lea.vmem %s3, %s247
      %s249 = smul.u32 2, %s20
      %p250 = scmp.lt.s32.totalorder %s19, 3
      %s251 = scalar_select %p250, %s19, 3
      %p252 = scmp.lt.s32.totalorder %s249, 1
      %s253 = scalar_select %p252, %s249, 1
      %s254 = smul.addr %s251, 2
      %s255 = sadd.s32 %s253, %s254
      %s256 = smul.addr %s255, 4
      %s257 = scalar_lea.vmem %s0, %s256
      %s258 = smul.u32 2, %s20
      %s259 = smul.u32 2, %s21
      %p260 = scmp.lt.s32.totalorder %s19, 3
      %s261 = scalar_select %p260, %s19, 3
      %p262 = scmp.lt.s32.totalorder %s259, 1
      %s263 = scalar_select %p262, %s259, 1
      %s264 = smul.addr %s261, 2
      %s265 = sadd.s32 %s263, %s264
      %s266 = smul.addr %s265, 4
      %s267 = scalar_lea.vmem %s1, %s266
      %s268 = smul.u32 2, %s21
      %s269 = smul.u32 2, %s21
      %p270 = scmp.lt.s32.totalorder %s19, 3
      %s271 = scalar_select %p270, %s19, 3
      %p272 = scmp.lt.s32.totalorder %s269, 1
      %s273 = scalar_select %p272, %s269, 1
      %s274 = smul.addr %s271, 2
      %s275 = sadd.s32 %s273, %s274
      %s276 = smul.addr %s275, 4
      %s277 = scalar_lea.vmem %s2, %s276
      %s278 = smul.u32 2, %s21
      %s279 = smul.u32 2, %s20
      %p280 = scmp.lt.s32.totalorder %s19, 3
      %s281 = scalar_select %p280, %s19, 3
      %p282 = scmp.lt.s32.totalorder %s279, 1
      %s283 = scalar_select %p282, %s279, 1
      %s284 = smul.addr %s281, 2
      %s285 = sadd.s32 %s283, %s284
      %s286 = smul.addr %s285, 4
      %s287 = scalar_lea.vmem %s3, %s286
      %s288 = smul.u32 2, %s20
      %p290 = scmp.eq.s32.totalorder %s21, 0
      // Predicated region
      $region33: #{model_forward.28} parent=31 // pred_check
        %p291 = pneg %p290
      $region34: #{model_forward.28} parent=31 // pred_check_branch
        %293 = sbr.rel (%p291) target = $region36
      $region35: #{model_forward.28} parent=31 // pred_region
        %vm294 = vcmask 7168
        %295 = vst.msk [vmem:[#allocation2] sm:$0xff] %vm294, -2.3819763e+38
        %296 = vst.msk [vmem:[#allocation2 + $0x8] sm:$0xff] %vm294, -2.3819763e+38
        %297 = vst.msk [vmem:[#allocation3] sm:$0xff] %vm294, 0.0
        %298 = vst.msk [vmem:[#allocation3 + $0x8] sm:$0xff] %vm294, 0.0
        %vm299 = vcmask 130048
        %300 = vst.msk [vmem:[#allocation4] sm:$0xff] %vm299, 0.0
        %301 = vst.msk [vmem:[#allocation4 + $0x8] sm:$0xff] %vm299, 0.0
      $region36: #{model_forward.28} parent=31 // pred_fallthru
        _
      %v302 = vld [vmem:[%s257] sm:$0xf]
      %v303 = vld [vmem:[%s257 + $0x4] sm:$0xf]
      %v304 = vld [vmem:[%s267] sm:$0xf]
      %v305 = vld [vmem:[%s267 + $0x4] sm:$0xf]
      %v306 = vld [vmem:[%s277] sm:$0xf]
      %v307 = vld [vmem:[%s277 + $0x4] sm:$0xf]
      %v310 = vunpack.c.l.b16 %v302
      %v311 = vunpack.c.l.b16 %v303
      %v312 = vpack.c.b16 %v311, %v310
      %v315 = vunpack.c.l.b16 %v304
      %v316 = vunpack.c.l.b16 %v305
      %v317 = vpack.c.b16 %v316, %v315
      %vm318 = vcmask 130048
      %v320 = vsel %vm318, %v312, 0
      %v323 = vsel %vm318, %v317, 0
      %325 = vmatprep.subr.bf16.mxu0 0
      %326 = vmatpush1.bf16.xpose.msra.mxu0 0
      %327 = vmatprep.subr.bf16.mxu0 0
      %328 = vmatpush1.bf16.xpose.msra.mxu0 0
      %329 = vmatprep.subr.bf16.mxu0 0
      %330 = vmatpush1.bf16.xpose.msra.mxu0 0
      %331 = vmatprep.subr.bf16.mxu0 0
      %332 = vmatpush1.bf16.xpose.msra.mxu0 0
      %333 = vmatprep.subr.bf16.mxu0 0
      %334 = vmatpush1.bf16.xpose.msra.mxu0 0
      %335 = vmatprep.subr.bf16.mxu0 0
      %336 = vmatpush1.bf16.xpose.msra.mxu0 0
      %337 = vmatprep.subr.bf16.mxu0 0
      %338 = vmatpush1.bf16.xpose.msra.mxu0 0
      %339 = vmatprep.subr.bf16.mxu0 0
      %340 = vmatpush1.bf16.xpose.msra.mxu0 %v323
      %341 = vmatprep.subr.bf16.mxu0 0
      %342 = vmatpush2.bf16.xpose.msra.mxu0 0
      %343 = vmatprep.subr.bf16.mxu0 0
      %344 = vmatpush2.bf16.xpose.msra.mxu0 0
      %345 = vmatprep.subr.bf16.mxu0 0
      %346 = vmatpush2.bf16.xpose.msra.mxu0 0
      %347 = vmatprep.subr.bf16.mxu0 0
      %348 = vmatpush2.bf16.xpose.msra.mxu0 0
      %349 = vmatprep.subr.bf16.mxu0 0
      %350 = vmatpush2.bf16.xpose.msra.mxu0 0
      %351 = vmatprep.subr.bf16.mxu0 0
      %352 = vmatpush2.bf16.xpose.msra.mxu0 0
      %353 = vmatprep.subr.bf16.mxu0 0
      %354 = vmatpush2.bf16.xpose.msra.mxu0 0
      %355 = vmatprep.subr.bf16.mxu0 0
      %356 = vmatpush2.bf16.xpose.msra.mxu0 0
      %357 = vmatprep.mubr.bf16.mxu0 0
      %358 = vmatmul.mubr.bf16.gmra.mxu0 %v320
      %v359 = vpop.f32.mrf.mxu0
      %v360 = vadd.f32 0.0, %v359
      %v361 = vpop.f32.mrf.mxu0
      %v362 = vpop.f32.mrf.mxu0
      %v363 = vadd.f32 0.0, %v362
      %v364 = vpop.f32.mrf.mxu0
      %365 = vdwg.mxu0
      %v366 = vld [vmem:[#allocation2] sm:$0xff]
      %v367 = vld [vmem:[#allocation2 + $0x8] sm:$0xff]
      %v368 = vsel %vm318, %v360, -inf
      %369 = vmax.xlane.f32.xlu0 %v368
      %v370 = vpop.xlane.xlu0 %369
      %v371 = vsel %vm318, %v363, -inf
      %372 = vmax.xlane.f32.xlu0 %v371
      %v373 = vpop.xlane.xlu0 %372
      %v374 = vmax.f32 %v366, %v370
      %v375 = vmax.f32 %v367, %v373
      %v376 = vsub.f32 %v366, %v374
      %v377 = vsub.f32 %v367, %v375
      %v378 = vmul.f32 %v376, 1.442695
      %v379 = vpow.pop %v378
      %v380 = vmul.f32 %v377, 1.442695
      %v381 = vpow.pop %v380
      %383 = vset.pattern.permute.xlu0 0
      %384 = vperm.xlu0 %383, %v374
      %v385 = vpop.permute.xlu0 %384
      %388 = vset.pattern.permute.xlu0 0
      %389 = vperm.xlu0 %388, %v375
      %v390 = vpop.permute.xlu0 %389
      %v392 = vsub.f32 %v360, %v385
      %v393 = vsub.f32 %v363, %v390
      %v394 = vpack.c.bf16 %v393, %v392
      %v396 = vmul.bf16 %v394, 1069105081
      %v397 = vpow.bf16.pop %v396
      %v398 = vld [vmem:[#allocation3] sm:$0xff]
      %v399 = vld [vmem:[#allocation3 + $0x8] sm:$0xff]
      %v400 = vmul.f32 %v379, %v398
      %v401 = vmul.f32 %v381, %v399
      %v402 = vunpack.c.l.bf16 %v397
      %v403 = vunpack.c.h.bf16 %v397
      %v404 = vsel %vm318, %v402, 0.0
      %405 = vadd.xlane.f32.xlu0 %v404
      %v406 = vpop.xlane.xlu0 %405
      %v407 = vsel %vm318, %v403, 0.0
      %408 = vadd.xlane.f32.xlu0 %v407
      %v409 = vpop.xlane.xlu0 %408
      %v410 = vadd.f32 %v400, %v406
      %v411 = vadd.f32 %v401, %v409
      %vm412 = vcmask 7168
      %413 = vst.msk [vmem:[#allocation3] sm:$0xff] %vm412, %v410
      %414 = vst.msk [vmem:[#allocation3 + $0x8] sm:$0xff] %vm412, %v411
      %v415 = vld [vmem:[#allocation4] sm:$0xff]
      %v416 = vld [vmem:[#allocation4 + $0x8] sm:$0xff]
      %418 = vset.pattern.permute.xlu0 0
      %419 = vperm.xlu0 %418, %v379
      %v420 = vpop.permute.xlu0 %419
      %423 = vset.pattern.permute.xlu0 0
      %424 = vperm.xlu0 %423, %v381
      %v425 = vpop.permute.xlu0 %424
      %v427 = vmul.f32 %v420, %v415
      %v428 = vmul.f32 %v425, %v416
      %v431 = vunpack.c.l.b16 %v306
      %v432 = vunpack.c.l.b16 %v307
      %v433 = vpack.c.b16 %v432, %v431
      %v436 = vsel %vm318, %v397, 0
      %438 = vmatprep.subr.bf16.mxu0 0
      %439 = vmatpush1.bf16.msra.mxu0 0
      %440 = vmatprep.subr.bf16.mxu0 0
      %441 = vmatpush1.bf16.msra.mxu0 0
      %442 = vmatprep.subr.bf16.mxu0 0
      %443 = vmatpush1.bf16.msra.mxu0 0
      %444 = vmatprep.subr.bf16.mxu0 0
      %445 = vmatpush1.bf16.msra.mxu0 0
      %446 = vmatprep.subr.bf16.mxu0 0
      %447 = vmatpush1.bf16.msra.mxu0 0
      %448 = vmatprep.subr.bf16.mxu0 0
      %449 = vmatpush1.bf16.msra.mxu0 0
      %450 = vmatprep.subr.bf16.mxu0 0
      %451 = vmatpush1.bf16.msra.mxu0 0
      %452 = vmatprep.subr.bf16.mxu0 0
      %453 = vmatpush1.bf16.msra.mxu0 %v433
      %454 = vmatprep.subr.bf16.mxu0 0
      %455 = vmatpush2.bf16.msra.mxu0 0
      %456 = vmatprep.subr.bf16.mxu0 0
      %457 = vmatpush2.bf16.msra.mxu0 0
      %458 = vmatprep.subr.bf16.mxu0 0
      %459 = vmatpush2.bf16.msra.mxu0 0
      %460 = vmatprep.subr.bf16.mxu0 0
      %461 = vmatpush2.bf16.msra.mxu0 0
      %462 = vmatprep.subr.bf16.mxu0 0
      %463 = vmatpush2.bf16.msra.mxu0 0
      %464 = vmatprep.subr.bf16.mxu0 0
      %465 = vmatpush2.bf16.msra.mxu0 0
      %466 = vmatprep.subr.bf16.mxu0 0
      %467 = vmatpush2.bf16.msra.mxu0 0
      %468 = vmatprep.subr.bf16.mxu0 0
      %469 = vmatpush2.bf16.msra.mxu0 0
      %470 = vmatprep.mubr.bf16.mxu0 0
      %471 = vmatmul.mubr.bf16.gmra.mxu0 %v436
      %v472 = vpop.f32.mrf.mxu0
      %v473 = vadd.f32 0.0, %v472
      %v474 = vpop.f32.mrf.mxu0
      %v475 = vpop.f32.mrf.mxu0
      %v476 = vadd.f32 0.0, %v475
      %v477 = vpop.f32.mrf.mxu0
      %478 = vdwg.mxu0
      %v479 = vadd.f32 %v427, %v473
      %v480 = vadd.f32 %v428, %v476
      %481 = vst.msk [vmem:[#allocation4] sm:$0xff] %vm318, %v479
      %482 = vst.msk [vmem:[#allocation4 + $0x8] sm:$0xff] %vm318, %v480
      %483 = vst.msk [vmem:[#allocation2] sm:$0xff] %vm412, %v374
      %484 = vst.msk [vmem:[#allocation2 + $0x8] sm:$0xff] %vm412, %v375
      // Predicated region
      $region37: #{model_forward.28} parent=31 // pred_check
        %p485 = pneg %p290
      $region38: #{model_forward.28} parent=31 // pred_check_branch
        %487 = sbr.rel (%p485) target = $region40
      $region39: #{model_forward.28} parent=31 // pred_region
        %v488 = vld [vmem:[#allocation3] sm:$0xff]
        %v489 = vld [vmem:[#allocation3 + $0x8] sm:$0xff]
        %v490 = vrcp.pop %v488
        %v491 = vrcp.pop %v489
        %v492 = vld [vmem:[#allocation4] sm:$0xff]
        %v493 = vld [vmem:[#allocation4 + $0x8] sm:$0xff]
        %495 = vset.pattern.permute.xlu0 0
        %496 = vperm.xlu0 %495, %v490
        %v497 = vpop.permute.xlu0 %496
        %500 = vset.pattern.permute.xlu0 0
        %501 = vperm.xlu0 %500, %v491
        %v502 = vpop.permute.xlu0 %501
        %v504 = vmul.f32 %v492, %v497
        %v505 = vmul.f32 %v493, %v502
        %v506 = vpack.c.bf16 %v505, %v504
        %v508 = vunpack.c.l.b16 %v506
        %v509 = vunpack.c.h.b16 %v506
        %v510 = vpack.c.b16 %v508, %v508
        %v511 = vpack.c.b16 %v509, %v509
        %vm514 = vcmask 125952
        %515 = vst.msk [vmem:[%s287] sm:$0xf] %vm514, %v510
        %516 = vst.msk [vmem:[%s287 + $0x4] sm:$0xf] %vm514, %v511
      $region40: #{model_forward.28} parent=31 // pred_fallthru
        _
      %s517 = smul.u32 2, %s20
      %p518 = scmp.lt.s32.totalorder %s19, 3
      %s519 = scalar_select %p518, %s19, 3
      %p520 = scmp.lt.s32.totalorder %s517, 1
      %s521 = scalar_select %p520, %s517, 1
      %s522 = smul.addr %s519, 2
      %s523 = sadd.s32 %s521, %s522
      %s524 = smul.addr %s523, 4
      %s525 = scalar_lea.vmem %s3, %s524
      // Predicated region
      $region41: #{model_forward.28} parent=31 // pred_check
        %p526 = pneg %p137
      $region42: #{model_forward.28} parent=31 // pred_check_branch
        %528 = sbr.rel (%p526) target = $region44
      $region43: #{model_forward.28} parent=31 // pred_region
        %s529 = smul.u32 2, %s20
      $region44: #{model_forward.28} parent=31 // pred_fallthru
        _
    $region32: #{model_forward.28} parent=5 // pred_fallthru
      _
    %p530 = scmp.le.s32.totalorder 2, %s9
    // Predicated region
    $region45: #{model_forward.28} parent=5 // pred_check
      %p531 = pneg %p530
    $region46: #{model_forward.28} parent=5 // pred_check_branch
      %533 = sbr.rel (%p531) target = $region48
    $region47: #{model_forward.28} parent=5 // pred_region
      %s534 = ssub.s32 %s9, 2
      // Predicated region
      $region49: #{model_forward.28} parent=47 // pred_check
        %p535 = pneg %p143
      $region50: #{model_forward.28} parent=47 // pred_check_branch
        %537 = sbr.rel (%p535) target = $region52
      $region51: #{model_forward.28} parent=47 // pred_region
        %s538 = smul.u32 2, %s23
        %p539 = scmp.lt.s32.totalorder %s22, 3
        %s540 = scalar_select %p539, %s22, 3
        %p541 = scmp.lt.s32.totalorder %s538, 1
        %s542 = scalar_select %p541, %s538, 1
        %s543 = smul.addr %s540, 2
        %s544 = sadd.s32 %s542, %s543
        %s545 = smul.addr %s544, 4
        %s546 = scalar_lea.vmem %s3, %s545
      $region52: #{model_forward.28} parent=47 // pred_fallthru
        _
    $region48: #{model_forward.28} parent=5 // pred_fallthru
      _
  $region6: #{model_forward.28} parent=0 // loop_footer
    %s13 = sadd.s32 1, %s9
  $region7: #{model_forward.28} parent=0 // loop_footer_branch
    %8 = sbr.rel target = $region3
  $region8: #{model_forward.28} parent=0 // loop_exit
    _

// kernel: model_forward.34
$region0: #{model_forward.34}
  #allocation0 [shape = 'u32[]', space=smem, size = 0x4, offset = 0x4, fixed_abs, tag = 'smem constant byte address 0x4 - core index']
  #allocation1 [shape = 'u32[144,128]{1,0:T(1,128)}', space=vmem, size = 0x12000, scoped, tag = 'internal scratch']
  %s0 = inlined_call_operand.vmem [shape: bf16[16,32], index: 0, kind: input, shape index: {}]
  %s1 = inlined_call_operand.vmem [shape: f32[1,32], index: 1, kind: input, shape index: {}]
  %s2 = inlined_call_operand.vmem [shape: f32[1,32], index: 2, kind: input, shape index: {}]
  %s3 = inlined_call_operand.vmem [shape: bf16[16,32], index: 3, kind: output, shape index: {}]
  %s4 = sld [smem:[#allocation0]]
  $region22: #{model_forward.34} parent=0
    _
  %s6 = ssub.s32 1, %s4
  %s7 = scalar_select 0, %s6, %s4
  // Predicated region
  $region2: #{model_forward.34} parent=0 // pred_check
    _
  $region3: #{model_forward.34} parent=0 // pred_check_branch
    %9 = sbr.rel (0) target = $region5
  $region4: #{model_forward.34} parent=0 // pred_region
    _
  $region5: #{model_forward.34} parent=0 // pred_fallthru
    _
  // Predicated region
  $region6: #{model_forward.34} parent=0 // pred_check
    _
  $region7: #{model_forward.34} parent=0 // pred_check_branch
    %11 = sbr.rel (0) target = $region9
  $region8: #{model_forward.34} parent=0 // pred_region
    _
  $region9: #{model_forward.34} parent=0 // pred_fallthru
    _
  // Predicated region
  $region10: #{model_forward.34} parent=0 // pred_check
    _
  $region11: #{model_forward.34} parent=0 // pred_check_branch
    %13 = sbr.rel (0) target = $region13
  $region12: #{model_forward.34} parent=0 // pred_region
    _
  $region13: #{model_forward.34} parent=0 // pred_fallthru
    _
  %v14 = vld [vmem:[%s0] sm:$0xf]
  %v15 = vld [vmem:[%s0 + $0x4] sm:$0xf]
  %v16 = vunpack.c.l.bf16 %v14
  %v17 = vunpack.c.l.bf16 %v15
  %vm18 = vcmask 261120
  %v19 = vsel %vm18, %v16, 0.0
  %20 = vadd.xlane.f32.xlu0 %v19
  %v21 = vpop.xlane.xlu0 %20
  %v22 = vsel %vm18, %v17, 0.0
  %23 = vadd.xlane.f32.xlu0 %v22
  %v24 = vpop.xlane.xlu0 %23
  %v25 = vrcp.pop 32.0
  %v26 = vmul.f32 %v21, %v25
  %v27 = vmul.f32 %v24, %v25
  %v28 = vmul.f32 %v16, %v16
  %v29 = vmul.f32 %v17, %v17
  %v30 = vsel %vm18, %v28, 0.0
  %31 = vadd.xlane.f32.xlu0 %v30
  %v32 = vpop.xlane.xlu0 %31
  %v33 = vsel %vm18, %v29, 0.0
  %34 = vadd.xlane.f32.xlu0 %v33
  %v35 = vpop.xlane.xlu0 %34
  %v36 = vmul.f32 %v32, %v25
  %v37 = vmul.f32 %v35, %v25
  %v38 = vmul.f32 %v26, %v26
  %v39 = vmul.f32 %v27, %v27
  %v40 = vsub.f32 %v36, %v38
  %v41 = vsub.f32 %v37, %v39
  %v42 = vsub.f32 %v16, %v26
  %v43 = vsub.f32 %v17, %v27
  %v44 = vadd.f32 %v40, 1e-05
  %v45 = vadd.f32 %v41, 1e-05
  %v46 = vrsqrt.pop %v44
  %v47 = vrsqrt.pop %v45
  %v48 = vmul.f32 %v42, %v46
  %v49 = vmul.f32 %v43, %v47
  %v50 = vld [vmem:[%s1] sm:$0x1]
  %v52 = vlaneseq
  %v53 = vshrl.u32 %v52, 7
  %v54 = vsub.s32 0, %v53
  %v55 = vrot.slane %v50, %v54
  %v57 = vmul.f32 %v48, %v55
  %v58 = vmul.f32 %v49, %v55
  %v59 = vld [vmem:[%s2] sm:$0x1]
  %v61 = vlaneseq
  %v62 = vshrl.u32 %v61, 7
  %v63 = vsub.s32 0, %v62
  %v64 = vrot.slane %v59, %v63
  %v66 = vadd.f32 %v57, %v64
  %v67 = vadd.f32 %v58, %v64
  %v68 = vpack.c.bf16 %v67, %v66
  %v70 = vunpack.c.l.b16 %v68
  %v71 = vunpack.c.h.b16 %v68
  %v72 = vpack.c.b16 %v70, %v70
  %v73 = vpack.c.b16 %v71, %v71
  %vm76 = vcmask 257024
  %77 = vst.msk [vmem:[%s3] sm:$0xf] %vm76, %v72
  %78 = vst.msk [vmem:[%s3 + $0x4] sm:$0xf] %vm76, %v73
  // Predicated region
  $region14: #{model_forward.34} parent=0 // pred_check
    _
  $region15: #{model_forward.34} parent=0 // pred_check_branch
    %80 = sbr.rel (0) target = $region17
  $region16: #{model_forward.34} parent=0 // pred_region
    _
  $region17: #{model_forward.34} parent=0 // pred_fallthru
    _
  // Predicated region
  $region18: #{model_forward.34} parent=0 // pred_check
    _
  $region19: #{model_forward.34} parent=0 // pred_check_branch
    %82 = sbr.rel (0) target = $region21
  $region20: #{model_forward.34} parent=0 // pred_region
    _
  $region21: #{model_forward.34} parent=0 // pred_fallthru
    _

// kernel: model_forward.35
$region0: #{model_forward.35}
  #allocation0 [shape = 'u32[]', space=smem, size = 0x4, offset = 0x4, fixed_abs, tag = 'smem constant byte address 0x4 - core index']
  #allocation1 [shape = 'u32[144,128]{1,0:T(1,128)}', space=vmem, size = 0x12000, scoped, tag = 'internal scratch']
  #allocation2 [shape = 'f32[16,128]{1,0:T(8,128)}', space=vmem, size = 0x2000, scoped, tag = 'scratch operand']
  %s0 = inlined_call_operand.vmem [shape: bf16[16,128], index: 0, kind: input, shape index: {}]
  %s1 = inlined_call_operand.vmem [shape: bf16[128,128], index: 1, kind: input, shape index: {}]
  %s2 = inlined_call_operand.vmem [shape: f32[1,128], index: 2, kind: input, shape index: {}]
  %s3 = inlined_call_operand.vmem [shape: bf16[16,128], index: 3, kind: output, shape index: {}]
  %s4 = sld [smem:[#allocation0]]
  $region30: #{model_forward.35} parent=0
    _
  %s6 = ssub.s32 1, %s4
  %s7 = scalar_select 0, %s6, %s4
  // Predicated region
  $region2: #{model_forward.35} parent=0 // pred_check
    _
  $region3: #{model_forward.35} parent=0 // pred_check_branch
    %9 = sbr.rel (0) target = $region5
  $region4: #{model_forward.35} parent=0 // pred_region
    _
  $region5: #{model_forward.35} parent=0 // pred_fallthru
    _
  // Predicated region
  $region6: #{model_forward.35} parent=0 // pred_check
    _
  $region7: #{model_forward.35} parent=0 // pred_check_branch
    %11 = sbr.rel (0) target = $region9
  $region8: #{model_forward.35} parent=0 // pred_region
    _
  $region9: #{model_forward.35} parent=0 // pred_fallthru
    _
  // Predicated region
  $region10: #{model_forward.35} parent=0 // pred_check
    _
  $region11: #{model_forward.35} parent=0 // pred_check_branch
    %13 = sbr.rel (0) target = $region13
  $region12: #{model_forward.35} parent=0 // pred_region
    _
  $region13: #{model_forward.35} parent=0 // pred_fallthru
    _
  %p15 = scmp.eq.s32.totalorder 0, 0
  // Predicated region
  $region14: #{model_forward.35} parent=0 // pred_check
    %p16 = pneg %p15
  $region15: #{model_forward.35} parent=0 // pred_check_branch
    %18 = sbr.rel (%p16) target = $region17
  $region16: #{model_forward.35} parent=0 // pred_region
    %19 = vst [vmem:[#allocation2] sm:$0xff] 0.0
    %20 = vst [vmem:[#allocation2 + $0x8] sm:$0xff] 0.0
  $region17: #{model_forward.35} parent=0 // pred_fallthru
    _
  %v21 = vld [vmem:[#allocation2] sm:$0xff]
  %v22 = vld [vmem:[#allocation2 + $0x8] sm:$0xff]
  %v23 = vld [vmem:[%s0] sm:$0xf]
  %v24 = vld [vmem:[%s0 + $0x4] sm:$0xf]
  %v25 = vld [vmem:[%s1] sm:$0xf]
  %v26 = vld [vmem:[%s1 + $0x4] sm:$0xf]
  %v27 = vld [vmem:[%s1 + $0x8] sm:$0xf]
  %v28 = vld [vmem:[%s1 + $0xc] sm:$0xf]
  %v29 = vld [vmem:[%s1 + $0x10] sm:$0xf]
  %v30 = vld [vmem:[%s1 + $0x14] sm:$0xf]
  %v31 = vld [vmem:[%s1 + $0x18] sm:$0xf]
  %v32 = vld [vmem:[%s1 + $0x1c] sm:$0xf]
  %v33 = vld [vmem:[%s1 + $0x20] sm:$0xf]
  %v34 = vld [vmem:[%s1 + $0x24] sm:$0xf]
  %v35 = vld [vmem:[%s1 + $0x28] sm:$0xf]
  %v36 = vld [vmem:[%s1 + $0x2c] sm:$0xf]
  %v37 = vld [vmem:[%s1 + $0x30] sm:$0xf]
  %v38 = vld [vmem:[%s1 + $0x34] sm:$0xf]
  %v39 = vld [vmem:[%s1 + $0x38] sm:$0xf]
  %v40 = vld [vmem:[%s1 + $0x3c] sm:$0xf]
  %v43 = vunpack.c.l.b16 %v23
  %v44 = vunpack.c.l.b16 %v24
  %v45 = vpack.c.b16 %v44, %v43
  %v63 = vunpack.c.l.b16 %v25
  %v64 = vunpack.c.l.b16 %v26
  %v65 = vunpack.c.l.b16 %v27
  %v66 = vunpack.c.l.b16 %v28
  %v67 = vunpack.c.l.b16 %v29
  %v68 = vunpack.c.l.b16 %v30
  %v69 = vunpack.c.l.b16 %v31
  %v70 = vunpack.c.l.b16 %v32
  %v71 = vunpack.c.l.b16 %v33
  %v72 = vunpack.c.l.b16 %v34
  %v73 = vunpack.c.l.b16 %v35
  %v74 = vunpack.c.l.b16 %v36
  %v75 = vunpack.c.l.b16 %v37
  %v76 = vunpack.c.l.b16 %v38
  %v77 = vunpack.c.l.b16 %v39
  %v78 = vunpack.c.l.b16 %v40
  %v79 = vpack.c.b16 %v64, %v63
  %v80 = vpack.c.b16 %v66, %v65
  %v81 = vpack.c.b16 %v68, %v67
  %v82 = vpack.c.b16 %v70, %v69
  %v83 = vpack.c.b16 %v72, %v71
  %v84 = vpack.c.b16 %v74, %v73
  %v85 = vpack.c.b16 %v76, %v75
  %v86 = vpack.c.b16 %v78, %v77
  %95 = vmatprep.subr.bf16.mxu0 0
  %96 = vmatpush1.bf16.msra.mxu0 %v86
  %97 = vmatprep.subr.bf16.mxu0 0
  %98 = vmatpush1.bf16.msra.mxu0 %v85
  %99 = vmatprep.subr.bf16.mxu0 0
  %100 = vmatpush1.bf16.msra.mxu0 %v84
  %101 = vmatprep.subr.bf16.mxu0 0
  %102 = vmatpush1.bf16.msra.mxu0 %v83
  %103 = vmatprep.subr.bf16.mxu0 0
  %104 = vmatpush1.bf16.msra.mxu0 %v82
  %105 = vmatprep.subr.bf16.mxu0 0
  %106 = vmatpush1.bf16.msra.mxu0 %v81
  %107 = vmatprep.subr.bf16.mxu0 0
  %108 = vmatpush1.bf16.msra.mxu0 %v80
  %109 = vmatprep.subr.bf16.mxu0 0
  %110 = vmatpush1.bf16.msra.mxu0 %v79
  %111 = vmatprep.subr.bf16.mxu0 0
  %112 = vmatpush2.bf16.msra.mxu0 0
  %113 = vmatprep.subr.bf16.mxu0 0
  %114 = vmatpush2.bf16.msra.mxu0 0
  %115 = vmatprep.subr.bf16.mxu0 0
  %116 = vmatpush2.bf16.msra.mxu0 0
  %117 = vmatprep.subr.bf16.mxu0 0
  %118 = vmatpush2.bf16.msra.mxu0 0
  %119 = vmatprep.subr.bf16.mxu0 0
  %120 = vmatpush2.bf16.msra.mxu0 0
  %121 = vmatprep.subr.bf16.mxu0 0
  %122 = vmatpush2.bf16.msra.mxu0 0
  %123 = vmatprep.subr.bf16.mxu0 0
  %124 = vmatpush2.bf16.msra.mxu0 0
  %125 = vmatprep.subr.bf16.mxu0 0
  %126 = vmatpush2.bf16.msra.mxu0 0
  %127 = vmatprep.mubr.bf16.mxu0 0
  %128 = vmatmul.mubr.bf16.gmra.mxu0 %v45
  %v129 = vpop.f32.mrf.mxu0
  %v130 = vadd.f32 0.0, %v129
  %v131 = vpop.f32.mrf.mxu0
  %v132 = vpop.f32.mrf.mxu0
  %v133 = vadd.f32 0.0, %v132
  %v134 = vpop.f32.mrf.mxu0
  %135 = vdwg.mxu0
  %v136 = vadd.f32 %v21, %v130
  %v137 = vadd.f32 %v22, %v133
  %138 = vst [vmem:[#allocation2] sm:$0xff] %v136
  %139 = vst [vmem:[#allocation2 + $0x8] sm:$0xff] %v137
  // Predicated region
  $region18: #{model_forward.35} parent=0 // pred_check
    %p140 = pneg %p15
  $region19: #{model_forward.35} parent=0 // pred_check_branch
    %142 = sbr.rel (%p140) target = $region21
  $region20: #{model_forward.35} parent=0 // pred_region
    %v143 = vld [vmem:[#allocation2] sm:$0xff]
    %v144 = vld [vmem:[#allocation2 + $0x8] sm:$0xff]
    %v145 = vld [vmem:[%s2] sm:$0x1]
    %v147 = vlaneseq
    %v148 = vshrl.u32 %v147, 7
    %v149 = vsub.s32 0, %v148
    %v150 = vrot.slane %v145, %v149
    %v152 = vadd.f32 %v143, %v150
    %v153 = vadd.f32 %v144, %v150
    %v154 = vpack.c.bf16 %v153, %v152
    %v156 = vunpack.c.l.b16 %v154
    %v157 = vunpack.c.h.b16 %v154
    %v158 = vpack.c.b16 %v156, %v156
    %v159 = vpack.c.b16 %v157, %v157
    %162 = vst [vmem:[%s3] sm:$0xf] %v158
    %163 = vst [vmem:[%s3 + $0x4] sm:$0xf] %v159
  $region21: #{model_forward.35} parent=0 // pred_fallthru
    _
  // Predicated region
  $region22: #{model_forward.35} parent=0 // pred_check
    _
  $region23: #{model_forward.35} parent=0 // pred_check_branch
    %165 = sbr.rel (0) target = $region25
  $region24: #{model_forward.35} parent=0 // pred_region
    _
  $region25: #{model_forward.35} parent=0 // pred_fallthru
    _
  // Predicated region
  $region26: #{model_forward.35} parent=0 // pred_check
    _
  $region27: #{model_forward.35} parent=0 // pred_check_branch
    %167 = sbr.rel (0) target = $region29
  $region28: #{model_forward.35} parent=0 // pred_region
    _
  $region29: #{model_forward.35} parent=0 // pred_fallthru
    _

// kernel: model_forward.36
$region0: #{model_forward.36}
  #allocation0 [shape = 'u32[]', space=smem, size = 0x4, offset = 0x4, fixed_abs, tag = 'smem constant byte address 0x4 - core index']
  #allocation1 [shape = 'u32[144,128]{1,0:T(1,128)}', space=vmem, size = 0x12000, scoped, tag = 'internal scratch']
  #allocation2 [shape = 'f32[8,1]{1,0:T(8,128)}', space=vmem, size = 0x1000, scoped, tag = 'scratch operand']
  #allocation3 [shape = 'f32[8,1]{1,0:T(8,128)}', space=vmem, size = 0x1000, scoped, tag = 'scratch operand']
  #allocation4 [shape = 'f32[8,16]{1,0:T(8,128)}', space=vmem, size = 0x1000, scoped, tag = 'scratch operand']
  %s0 = inlined_call_operand.vmem [shape: bf16[4,8,16], index: 0, kind: input, shape index: {}]
  %s1 = inlined_call_operand.vmem [shape: bf16[4,8,16], index: 1, kind: input, shape index: {}]
  %s2 = inlined_call_operand.vmem [shape: bf16[4,8,16], index: 2, kind: input, shape index: {}]
  %s3 = inlined_call_operand.vmem [shape: bf16[4,8,16], index: 3, kind: output, shape index: {}]
  %s4 = sld [smem:[#allocation0]]
  $region57: #{model_forward.36} parent=0
    _
  %s6 = ssub.s32 1, %s4
  %s7 = scalar_select 0, %s6, %s4
  loop: start=0, step=1, limit=6
  $region2: #{model_forward.36} parent=0 // loop_pre_header
    _
  $region3: #{model_forward.36} parent=0 // loop_header
    %s9 = sphi 0, %s13
    %p10 = scmp.ge.s32.totalorder %s9, 6
    %s16 = sphi 0, %s35
    %s17 = sphi 0, %s31
    %s18 = sphi 0, %s27
    %s19 = sphi 0, %s16
    %s20 = sphi 0, %s17
    %s21 = sphi 0, %s18
    %s22 = sphi 0, %s19
    %s23 = sphi 0, %s20
    %s24 = sphi 0, %s21
    %s40 = sphi 0, %s42
    %s43 = sphi 0, %s40
    %s44 = sphi 0, %s43
    %s60 = sphi 0, %s44
    %s68 = sphi 0, %s70
    %s71 = sphi 0, %s68
    %s72 = sphi 0, %s71
    %s88 = sphi 0, %s72
    %s96 = sphi 0, %s98
    %s99 = sphi 0, %s96
    %s100 = sphi 0, %s99
    %s116 = sphi 0, %s100
    %s124 = sphi 0, %s126
    %s127 = sphi 0, %s124
    %s128 = sphi 0, %s127
    %s144 = sphi 0, %s128
  $region4: #{model_forward.36} parent=0 // loop_header_branch
    %12 = sbr.rel (%p10) target = $region8
  $region5: #{model_forward.36} parent=0 // loop_body
    %s14 = ssub.s32 %s9, 1
    %s15 = ssub.s32 %s9, 2
    %s25 = sadd.s32 1, %s18
    %p26 = scmp.ge.s32.totalorder %s25, 1
    %s27 = scalar_select %p26, 0, %s25
    %s28 = sadd.s32 1, %s17
    %s29 = scalar_select %p26, %s28, %s17
    %p30 = scmp.ge.s32.totalorder %s29, 1
    %s31 = scalar_select %p30, 0, %s29
    %s32 = sadd.s32 1, %s16
    %s33 = scalar_select %p30, %s32, %s16
    %p34 = scmp.ge.s32.totalorder %s33, 4
    %s35 = scalar_select %p34, 0, %s33
    %s36 = ssub.s32 %s16, %s35
    %s37 = ssub.s32 %s17, %s31
    %s38 = sor.u32 %s36, %s37
    %p39 = scmp.eq.s32.totalorder %s38, 0
    %s41 = sadd.s32 %s40, 1
    %s42 = scalar_select %p39, %s40, %s41
    %p45 = pneg %p39
    %p46 = scmp.eq.s32.totalorder %s9, 3
    %p47 = por %p45, %p46
    %p48 = scmp.ne.s32.totalorder %s40, %s43
    %p49 = scmp.eq.s32.totalorder %s9, 0
    %p50 = por %p48, %p49
    %p51 = scmp.ne.s32.totalorder %s40, %s43
    %p52 = scmp.eq.s32.totalorder %s14, 3
    %p53 = por %p51, %p52
    %p54 = scmp.ne.s32.totalorder %s43, %s44
    %p55 = scmp.eq.s32.totalorder %s14, 0
    %p56 = por %p54, %p55
    %p57 = scmp.ne.s32.totalorder %s43, %s44
    %p58 = scmp.eq.s32.totalorder %s15, 3
    %p59 = por %p57, %p58
    %p61 = scmp.ne.s32.totalorder %s44, %s60
    %p62 = scmp.eq.s32.totalorder %s15, 0
    %p63 = por %p61, %p62
    %s64 = ssub.s32 %s16, %s35
    %s65 = ssub.s32 %s18, %s27
    %s66 = sor.u32 %s64, %s65
    %p67 = scmp.eq.s32.totalorder %s66, 0
    %s69 = sadd.s32 %s68, 1
    %s70 = scalar_select %p67, %s68, %s69
    %p73 = pneg %p67
    %p74 = scmp.eq.s32.totalorder %s9, 3
    %p75 = por %p73, %p74
    %p76 = scmp.ne.s32.totalorder %s68, %s71
    %p77 = scmp.eq.s32.totalorder %s9, 0
    %p78 = por %p76, %p77
    %p79 = scmp.ne.s32.totalorder %s68, %s71
    %p80 = scmp.eq.s32.totalorder %s14, 3
    %p81 = por %p79, %p80
    %p82 = scmp.ne.s32.totalorder %s71, %s72
    %p83 = scmp.eq.s32.totalorder %s14, 0
    %p84 = por %p82, %p83
    %p85 = scmp.ne.s32.totalorder %s71, %s72
    %p86 = scmp.eq.s32.totalorder %s15, 3
    %p87 = por %p85, %p86
    %p89 = scmp.ne.s32.totalorder %s72, %s88
    %p90 = scmp.eq.s32.totalorder %s15, 0
    %p91 = por %p89, %p90
    %s92 = ssub.s32 %s16, %s35
    %s93 = ssub.s32 %s18, %s27
    %s94 = sor.u32 %s92, %s93
    %p95 = scmp.eq.s32.totalorder %s94, 0
    %s97 = sadd.s32 %s96, 1
    %s98 = scalar_select %p95, %s96, %s97
    %p101 = pneg %p95
    %p102 = scmp.eq.s32.totalorder %s9, 3
    %p103 = por %p101, %p102
    %p104 = scmp.ne.s32.totalorder %s96, %s99
    %p105 = scmp.eq.s32.totalorder %s9, 0
    %p106 = por %p104, %p105
    %p107 = scmp.ne.s32.totalorder %s96, %s99
    %p108 = scmp.eq.s32.totalorder %s14, 3
    %p109 = por %p107, %p108
    %p110 = scmp.ne.s32.totalorder %s99, %s100
    %p111 = scmp.eq.s32.totalorder %s14, 0
    %p112 = por %p110, %p111
    %p113 = scmp.ne.s32.totalorder %s99, %s100
    %p114 = scmp.eq.s32.totalorder %s15, 3
    %p115 = por %p113, %p114
    %p117 = scmp.ne.s32.totalorder %s100, %s116
    %p118 = scmp.eq.s32.totalorder %s15, 0
    %p119 = por %p117, %p118
    %s120 = ssub.s32 %s16, %s35
    %s121 = ssub.s32 %s17, %s31
    %s122 = sor.u32 %s120, %s121
    %p123 = scmp.eq.s32.totalorder %s122, 0
    %s125 = sadd.s32 %s124, 1
    %s126 = scalar_select %p123, %s124, %s125
    %p129 = pneg %p123
    %p130 = scmp.eq.s32.totalorder %s9, 3
    %p131 = por %p129, %p130
    %p132 = scmp.ne.s32.totalorder %s124, %s127
    %p133 = scmp.eq.s32.totalorder %s9, 0
    %p134 = por %p132, %p133
    %p135 = scmp.ne.s32.totalorder %s124, %s127
    %p136 = scmp.eq.s32.totalorder %s14, 3
    %p137 = por %p135, %p136
    %p138 = scmp.ne.s32.totalorder %s127, %s128
    %p139 = scmp.eq.s32.totalorder %s14, 0
    %p140 = por %p138, %p139
    %p141 = scmp.ne.s32.totalorder %s127, %s128
    %p142 = scmp.eq.s32.totalorder %s15, 3
    %p143 = por %p141, %p142
    %p145 = scmp.ne.s32.totalorder %s128, %s144
    %p146 = scmp.eq.s32.totalorder %s15, 0
    %p147 = por %p145, %p146
    %p148 = scmp.le.s32.totalorder 1, %s9
    %p149 = scmp.lt.s32.totalorder %s9, 5
    %p150 = pnand %p148, %p149
    %p151 = pneg %p150
    // Predicated region
    $region9: #{model_forward.36} parent=5 // pred_check
      _
    $region10: #{model_forward.36} parent=5 // pred_check_branch
      %153 = sbr.rel (%p150) target = $region12
    $region11: #{model_forward.36} parent=5 // pred_region
      %s154 = ssub.s32 %s9, 1
    $region12: #{model_forward.36} parent=5 // pred_fallthru
      _
    %p155 = scmp.lt.s32.totalorder %s9, 4
    // Predicated region
    $region13: #{model_forward.36} parent=5 // pred_check
      %p156 = pneg %p155
    $region14: #{model_forward.36} parent=5 // pred_check_branch
      %158 = sbr.rel (%p156) target = $region16
    $region15: #{model_forward.36} parent=5 // pred_region
      // Predicated region
      $region17: #{model_forward.36} parent=15 // pred_check
        %p159 = pneg %p50
      $region18: #{model_forward.36} parent=15 // pred_check_branch
        %161 = sbr.rel (%p159) target = $region20
      $region19: #{model_forward.36} parent=15 // pred_region
        %p162 = scmp.lt.s32.totalorder %s16, 3
        %s163 = scalar_select %p162, %s16, 3
        %p164 = scmp.lt.s32.totalorder %s17, 0
        %s165 = scalar_select %p164, %s17, 0
        %s166 = sadd.s32 %s165, %s163
        %s167 = smul.addr %s166, 4
        %s168 = scalar_lea.vmem %s0, %s167
      $region20: #{model_forward.36} parent=15 // pred_fallthru
        _
      // Predicated region
      $region21: #{model_forward.36} parent=15 // pred_check
        %p169 = pneg %p78
      $region22: #{model_forward.36} parent=15 // pred_check_branch
        %171 = sbr.rel (%p169) target = $region24
      $region23: #{model_forward.36} parent=15 // pred_region
        %p172 = scmp.lt.s32.totalorder %s16, 3
        %s173 = scalar_select %p172, %s16, 3
        %p174 = scmp.lt.s32.totalorder %s18, 0
        %s175 = scalar_select %p174, %s18, 0
        %s176 = sadd.s32 %s175, %s173
        %s177 = smul.addr %s176, 4
        %s178 = scalar_lea.vmem %s1, %s177
      $region24: #{model_forward.36} parent=15 // pred_fallthru
        _
      // Predicated region
      $region25: #{model_forward.36} parent=15 // pred_check
        %p179 = pneg %p106
      $region26: #{model_forward.36} parent=15 // pred_check_branch
        %181 = sbr.rel (%p179) target = $region28
      $region27: #{model_forward.36} parent=15 // pred_region
        %p182 = scmp.lt.s32.totalorder %s16, 3
        %s183 = scalar_select %p182, %s16, 3
        %p184 = scmp.lt.s32.totalorder %s18, 0
        %s185 = scalar_select %p184, %s18, 0
        %s186 = sadd.s32 %s185, %s183
        %s187 = smul.addr %s186, 4
        %s188 = scalar_lea.vmem %s2, %s187
      $region28: #{model_forward.36} parent=15 // pred_fallthru
        _
    $region16: #{model_forward.36} parent=5 // pred_fallthru
      _
    %p189 = scmp.le.s32.totalorder 1, %s9
    %p190 = scmp.lt.s32.totalorder %s9, 5
    %p191 = pnand %p189, %p190
    %p192 = pneg %p191
    // Predicated region
    $region29: #{model_forward.36} parent=5 // pred_check
      _
    $region30: #{model_forward.36} parent=5 // pred_check_branch
      %194 = sbr.rel (%p191) target = $region32
    $region31: #{model_forward.36} parent=5 // pred_region
      %s195 = ssub.s32 %s9, 1
      %p196 = scmp.lt.s32.totalorder %s19, 3
      %s197 = scalar_select %p196, %s19, 3
      %p198 = scmp.lt.s32.totalorder %s20, 0
      %s199 = scalar_select %p198, %s20, 0
      %s200 = sadd.s32 %s199, %s197
      %s201 = smul.addr %s200, 4
      %s202 = scalar_lea.vmem %s0, %s201
      %p203 = pneg %p56
      %p204 = pneg %p53
      %p205 = scmp.lt.s32.totalorder %s19, 3
      %s206 = scalar_select %p205, %s19, 3
      %p207 = scmp.lt.s32.totalorder %s21, 0
      %s208 = scalar_select %p207, %s21, 0
      %s209 = sadd.s32 %s208, %s206
      %s210 = smul.addr %s209, 4
      %s211 = scalar_lea.vmem %s1, %s210
      %p212 = pneg %p84
      %p213 = pneg %p81
      %p214 = scmp.lt.s32.totalorder %s19, 3
      %s215 = scalar_select %p214, %s19, 3
      %p216 = scmp.lt.s32.totalorder %s21, 0
      %s217 = scalar_select %p216, %s21, 0
      %s218 = sadd.s32 %s217, %s215
      %s219 = smul.addr %s218, 4
      %s220 = scalar_lea.vmem %s2, %s219
      %p221 = pneg %p112
      %p222 = pneg %p109
      %p223 = pneg %p140
      %p224 = pneg %p137
      %p225 = scmp.lt.s32.totalorder %s19, 3
      %s226 = scalar_select %p225, %s19, 3
      %p227 = scmp.lt.s32.totalorder %s20, 0
      %s228 = scalar_select %p227, %s20, 0
      %s229 = sadd.s32 %s228, %s226
      %s230 = smul.addr %s229, 4
      %s231 = scalar_lea.vmem %s3, %s230
      %p232 = scmp.lt.s32.totalorder %s19, 3
      %s233 = scalar_select %p232, %s19, 3
      %p234 = scmp.lt.s32.totalorder %s20, 0
      %s235 = scalar_select %p234, %s20, 0
      %s236 = sadd.s32 %s235, %s233
      %s237 = smul.addr %s236, 4
      %s238 = scalar_lea.vmem %s0, %s237
      %p239 = scmp.lt.s32.totalorder %s19, 3
      %s240 = scalar_select %p239, %s19, 3
      %p241 = scmp.lt.s32.totalorder %s21, 0
      %s242 = scalar_select %p241, %s21, 0
      %s243 = sadd.s32 %s242, %s240
      %s244 = smul.addr %s243, 4
      %s245 = scalar_lea.vmem %s1, %s244
      %p246 = scmp.lt.s32.totalorder %s19, 3
      %s247 = scalar_select %p246, %s19, 3
      %p248 = scmp.lt.s32.totalorder %s21, 0
      %s249 = scalar_select %p248, %s21, 0
      %s250 = sadd.s32 %s249, %s247
      %s251 = smul.addr %s250, 4
      %s252 = scalar_lea.vmem %s2, %s251
      %p253 = scmp.lt.s32.totalorder %s19, 3
      %s254 = scalar_select %p253, %s19, 3
      %p255 = scmp.lt.s32.totalorder %s20, 0
      %s256 = scalar_select %p255, %s20, 0
      %s257 = sadd.s32 %s256, %s254
      %s258 = smul.addr %s257, 4
      %s259 = scalar_lea.vmem %s3, %s258
      %p261 = scmp.eq.s32.totalorder %s21, 0
      // Predicated region
      $region33: #{model_forward.36} parent=31 // pred_check
        %p262 = pneg %p261
      $region34: #{model_forward.36} parent=31 // pred_check_branch
        %264 = sbr.rel (%p262) target = $region36
      $region35: #{model_forward.36} parent=31 // pred_region
        %vm265 = vcmask 7168
        %266 = vst.msk [vmem:[#allocation2] sm:$0xff] %vm265, -2.3819763e+38
        %267 = vst.msk [vmem:[#allocation3] sm:$0xff] %vm265, 0.0
        %vm268 = vcmask 130048
        %269 = vst.msk [vmem:[#allocation4] sm:$0xff] %vm268, 0.0
      $region36: #{model_forward.36} parent=31 // pred_fallthru
        _
      %s270 = smul.u32 %s21, 8
      %s271 = smul.u32 %s20, 8
      %s272 = sadd.s32 %s271, 7
      %p273 = scmp.le.s32.totalorder %s270, %s272
      // Predicated region
      $region37: #{model_forward.36} parent=31 // pred_check
        %p274 = pneg %p273
      $region38: #{model_forward.36} parent=31 // pred_check_branch
        %276 = sbr.rel (%p274) target = $region40
      $region39: #{model_forward.36} parent=31 // pred_region
        %v277 = vld [vmem:[%s238] sm:$0xf]
        %v278 = vld [vmem:[%s245] sm:$0xf]
        %v279 = vld [vmem:[%s252] sm:$0xf]
        %vm280 = vcmask 130048
        %v282 = vsel %vm280, %v277, 0
        %v285 = vsel %vm280, %v278, 0
        %287 = vmatprep.subr.bf16.mxu0 0
        %288 = vmatpush1.bf16.xpose.msra.mxu0 0
        %289 = vmatprep.subr.bf16.mxu0 0
        %290 = vmatpush1.bf16.xpose.msra.mxu0 0
        %291 = vmatprep.subr.bf16.mxu0 0
        %292 = vmatpush1.bf16.xpose.msra.mxu0 0
        %293 = vmatprep.subr.bf16.mxu0 0
        %294 = vmatpush1.bf16.xpose.msra.mxu0 0
        %295 = vmatprep.subr.bf16.mxu0 0
        %296 = vmatpush1.bf16.xpose.msra.mxu0 0
        %297 = vmatprep.subr.bf16.mxu0 0
        %298 = vmatpush1.bf16.xpose.msra.mxu0 0
        %299 = vmatprep.subr.bf16.mxu0 0
        %300 = vmatpush1.bf16.xpose.msra.mxu0 0
        %301 = vmatprep.subr.bf16.mxu0 0
        %302 = vmatpush1.bf16.xpose.msra.mxu0 %v285
        %303 = vmatprep.subr.bf16.mxu0 0
        %304 = vmatpush2.bf16.xpose.msra.mxu0 0
        %305 = vmatprep.subr.bf16.mxu0 0
        %306 = vmatpush2.bf16.xpose.msra.mxu0 0
        %307 = vmatprep.subr.bf16.mxu0 0
        %308 = vmatpush2.bf16.xpose.msra.mxu0 0
        %309 = vmatprep.subr.bf16.mxu0 0
        %310 = vmatpush2.bf16.xpose.msra.mxu0 0
        %311 = vmatprep.subr.bf16.mxu0 0
        %312 = vmatpush2.bf16.xpose.msra.mxu0 0
        %313 = vmatprep.subr.bf16.mxu0 0
        %314 = vmatpush2.bf16.xpose.msra.mxu0 0
        %315 = vmatprep.subr.bf16.mxu0 0
        %316 = vmatpush2.bf16.xpose.msra.mxu0 0
        %317 = vmatprep.subr.bf16.mxu0 0
        %318 = vmatpush2.bf16.xpose.msra.mxu0 0
        %319 = vmatprep.mubr.bf16.mxu0 0
        %320 = vmatmul.mubr.bf16.gmra.mxu0 %v282
        %v321 = vpop.f32.mrf.mxu0
        %v322 = vadd.f32 0.0, %v321
        %v323 = vpop.f32.mrf.mxu0
        %v324 = vpop.f32.mrf.mxu0
        %v325 = vpop.f32.mrf.mxu0
        %326 = vdwg.mxu0
        %v327 = vlaneseq
        %v328 = vand.u32 %v327, 127
        %v329 = vstv %s270
        %v330 = vadd.s32 %v329, %v328
        %v331 = vlaneseq
        %v332 = vshrl.u32 %v331, 7
        %v333 = vstv %s271
        %v334 = vadd.s32 %v333, %v332
        %vm335 = vcmp.le.s32.totalorder %v330, %v334
        %v336 = vsel %vm335, %v322, -2.3819763e+38
        %v337 = vld [vmem:[#allocation2] sm:$0xff]
        %vm338 = vcmask 64512
        %v339 = vsel %vm338, %v336, -inf
        %340 = vmax.xlane.f32.xlu0 %v339
        %v341 = vpop.xlane.xlu0 %340
        %v342 = vmax.f32 %v337, %v341
        %v343 = vsub.f32 %v337, %v342
        %v344 = vmul.f32 %v343, 1.442695
        %v345 = vpow.pop %v344
        %347 = vset.pattern.permute.xlu0 0
        %348 = vperm.xlu0 %347, %v342
        %v349 = vpop.permute.xlu0 %348
        %v351 = vsub.f32 %v336, %v349
        %v352 = vpack.c.bf16 %v351, %v351
        %v354 = vmul.bf16 %v352, 1069105081
        %v355 = vpow.bf16.pop %v354
        %v356 = vld [vmem:[#allocation3] sm:$0xff]
        %v357 = vmul.f32 %v345, %v356
        %v358 = vunpack.c.l.bf16 %v355
        %v359 = vsel %vm338, %v358, 0.0
        %360 = vadd.xlane.f32.xlu0 %v359
        %v361 = vpop.xlane.xlu0 %360
        %v362 = vadd.f32 %v357, %v361
        %vm363 = vcmask 7168
        %364 = vst.msk [vmem:[#allocation3] sm:$0xff] %vm363, %v362
        %v365 = vld [vmem:[#allocation4] sm:$0xff]
        %367 = vset.pattern.permute.xlu0 0
        %368 = vperm.xlu0 %367, %v345
        %v369 = vpop.permute.xlu0 %368
        %v371 = vmul.f32 %v369, %v365
        %v373 = vsel %vm338, %v355, 0
        %vm375 = vcmask 1043456
        %v377 = vsel %vm375, %v279, 0
        %379 = vmatprep.subr.bf16.mxu0 0
        %380 = vmatpush1.bf16.msra.mxu0 0
        %381 = vmatprep.subr.bf16.mxu0 0
        %382 = vmatpush1.bf16.msra.mxu0 0
        %383 = vmatprep.subr.bf16.mxu0 0
        %384 = vmatpush1.bf16.msra.mxu0 0
        %385 = vmatprep.subr.bf16.mxu0 0
        %386 = vmatpush1.bf16.msra.mxu0 0
        %387 = vmatprep.subr.bf16.mxu0 0
        %388 = vmatpush1.bf16.msra.mxu0 0
        %389 = vmatprep.subr.bf16.mxu0 0
        %390 = vmatpush1.bf16.msra.mxu0 0
        %391 = vmatprep.subr.bf16.mxu0 0
        %392 = vmatpush1.bf16.msra.mxu0 0
        %393 = vmatprep.subr.bf16.mxu0 0
        %394 = vmatpush1.bf16.msra.mxu0 %v377
        %395 = vmatprep.subr.bf16.mxu0 0
        %396 = vmatpush2.bf16.msra.mxu0 0
        %397 = vmatprep.subr.bf16.mxu0 0
        %398 = vmatpush2.bf16.msra.mxu0 0
        %399 = vmatprep.subr.bf16.mxu0 0
        %400 = vmatpush2.bf16.msra.mxu0 0
        %401 = vmatprep.subr.bf16.mxu0 0
        %402 = vmatpush2.bf16.msra.mxu0 0
        %403 = vmatprep.subr.bf16.mxu0 0
        %404 = vmatpush2.bf16.msra.mxu0 0
        %405 = vmatprep.subr.bf16.mxu0 0
        %406 = vmatpush2.bf16.msra.mxu0 0
        %407 = vmatprep.subr.bf16.mxu0 0
        %408 = vmatpush2.bf16.msra.mxu0 0
        %409 = vmatprep.subr.bf16.mxu0 0
        %410 = vmatpush2.bf16.msra.mxu0 0
        %411 = vmatprep.mubr.bf16.mxu0 0
        %412 = vmatmul.mubr.bf16.gmra.mxu0 %v373
        %v413 = vpop.f32.mrf.mxu0
        %v414 = vadd.f32 0.0, %v413
        %v415 = vpop.f32.mrf.mxu0
        %v416 = vpop.f32.mrf.mxu0
        %v417 = vpop.f32.mrf.mxu0
        %418 = vdwg.mxu0
        %v419 = vadd.f32 %v371, %v414
        %420 = vst.msk [vmem:[#allocation4] sm:$0xff] %vm280, %v419
        %421 = vst.msk [vmem:[#allocation2] sm:$0xff] %vm363, %v342
      $region40: #{model_forward.36} parent=31 // pred_fallthru
        _
      // Predicated region
      $region41: #{model_forward.36} parent=31 // pred_check
        %p422 = pneg %p261
      $region42: #{model_forward.36} parent=31 // pred_check_branch
        %424 = sbr.rel (%p422) target = $region44
      $region43: #{model_forward.36} parent=31 // pred_region
        %v425 = vld [vmem:[#allocation3] sm:$0xff]
        %v426 = vrcp.pop %v425
        %v427 = vld [vmem:[#allocation4] sm:$0xff]
        %429 = vset.pattern.permute.xlu0 0
        %430 = vperm.xlu0 %429, %v426
        %v431 = vpop.permute.xlu0 %430
        %v433 = vmul.f32 %v427, %v431
        %v434 = vpack.c.bf16 %v433, %v433
        %vm435 = vcmask 125952
        %436 = vst.msk [vmem:[%s259] sm:$0xf] %vm435, %v434
      $region44: #{model_forward.36} parent=31 // pred_fallthru
        _
      %p437 = scmp.lt.s32.totalorder %s19, 3
      %s438 = scalar_select %p437, %s19, 3
      %p439 = scmp.lt.s32.totalorder %s20, 0
      %s440 = scalar_select %p439, %s20, 0
      %s441 = sadd.s32 %s440, %s438
      %s442 = smul.addr %s441, 4
      %s443 = scalar_lea.vmem %s3, %s442
      // Predicated region
      $region45: #{model_forward.36} parent=31 // pred_check
        %p444 = pneg %p137
      $region46: #{model_forward.36} parent=31 // pred_check_branch
        %446 = sbr.rel (%p444) target = $region48
      $region47: #{model_forward.36} parent=31 // pred_region
        _
      $region48: #{model_forward.36} parent=31 // pred_fallthru
        _
    $region32: #{model_forward.36} parent=5 // pred_fallthru
      _
    %p447 = scmp.le.s32.totalorder 2, %s9
    // Predicated region
    $region49: #{model_forward.36} parent=5 // pred_check
      %p448 = pneg %p447
    $region50: #{model_forward.36} parent=5 // pred_check_branch
      %450 = sbr.rel (%p448) target = $region52
    $region51: #{model_forward.36} parent=5 // pred_region
      %s451 = ssub.s32 %s9, 2
      // Predicated region
      $region53: #{model_forward.36} parent=51 // pred_check
        %p452 = pneg %p143
      $region54: #{model_forward.36} parent=51 // pred_check_branch
        %454 = sbr.rel (%p452) target = $region56
      $region55: #{model_forward.36} parent=51 // pred_region
        %p455 = scmp.lt.s32.totalorder %s22, 3
        %s456 = scalar_select %p455, %s22, 3
        %p457 = scmp.lt.s32.totalorder %s23, 0
        %s458 = scalar_select %p457, %s23, 0
        %s459 = sadd.s32 %s458, %s456
        %s460 = smul.addr %s459, 4
        %s461 = scalar_lea.vmem %s3, %s460
      $region56: #{model_forward.36} parent=51 // pred_fallthru
        _
    $region52: #{model_forward.36} parent=5 // pred_fallthru
      _
  $region6: #{model_forward.36} parent=0 // loop_footer
    %s13 = sadd.s32 1, %s9
  $region7: #{model_forward.36} parent=0 // loop_footer_branch
    %8 = sbr.rel target = $region3
  $region8: #{model_forward.36} parent=0 // loop_exit
    _

// kernel: model_forward.44
$region0: #{model_forward.44}
  #allocation0 [shape = 'u32[]', space=smem, size = 0x4, offset = 0x4, fixed_abs, tag = 'smem constant byte address 0x4 - core index']
  #allocation1 [shape = 'u32[144,128]{1,0:T(1,128)}', space=vmem, size = 0x12000, scoped, tag = 'internal scratch']
  #allocation2 [shape = 'f32[16,128]{1,0:T(8,128)}', space=vmem, size = 0x2000, scoped, tag = 'scratch operand']
  %s0 = inlined_call_operand.vmem [shape: bf16[16,128], index: 0, kind: input, shape index: {}]
  %s1 = inlined_call_operand.vmem [shape: bf16[128,128], index: 1, kind: input, shape index: {}]
  %s2 = inlined_call_operand.vmem [shape: f32[1,128], index: 2, kind: input, shape index: {}]
  %s3 = inlined_call_operand.vmem [shape: bf16[16,128], index: 3, kind: output, shape index: {}]
  %s4 = sld [smem:[#allocation0]]
  $region30: #{model_forward.44} parent=0
    _
  %s6 = ssub.s32 1, %s4
  %s7 = scalar_select 0, %s6, %s4
  // Predicated region
  $region2: #{model_forward.44} parent=0 // pred_check
    _
  $region3: #{model_forward.44} parent=0 // pred_check_branch
    %9 = sbr.rel (0) target = $region5
  $region4: #{model_forward.44} parent=0 // pred_region
    _
  $region5: #{model_forward.44} parent=0 // pred_fallthru
    _
  // Predicated region
  $region6: #{model_forward.44} parent=0 // pred_check
    _
  $region7: #{model_forward.44} parent=0 // pred_check_branch
    %11 = sbr.rel (0) target = $region9
  $region8: #{model_forward.44} parent=0 // pred_region
    _
  $region9: #{model_forward.44} parent=0 // pred_fallthru
    _
  // Predicated region
  $region10: #{model_forward.44} parent=0 // pred_check
    _
  $region11: #{model_forward.44} parent=0 // pred_check_branch
    %13 = sbr.rel (0) target = $region13
  $region12: #{model_forward.44} parent=0 // pred_region
    _
  $region13: #{model_forward.44} parent=0 // pred_fallthru
    _
  %p15 = scmp.eq.s32.totalorder 0, 0
  // Predicated region
  $region14: #{model_forward.44} parent=0 // pred_check
    %p16 = pneg %p15
  $region15: #{model_forward.44} parent=0 // pred_check_branch
    %18 = sbr.rel (%p16) target = $region17
  $region16: #{model_forward.44} parent=0 // pred_region
    %19 = vst [vmem:[#allocation2] sm:$0xff] 0.0
    %20 = vst [vmem:[#allocation2 + $0x8] sm:$0xff] 0.0
  $region17: #{model_forward.44} parent=0 // pred_fallthru
    _
  %v21 = vld [vmem:[#allocation2] sm:$0xff]
  %v22 = vld [vmem:[#allocation2 + $0x8] sm:$0xff]
  %v23 = vld [vmem:[%s0] sm:$0xf]
  %v24 = vld [vmem:[%s0 + $0x4] sm:$0xf]
  %v25 = vld [vmem:[%s1] sm:$0xf]
  %v26 = vld [vmem:[%s1 + $0x4] sm:$0xf]
  %v27 = vld [vmem:[%s1 + $0x8] sm:$0xf]
  %v28 = vld [vmem:[%s1 + $0xc] sm:$0xf]
  %v29 = vld [vmem:[%s1 + $0x10] sm:$0xf]
  %v30 = vld [vmem:[%s1 + $0x14] sm:$0xf]
  %v31 = vld [vmem:[%s1 + $0x18] sm:$0xf]
  %v32 = vld [vmem:[%s1 + $0x1c] sm:$0xf]
  %v33 = vld [vmem:[%s1 + $0x20] sm:$0xf]
  %v34 = vld [vmem:[%s1 + $0x24] sm:$0xf]
  %v35 = vld [vmem:[%s1 + $0x28] sm:$0xf]
  %v36 = vld [vmem:[%s1 + $0x2c] sm:$0xf]
  %v37 = vld [vmem:[%s1 + $0x30] sm:$0xf]
  %v38 = vld [vmem:[%s1 + $0x34] sm:$0xf]
  %v39 = vld [vmem:[%s1 + $0x38] sm:$0xf]
  %v40 = vld [vmem:[%s1 + $0x3c] sm:$0xf]
  %v43 = vunpack.c.l.b16 %v23
  %v44 = vunpack.c.l.b16 %v24
  %v45 = vpack.c.b16 %v44, %v43
  %v63 = vunpack.c.l.b16 %v25
  %v64 = vunpack.c.l.b16 %v26
  %v65 = vunpack.c.l.b16 %v27
  %v66 = vunpack.c.l.b16 %v28
  %v67 = vunpack.c.l.b16 %v29
  %v68 = vunpack.c.l.b16 %v30
  %v69 = vunpack.c.l.b16 %v31
  %v70 = vunpack.c.l.b16 %v32
  %v71 = vunpack.c.l.b16 %v33
  %v72 = vunpack.c.l.b16 %v34
  %v73 = vunpack.c.l.b16 %v35
  %v74 = vunpack.c.l.b16 %v36
  %v75 = vunpack.c.l.b16 %v37
  %v76 = vunpack.c.l.b16 %v38
  %v77 = vunpack.c.l.b16 %v39
  %v78 = vunpack.c.l.b16 %v40
  %v79 = vpack.c.b16 %v64, %v63
  %v80 = vpack.c.b16 %v66, %v65
  %v81 = vpack.c.b16 %v68, %v67
  %v82 = vpack.c.b16 %v70, %v69
  %v83 = vpack.c.b16 %v72, %v71
  %v84 = vpack.c.b16 %v74, %v73
  %v85 = vpack.c.b16 %v76, %v75
  %v86 = vpack.c.b16 %v78, %v77
  %95 = vmatprep.subr.bf16.mxu0 0
  %96 = vmatpush1.bf16.msra.mxu0 %v86
  %97 = vmatprep.subr.bf16.mxu0 0
  %98 = vmatpush1.bf16.msra.mxu0 %v85
  %99 = vmatprep.subr.bf16.mxu0 0
  %100 = vmatpush1.bf16.msra.mxu0 %v84
  %101 = vmatprep.subr.bf16.mxu0 0
  %102 = vmatpush1.bf16.msra.mxu0 %v83
  %103 = vmatprep.subr.bf16.mxu0 0
  %104 = vmatpush1.bf16.msra.mxu0 %v82
  %105 = vmatprep.subr.bf16.mxu0 0
  %106 = vmatpush1.bf16.msra.mxu0 %v81
  %107 = vmatprep.subr.bf16.mxu0 0
  %108 = vmatpush1.bf16.msra.mxu0 %v80
  %109 = vmatprep.subr.bf16.mxu0 0
  %110 = vmatpush1.bf16.msra.mxu0 %v79
  %111 = vmatprep.subr.bf16.mxu0 0
  %112 = vmatpush2.bf16.msra.mxu0 0
  %113 = vmatprep.subr.bf16.mxu0 0
  %114 = vmatpush2.bf16.msra.mxu0 0
  %115 = vmatprep.subr.bf16.mxu0 0
  %116 = vmatpush2.bf16.msra.mxu0 0
  %117 = vmatprep.subr.bf16.mxu0 0
  %118 = vmatpush2.bf16.msra.mxu0 0
  %119 = vmatprep.subr.bf16.mxu0 0
  %120 = vmatpush2.bf16.msra.mxu0 0
  %121 = vmatprep.subr.bf16.mxu0 0
  %122 = vmatpush2.bf16.msra.mxu0 0
  %123 = vmatprep.subr.bf16.mxu0 0
  %124 = vmatpush2.bf16.msra.mxu0 0
  %125 = vmatprep.subr.bf16.mxu0 0
  %126 = vmatpush2.bf16.msra.mxu0 0
  %127 = vmatprep.mubr.bf16.mxu0 0
  %128 = vmatmul.mubr.bf16.gmra.mxu0 %v45
  %v129 = vpop.f32.mrf.mxu0
  %v130 = vadd.f32 0.0, %v129
  %v131 = vpop.f32.mrf.mxu0
  %v132 = vpop.f32.mrf.mxu0
  %v133 = vadd.f32 0.0, %v132
  %v134 = vpop.f32.mrf.mxu0
  %135 = vdwg.mxu0
  %v136 = vadd.f32 %v21, %v130
  %v137 = vadd.f32 %v22, %v133
  %138 = vst [vmem:[#allocation2] sm:$0xff] %v136
  %139 = vst [vmem:[#allocation2 + $0x8] sm:$0xff] %v137
  // Predicated region
  $region18: #{model_forward.44} parent=0 // pred_check
    %p140 = pneg %p15
  $region19: #{model_forward.44} parent=0 // pred_check_branch
    %142 = sbr.rel (%p140) target = $region21
  $region20: #{model_forward.44} parent=0 // pred_region
    %v143 = vld [vmem:[#allocation2] sm:$0xff]
    %v144 = vld [vmem:[#allocation2 + $0x8] sm:$0xff]
    %v145 = vld [vmem:[%s2] sm:$0x1]
    %v147 = vlaneseq
    %v148 = vshrl.u32 %v147, 7
    %v149 = vsub.s32 0, %v148
    %v150 = vrot.slane %v145, %v149
    %v152 = vadd.f32 %v143, %v150
    %v153 = vadd.f32 %v144, %v150
    %v154 = vmul.f32 %v152, 0.5
    %v155 = vmul.f32 %v153, 0.5
    %v156 = vmul.f32 %v152, 0.044715
    %v157 = vmul.f32 %v153, 0.044715
    %v158 = vmul.f32 %v156, %v152
    %v159 = vmul.f32 %v157, %v153
    %v160 = vmul.f32 %v158, %v152
    %v161 = vmul.f32 %v159, %v153
    %v162 = vadd.f32 %v152, %v160
    %v163 = vadd.f32 %v153, %v161
    %v164 = vmul.f32 %v162, 0.7978846
    %v165 = vmul.f32 %v163, 0.7978846
    %v166 = vtanh.pop %v164
    %v167 = vtanh.pop %v165
    %v168 = vadd.f32 %v166, 1.0
    %v169 = vadd.f32 %v167, 1.0
    %v170 = vmul.f32 %v154, %v168
    %v171 = vmul.f32 %v155, %v169
    %v172 = vpack.c.bf16 %v171, %v170
    %v174 = vunpack.c.l.b16 %v172
    %v175 = vunpack.c.h.b16 %v172
    %v176 = vpack.c.b16 %v174, %v174
    %v177 = vpack.c.b16 %v175, %v175
    %180 = vst [vmem:[%s3] sm:$0xf] %v176
    %181 = vst [vmem:[%s3 + $0x4] sm:$0xf] %v177
  $region21: #{model_forward.44} parent=0 // pred_fallthru
    _
  // Predicated region
  $region22: #{model_forward.44} parent=0 // pred_check
    _
  $region23: #{model_forward.44} parent=0 // pred_check_branch
    %183 = sbr.rel (0) target = $region25
  $region24: #{model_forward.44} parent=0 // pred_region
    _
  $region25: #{model_forward.44} parent=0 // pred_fallthru
    _
  // Predicated region
  $region26: #{model_forward.44} parent=0 // pred_check
    _
  $region27: #{model_forward.44} parent=0 // pred_check_branch
    %185 = sbr.rel (0) target = $region29
  $region28: #{model_forward.44} parent=0 // pred_region
    _
  $region29: #{model_forward.44} parent=0 // pred_fallthru
    _

// kernel: model_forward.41
$region0: #{model_forward.41}
  #allocation0 [shape = 'u32[]', space=smem, size = 0x4, offset = 0x4, fixed_abs, tag = 'smem constant byte address 0x4 - core index']
  #allocation1 [shape = 'u32[144,128]{1,0:T(1,128)}', space=vmem, size = 0x12000, scoped, tag = 'internal scratch']
  #allocation2 [shape = 'f32[8,1]{1,0:T(8,128)}', space=vmem, size = 0x1000, scoped, tag = 'scratch operand']
  #allocation3 [shape = 'f32[8,1]{1,0:T(8,128)}', space=vmem, size = 0x1000, scoped, tag = 'scratch operand']
  #allocation4 [shape = 'f32[8,16]{1,0:T(8,128)}', space=vmem, size = 0x1000, scoped, tag = 'scratch operand']
  %s0 = inlined_call_operand.vmem [shape: bf16[4,8,16], index: 0, kind: input, shape index: {}]
  %s1 = inlined_call_operand.vmem [shape: bf16[4,16,16], index: 1, kind: input, shape index: {}]
  %s2 = inlined_call_operand.vmem [shape: bf16[4,16,16], index: 2, kind: input, shape index: {}]
  %s3 = inlined_call_operand.vmem [shape: bf16[4,8,16], index: 3, kind: output, shape index: {}]
  %s4 = sld [smem:[#allocation0]]
  $region53: #{model_forward.41} parent=0
    _
  %s6 = ssub.s32 1, %s4
  %s7 = scalar_select 0, %s6, %s4
  loop: start=0, step=1, limit=6
  $region2: #{model_forward.41} parent=0 // loop_pre_header
    _
  $region3: #{model_forward.41} parent=0 // loop_header
    %s9 = sphi 0, %s13
    %p10 = scmp.ge.s32.totalorder %s9, 6
    %s16 = sphi 0, %s35
    %s17 = sphi 0, %s31
    %s18 = sphi 0, %s27
    %s19 = sphi 0, %s16
    %s20 = sphi 0, %s17
    %s21 = sphi 0, %s18
    %s22 = sphi 0, %s19
    %s23 = sphi 0, %s20
    %s24 = sphi 0, %s21
    %s40 = sphi 0, %s42
    %s43 = sphi 0, %s40
    %s44 = sphi 0, %s43
    %s60 = sphi 0, %s44
    %s68 = sphi 0, %s70
    %s71 = sphi 0, %s68
    %s72 = sphi 0, %s71
    %s88 = sphi 0, %s72
    %s96 = sphi 0, %s98
    %s99 = sphi 0, %s96
    %s100 = sphi 0, %s99
    %s116 = sphi 0, %s100
    %s124 = sphi 0, %s126
    %s127 = sphi 0, %s124
    %s128 = sphi 0, %s127
    %s144 = sphi 0, %s128
  $region4: #{model_forward.41} parent=0 // loop_header_branch
    %12 = sbr.rel (%p10) target = $region8
  $region5: #{model_forward.41} parent=0 // loop_body
    %s14 = ssub.s32 %s9, 1
    %s15 = ssub.s32 %s9, 2
    %s25 = sadd.s32 1, %s18
    %p26 = scmp.ge.s32.totalorder %s25, 1
    %s27 = scalar_select %p26, 0, %s25
    %s28 = sadd.s32 1, %s17
    %s29 = scalar_select %p26, %s28, %s17
    %p30 = scmp.ge.s32.totalorder %s29, 1
    %s31 = scalar_select %p30, 0, %s29
    %s32 = sadd.s32 1, %s16
    %s33 = scalar_select %p30, %s32, %s16
    %p34 = scmp.ge.s32.totalorder %s33, 4
    %s35 = scalar_select %p34, 0, %s33
    %s36 = ssub.s32 %s16, %s35
    %s37 = ssub.s32 %s17, %s31
    %s38 = sor.u32 %s36, %s37
    %p39 = scmp.eq.s32.totalorder %s38, 0
    %s41 = sadd.s32 %s40, 1
    %s42 = scalar_select %p39, %s40, %s41
    %p45 = pneg %p39
    %p46 = scmp.eq.s32.totalorder %s9, 3
    %p47 = por %p45, %p46
    %p48 = scmp.ne.s32.totalorder %s40, %s43
    %p49 = scmp.eq.s32.totalorder %s9, 0
    %p50 = por %p48, %p49
    %p51 = scmp.ne.s32.totalorder %s40, %s43
    %p52 = scmp.eq.s32.totalorder %s14, 3
    %p53 = por %p51, %p52
    %p54 = scmp.ne.s32.totalorder %s43, %s44
    %p55 = scmp.eq.s32.totalorder %s14, 0
    %p56 = por %p54, %p55
    %p57 = scmp.ne.s32.totalorder %s43, %s44
    %p58 = scmp.eq.s32.totalorder %s15, 3
    %p59 = por %p57, %p58
    %p61 = scmp.ne.s32.totalorder %s44, %s60
    %p62 = scmp.eq.s32.totalorder %s15, 0
    %p63 = por %p61, %p62
    %s64 = ssub.s32 %s16, %s35
    %s65 = ssub.s32 %s18, %s27
    %s66 = sor.u32 %s64, %s65
    %p67 = scmp.eq.s32.totalorder %s66, 0
    %s69 = sadd.s32 %s68, 1
    %s70 = scalar_select %p67, %s68, %s69
    %p73 = pneg %p67
    %p74 = scmp.eq.s32.totalorder %s9, 3
    %p75 = por %p73, %p74
    %p76 = scmp.ne.s32.totalorder %s68, %s71
    %p77 = scmp.eq.s32.totalorder %s9, 0
    %p78 = por %p76, %p77
    %p79 = scmp.ne.s32.totalorder %s68, %s71
    %p80 = scmp.eq.s32.totalorder %s14, 3
    %p81 = por %p79, %p80
    %p82 = scmp.ne.s32.totalorder %s71, %s72
    %p83 = scmp.eq.s32.totalorder %s14, 0
    %p84 = por %p82, %p83
    %p85 = scmp.ne.s32.totalorder %s71, %s72
    %p86 = scmp.eq.s32.totalorder %s15, 3
    %p87 = por %p85, %p86
    %p89 = scmp.ne.s32.totalorder %s72, %s88
    %p90 = scmp.eq.s32.totalorder %s15, 0
    %p91 = por %p89, %p90
    %s92 = ssub.s32 %s16, %s35
    %s93 = ssub.s32 %s18, %s27
    %s94 = sor.u32 %s92, %s93
    %p95 = scmp.eq.s32.totalorder %s94, 0
    %s97 = sadd.s32 %s96, 1
    %s98 = scalar_select %p95, %s96, %s97
    %p101 = pneg %p95
    %p102 = scmp.eq.s32.totalorder %s9, 3
    %p103 = por %p101, %p102
    %p104 = scmp.ne.s32.totalorder %s96, %s99
    %p105 = scmp.eq.s32.totalorder %s9, 0
    %p106 = por %p104, %p105
    %p107 = scmp.ne.s32.totalorder %s96, %s99
    %p108 = scmp.eq.s32.totalorder %s14, 3
    %p109 = por %p107, %p108
    %p110 = scmp.ne.s32.totalorder %s99, %s100
    %p111 = scmp.eq.s32.totalorder %s14, 0
    %p112 = por %p110, %p111
    %p113 = scmp.ne.s32.totalorder %s99, %s100
    %p114 = scmp.eq.s32.totalorder %s15, 3
    %p115 = por %p113, %p114
    %p117 = scmp.ne.s32.totalorder %s100, %s116
    %p118 = scmp.eq.s32.totalorder %s15, 0
    %p119 = por %p117, %p118
    %s120 = ssub.s32 %s16, %s35
    %s121 = ssub.s32 %s17, %s31
    %s122 = sor.u32 %s120, %s121
    %p123 = scmp.eq.s32.totalorder %s122, 0
    %s125 = sadd.s32 %s124, 1
    %s126 = scalar_select %p123, %s124, %s125
    %p129 = pneg %p123
    %p130 = scmp.eq.s32.totalorder %s9, 3
    %p131 = por %p129, %p130
    %p132 = scmp.ne.s32.totalorder %s124, %s127
    %p133 = scmp.eq.s32.totalorder %s9, 0
    %p134 = por %p132, %p133
    %p135 = scmp.ne.s32.totalorder %s124, %s127
    %p136 = scmp.eq.s32.totalorder %s14, 3
    %p137 = por %p135, %p136
    %p138 = scmp.ne.s32.totalorder %s127, %s128
    %p139 = scmp.eq.s32.totalorder %s14, 0
    %p140 = por %p138, %p139
    %p141 = scmp.ne.s32.totalorder %s127, %s128
    %p142 = scmp.eq.s32.totalorder %s15, 3
    %p143 = por %p141, %p142
    %p145 = scmp.ne.s32.totalorder %s128, %s144
    %p146 = scmp.eq.s32.totalorder %s15, 0
    %p147 = por %p145, %p146
    %p148 = scmp.le.s32.totalorder 1, %s9
    %p149 = scmp.lt.s32.totalorder %s9, 5
    %p150 = pnand %p148, %p149
    %p151 = pneg %p150
    // Predicated region
    $region9: #{model_forward.41} parent=5 // pred_check
      _
    $region10: #{model_forward.41} parent=5 // pred_check_branch
      %153 = sbr.rel (%p150) target = $region12
    $region11: #{model_forward.41} parent=5 // pred_region
      %s154 = ssub.s32 %s9, 1
    $region12: #{model_forward.41} parent=5 // pred_fallthru
      _
    %p155 = scmp.lt.s32.totalorder %s9, 4
    // Predicated region
    $region13: #{model_forward.41} parent=5 // pred_check
      %p156 = pneg %p155
    $region14: #{model_forward.41} parent=5 // pred_check_branch
      %158 = sbr.rel (%p156) target = $region16
    $region15: #{model_forward.41} parent=5 // pred_region
      // Predicated region
      $region17: #{model_forward.41} parent=15 // pred_check
        %p159 = pneg %p50
      $region18: #{model_forward.41} parent=15 // pred_check_branch
        %161 = sbr.rel (%p159) target = $region20
      $region19: #{model_forward.41} parent=15 // pred_region
        %p162 = scmp.lt.s32.totalorder %s16, 3
        %s163 = scalar_select %p162, %s16, 3
        %p164 = scmp.lt.s32.totalorder %s17, 0
        %s165 = scalar_select %p164, %s17, 0
        %s166 = sadd.s32 %s165, %s163
        %s167 = smul.addr %s166, 4
        %s168 = scalar_lea.vmem %s0, %s167
      $region20: #{model_forward.41} parent=15 // pred_fallthru
        _
      // Predicated region
      $region21: #{model_forward.41} parent=15 // pred_check
        %p169 = pneg %p78
      $region22: #{model_forward.41} parent=15 // pred_check_branch
        %171 = sbr.rel (%p169) target = $region24
      $region23: #{model_forward.41} parent=15 // pred_region
        %s172 = smul.u32 2, %s18
        %p173 = scmp.lt.s32.totalorder %s16, 3
        %s174 = scalar_select %p173, %s16, 3
        %p175 = scmp.lt.s32.totalorder %s172, 1
        %s176 = scalar_select %p175, %s172, 1
        %s177 = smul.addr %s174, 2
        %s178 = sadd.s32 %s176, %s177
        %s179 = smul.addr %s178, 4
        %s180 = scalar_lea.vmem %s1, %s179
        %s181 = smul.u32 2, %s18
      $region24: #{model_forward.41} parent=15 // pred_fallthru
        _
      // Predicated region
      $region25: #{model_forward.41} parent=15 // pred_check
        %p182 = pneg %p106
      $region26: #{model_forward.41} parent=15 // pred_check_branch
        %184 = sbr.rel (%p182) target = $region28
      $region27: #{model_forward.41} parent=15 // pred_region
        %s185 = smul.u32 2, %s18
        %p186 = scmp.lt.s32.totalorder %s16, 3
        %s187 = scalar_select %p186, %s16, 3
        %p188 = scmp.lt.s32.totalorder %s185, 1
        %s189 = scalar_select %p188, %s185, 1
        %s190 = smul.addr %s187, 2
        %s191 = sadd.s32 %s189, %s190
        %s192 = smul.addr %s191, 4
        %s193 = scalar_lea.vmem %s2, %s192
        %s194 = smul.u32 2, %s18
      $region28: #{model_forward.41} parent=15 // pred_fallthru
        _
    $region16: #{model_forward.41} parent=5 // pred_fallthru
      _
    %p195 = scmp.le.s32.totalorder 1, %s9
    %p196 = scmp.lt.s32.totalorder %s9, 5
    %p197 = pnand %p195, %p196
    %p198 = pneg %p197
    // Predicated region
    $region29: #{model_forward.41} parent=5 // pred_check
      _
    $region30: #{model_forward.41} parent=5 // pred_check_branch
      %200 = sbr.rel (%p197) target = $region32
    $region31: #{model_forward.41} parent=5 // pred_region
      %s201 = ssub.s32 %s9, 1
      %p202 = scmp.lt.s32.totalorder %s19, 3
      %s203 = scalar_select %p202, %s19, 3
      %p204 = scmp.lt.s32.totalorder %s20, 0
      %s205 = scalar_select %p204, %s20, 0
      %s206 = sadd.s32 %s205, %s203
      %s207 = smul.addr %s206, 4
      %s208 = scalar_lea.vmem %s0, %s207
      %p209 = pneg %p56
      %p210 = pneg %p53
      %s211 = smul.u32 2, %s21
      %p212 = scmp.lt.s32.totalorder %s19, 3
      %s213 = scalar_select %p212, %s19, 3
      %p214 = scmp.lt.s32.totalorder %s211, 1
      %s215 = scalar_select %p214, %s211, 1
      %s216 = smul.addr %s213, 2
      %s217 = sadd.s32 %s215, %s216
      %s218 = smul.addr %s217, 4
      %s219 = scalar_lea.vmem %s1, %s218
      %p220 = pneg %p84
      %p221 = pneg %p81
      %s222 = smul.u32 2, %s21
      %p223 = scmp.lt.s32.totalorder %s19, 3
      %s224 = scalar_select %p223, %s19, 3
      %p225 = scmp.lt.s32.totalorder %s222, 1
      %s226 = scalar_select %p225, %s222, 1
      %s227 = smul.addr %s224, 2
      %s228 = sadd.s32 %s226, %s227
      %s229 = smul.addr %s228, 4
      %s230 = scalar_lea.vmem %s2, %s229
      %p231 = pneg %p112
      %p232 = pneg %p109
      %p233 = pneg %p140
      %p234 = pneg %p137
      %p235 = scmp.lt.s32.totalorder %s19, 3
      %s236 = scalar_select %p235, %s19, 3
      %p237 = scmp.lt.s32.totalorder %s20, 0
      %s238 = scalar_select %p237, %s20, 0
      %s239 = sadd.s32 %s238, %s236
      %s240 = smul.addr %s239, 4
      %s241 = scalar_lea.vmem %s3, %s240
      %p242 = scmp.lt.s32.totalorder %s19, 3
      %s243 = scalar_select %p242, %s19, 3
      %p244 = scmp.lt.s32.totalorder %s20, 0
      %s245 = scalar_select %p244, %s20, 0
      %s246 = sadd.s32 %s245, %s243
      %s247 = smul.addr %s246, 4
      %s248 = scalar_lea.vmem %s0, %s247
      %s249 = smul.u32 2, %s21
      %p250 = scmp.lt.s32.totalorder %s19, 3
      %s251 = scalar_select %p250, %s19, 3
      %p252 = scmp.lt.s32.totalorder %s249, 1
      %s253 = scalar_select %p252, %s249, 1
      %s254 = smul.addr %s251, 2
      %s255 = sadd.s32 %s253, %s254
      %s256 = smul.addr %s255, 4
      %s257 = scalar_lea.vmem %s1, %s256
      %s258 = smul.u32 2, %s21
      %s259 = smul.u32 2, %s21
      %p260 = scmp.lt.s32.totalorder %s19, 3
      %s261 = scalar_select %p260, %s19, 3
      %p262 = scmp.lt.s32.totalorder %s259, 1
      %s263 = scalar_select %p262, %s259, 1
      %s264 = smul.addr %s261, 2
      %s265 = sadd.s32 %s263, %s264
      %s266 = smul.addr %s265, 4
      %s267 = scalar_lea.vmem %s2, %s266
      %s268 = smul.u32 2, %s21
      %p269 = scmp.lt.s32.totalorder %s19, 3
      %s270 = scalar_select %p269, %s19, 3
      %p271 = scmp.lt.s32.totalorder %s20, 0
      %s272 = scalar_select %p271, %s20, 0
      %s273 = sadd.s32 %s272, %s270
      %s274 = smul.addr %s273, 4
      %s275 = scalar_lea.vmem %s3, %s274
      %p277 = scmp.eq.s32.totalorder %s21, 0
      // Predicated region
      $region33: #{model_forward.41} parent=31 // pred_check
        %p278 = pneg %p277
      $region34: #{model_forward.41} parent=31 // pred_check_branch
        %280 = sbr.rel (%p278) target = $region36
      $region35: #{model_forward.41} parent=31 // pred_region
        %vm281 = vcmask 7168
        %282 = vst.msk [vmem:[#allocation2] sm:$0xff] %vm281, -2.3819763e+38
        %283 = vst.msk [vmem:[#allocation3] sm:$0xff] %vm281, 0.0
        %vm284 = vcmask 130048
        %285 = vst.msk [vmem:[#allocation4] sm:$0xff] %vm284, 0.0
      $region36: #{model_forward.41} parent=31 // pred_fallthru
        _
      %v286 = vld [vmem:[%s248] sm:$0xf]
      %v287 = vld [vmem:[%s257] sm:$0xf]
      %v288 = vld [vmem:[%s257 + $0x4] sm:$0xf]
      %v289 = vld [vmem:[%s267] sm:$0xf]
      %v290 = vld [vmem:[%s267 + $0x4] sm:$0xf]
      %v293 = vunpack.c.l.b16 %v287
      %v294 = vunpack.c.l.b16 %v288
      %v295 = vpack.c.b16 %v294, %v293
      %vm296 = vcmask 130048
      %v298 = vsel %vm296, %v286, 0
      %v301 = vsel %vm296, %v295, 0
      %303 = vmatprep.subr.bf16.mxu0 0
      %304 = vmatpush1.bf16.xpose.msra.mxu0 0
      %305 = vmatprep.subr.bf16.mxu0 0
      %306 = vmatpush1.bf16.xpose.msra.mxu0 0
      %307 = vmatprep.subr.bf16.mxu0 0
      %308 = vmatpush1.bf16.xpose.msra.mxu0 0
      %309 = vmatprep.subr.bf16.mxu0 0
      %310 = vmatpush1.bf16.xpose.msra.mxu0 0
      %311 = vmatprep.subr.bf16.mxu0 0
      %312 = vmatpush1.bf16.xpose.msra.mxu0 0
      %313 = vmatprep.subr.bf16.mxu0 0
      %314 = vmatpush1.bf16.xpose.msra.mxu0 0
      %315 = vmatprep.subr.bf16.mxu0 0
      %316 = vmatpush1.bf16.xpose.msra.mxu0 0
      %317 = vmatprep.subr.bf16.mxu0 0
      %318 = vmatpush1.bf16.xpose.msra.mxu0 %v301
      %319 = vmatprep.subr.bf16.mxu0 0
      %320 = vmatpush2.bf16.xpose.msra.mxu0 0
      %321 = vmatprep.subr.bf16.mxu0 0
      %322 = vmatpush2.bf16.xpose.msra.mxu0 0
      %323 = vmatprep.subr.bf16.mxu0 0
      %324 = vmatpush2.bf16.xpose.msra.mxu0 0
      %325 = vmatprep.subr.bf16.mxu0 0
      %326 = vmatpush2.bf16.xpose.msra.mxu0 0
      %327 = vmatprep.subr.bf16.mxu0 0
      %328 = vmatpush2.bf16.xpose.msra.mxu0 0
      %329 = vmatprep.subr.bf16.mxu0 0
      %330 = vmatpush2.bf16.xpose.msra.mxu0 0
      %331 = vmatprep.subr.bf16.mxu0 0
      %332 = vmatpush2.bf16.xpose.msra.mxu0 0
      %333 = vmatprep.subr.bf16.mxu0 0
      %334 = vmatpush2.bf16.xpose.msra.mxu0 0
      %335 = vmatprep.mubr.bf16.mxu0 0
      %336 = vmatmul.mubr.bf16.gmra.mxu0 %v298
      %v337 = vpop.f32.mrf.mxu0
      %v338 = vadd.f32 0.0, %v337
      %v339 = vpop.f32.mrf.mxu0
      %v340 = vpop.f32.mrf.mxu0
      %v341 = vpop.f32.mrf.mxu0
      %342 = vdwg.mxu0
      %v343 = vld [vmem:[#allocation2] sm:$0xff]
      %v344 = vsel %vm296, %v338, -inf
      %345 = vmax.xlane.f32.xlu0 %v344
      %v346 = vpop.xlane.xlu0 %345
      %v347 = vmax.f32 %v343, %v346
      %v348 = vsub.f32 %v343, %v347
      %v349 = vmul.f32 %v348, 1.442695
      %v350 = vpow.pop %v349
      %352 = vset.pattern.permute.xlu0 0
      %353 = vperm.xlu0 %352, %v347
      %v354 = vpop.permute.xlu0 %353
      %v356 = vsub.f32 %v338, %v354
      %v357 = vpack.c.bf16 %v356, %v356
      %v359 = vmul.bf16 %v357, 1069105081
      %v360 = vpow.bf16.pop %v359
      %v361 = vld [vmem:[#allocation3] sm:$0xff]
      %v362 = vmul.f32 %v350, %v361
      %v363 = vunpack.c.l.bf16 %v360
      %v364 = vsel %vm296, %v363, 0.0
      %365 = vadd.xlane.f32.xlu0 %v364
      %v366 = vpop.xlane.xlu0 %365
      %v367 = vadd.f32 %v362, %v366
      %vm368 = vcmask 7168
      %369 = vst.msk [vmem:[#allocation3] sm:$0xff] %vm368, %v367
      %v370 = vld [vmem:[#allocation4] sm:$0xff]
      %372 = vset.pattern.permute.xlu0 0
      %373 = vperm.xlu0 %372, %v350
      %v374 = vpop.permute.xlu0 %373
      %v376 = vmul.f32 %v374, %v370
      %v379 = vunpack.c.l.b16 %v289
      %v380 = vunpack.c.l.b16 %v290
      %v381 = vpack.c.b16 %v380, %v379
      %v384 = vsel %vm296, %v360, 0
      %386 = vmatprep.subr.bf16.mxu0 0
      %387 = vmatpush1.bf16.msra.mxu0 0
      %388 = vmatprep.subr.bf16.mxu0 0
      %389 = vmatpush1.bf16.msra.mxu0 0
      %390 = vmatprep.subr.bf16.mxu0 0
      %391 = vmatpush1.bf16.msra.mxu0 0
      %392 = vmatprep.subr.bf16.mxu0 0
      %393 = vmatpush1.bf16.msra.mxu0 0
      %394 = vmatprep.subr.bf16.mxu0 0
      %395 = vmatpush1.bf16.msra.mxu0 0
      %396 = vmatprep.subr.bf16.mxu0 0
      %397 = vmatpush1.bf16.msra.mxu0 0
      %398 = vmatprep.subr.bf16.mxu0 0
      %399 = vmatpush1.bf16.msra.mxu0 0
      %400 = vmatprep.subr.bf16.mxu0 0
      %401 = vmatpush1.bf16.msra.mxu0 %v381
      %402 = vmatprep.subr.bf16.mxu0 0
      %403 = vmatpush2.bf16.msra.mxu0 0
      %404 = vmatprep.subr.bf16.mxu0 0
      %405 = vmatpush2.bf16.msra.mxu0 0
      %406 = vmatprep.subr.bf16.mxu0 0
      %407 = vmatpush2.bf16.msra.mxu0 0
      %408 = vmatprep.subr.bf16.mxu0 0
      %409 = vmatpush2.bf16.msra.mxu0 0
      %410 = vmatprep.subr.bf16.mxu0 0
      %411 = vmatpush2.bf16.msra.mxu0 0
      %412 = vmatprep.subr.bf16.mxu0 0
      %413 = vmatpush2.bf16.msra.mxu0 0
      %414 = vmatprep.subr.bf16.mxu0 0
      %415 = vmatpush2.bf16.msra.mxu0 0
      %416 = vmatprep.subr.bf16.mxu0 0
      %417 = vmatpush2.bf16.msra.mxu0 0
      %418 = vmatprep.mubr.bf16.mxu0 0
      %419 = vmatmul.mubr.bf16.gmra.mxu0 %v384
      %v420 = vpop.f32.mrf.mxu0
      %v421 = vadd.f32 0.0, %v420
      %v422 = vpop.f32.mrf.mxu0
      %v423 = vpop.f32.mrf.mxu0
      %v424 = vpop.f32.mrf.mxu0
      %425 = vdwg.mxu0
      %v426 = vadd.f32 %v376, %v421
      %427 = vst.msk [vmem:[#allocation4] sm:$0xff] %vm296, %v426
      %428 = vst.msk [vmem:[#allocation2] sm:$0xff] %vm368, %v347
      // Predicated region
      $region37: #{model_forward.41} parent=31 // pred_check
        %p429 = pneg %p277
      $region38: #{model_forward.41} parent=31 // pred_check_branch
        %431 = sbr.rel (%p429) target = $region40
      $region39: #{model_forward.41} parent=31 // pred_region
        %v432 = vld [vmem:[#allocation3] sm:$0xff]
        %v433 = vrcp.pop %v432
        %v434 = vld [vmem:[#allocation4] sm:$0xff]
        %436 = vset.pattern.permute.xlu0 0
        %437 = vperm.xlu0 %436, %v433
        %v438 = vpop.permute.xlu0 %437
        %v440 = vmul.f32 %v434, %v438
        %v441 = vpack.c.bf16 %v440, %v440
        %vm442 = vcmask 125952
        %443 = vst.msk [vmem:[%s275] sm:$0xf] %vm442, %v441
      $region40: #{model_forward.41} parent=31 // pred_fallthru
        _
      %p444 = scmp.lt.s32.totalorder %s19, 3
      %s445 = scalar_select %p444, %s19, 3
      %p446 = scmp.lt.s32.totalorder %s20, 0
      %s447 = scalar_select %p446, %s20, 0
      %s448 = sadd.s32 %s447, %s445
      %s449 = smul.addr %s448, 4
      %s450 = scalar_lea.vmem %s3, %s449
      // Predicated region
      $region41: #{model_forward.41} parent=31 // pred_check
        %p451 = pneg %p137
      $region42: #{model_forward.41} parent=31 // pred_check_branch
        %453 = sbr.rel (%p451) target = $region44
      $region43: #{model_forward.41} parent=31 // pred_region
        _
      $region44: #{model_forward.41} parent=31 // pred_fallthru
        _
    $region32: #{model_forward.41} parent=5 // pred_fallthru
      _
    %p454 = scmp.le.s32.totalorder 2, %s9
    // Predicated region
    $region45: #{model_forward.41} parent=5 // pred_check
      %p455 = pneg %p454
    $region46: #{model_forward.41} parent=5 // pred_check_branch
      %457 = sbr.rel (%p455) target = $region48
    $region47: #{model_forward.41} parent=5 // pred_region
      %s458 = ssub.s32 %s9, 2
      // Predicated region
      $region49: #{model_forward.41} parent=47 // pred_check
        %p459 = pneg %p143
      $region50: #{model_forward.41} parent=47 // pred_check_branch
        %461 = sbr.rel (%p459) target = $region52
      $region51: #{model_forward.41} parent=47 // pred_region
        %p462 = scmp.lt.s32.totalorder %s22, 3
        %s463 = scalar_select %p462, %s22, 3
        %p464 = scmp.lt.s32.totalorder %s23, 0
        %s465 = scalar_select %p464, %s23, 0
        %s466 = sadd.s32 %s465, %s463
        %s467 = smul.addr %s466, 4
        %s468 = scalar_lea.vmem %s3, %s467
      $region52: #{model_forward.41} parent=47 // pred_fallthru
        _
    $region48: #{model_forward.41} parent=5 // pred_fallthru
      _
  $region6: #{model_forward.41} parent=0 // loop_footer
    %s13 = sadd.s32 1, %s9
  $region7: #{model_forward.41} parent=0 // loop_footer_branch
    %8 = sbr.rel target = $region3
  $region8: #{model_forward.41} parent=0 // loop_exit
    _

// kernel: model_forward.47
$region0: #{model_forward.47}
  #allocation0 [shape = 'u32[]', space=smem, size = 0x4, offset = 0x4, fixed_abs, tag = 'smem constant byte address 0x4 - core index']
  #allocation1 [shape = 'u32[144,128]{1,0:T(1,128)}', space=vmem, size = 0x12000, scoped, tag = 'internal scratch']
  #allocation2 [shape = 'f32[16,128]{1,0:T(8,128)}', space=vmem, size = 0x2000, scoped, tag = 'scratch operand']
  %s0 = inlined_call_operand.vmem [shape: bf16[16,128], index: 0, kind: input, shape index: {}]
  %s1 = inlined_call_operand.vmem [shape: bf16[128,128], index: 1, kind: input, shape index: {}]
  %s2 = inlined_call_operand.vmem [shape: f32[1,128], index: 2, kind: input, shape index: {}]
  %s3 = inlined_call_operand.vmem [shape: f32[16,128], index: 3, kind: output, shape index: {}]
  %s4 = sld [smem:[#allocation0]]
  $region30: #{model_forward.47} parent=0
    _
  %s6 = ssub.s32 1, %s4
  %s7 = scalar_select 0, %s6, %s4
  // Predicated region
  $region2: #{model_forward.47} parent=0 // pred_check
    _
  $region3: #{model_forward.47} parent=0 // pred_check_branch
    %9 = sbr.rel (0) target = $region5
  $region4: #{model_forward.47} parent=0 // pred_region
    _
  $region5: #{model_forward.47} parent=0 // pred_fallthru
    _
  // Predicated region
  $region6: #{model_forward.47} parent=0 // pred_check
    _
  $region7: #{model_forward.47} parent=0 // pred_check_branch
    %11 = sbr.rel (0) target = $region9
  $region8: #{model_forward.47} parent=0 // pred_region
    _
  $region9: #{model_forward.47} parent=0 // pred_fallthru
    _
  // Predicated region
  $region10: #{model_forward.47} parent=0 // pred_check
    _
  $region11: #{model_forward.47} parent=0 // pred_check_branch
    %13 = sbr.rel (0) target = $region13
  $region12: #{model_forward.47} parent=0 // pred_region
    _
  $region13: #{model_forward.47} parent=0 // pred_fallthru
    _
  %p15 = scmp.eq.s32.totalorder 0, 0
  // Predicated region
  $region14: #{model_forward.47} parent=0 // pred_check
    %p16 = pneg %p15
  $region15: #{model_forward.47} parent=0 // pred_check_branch
    %18 = sbr.rel (%p16) target = $region17
  $region16: #{model_forward.47} parent=0 // pred_region
    %19 = vst [vmem:[#allocation2] sm:$0xff] 0.0
    %20 = vst [vmem:[#allocation2 + $0x8] sm:$0xff] 0.0
  $region17: #{model_forward.47} parent=0 // pred_fallthru
    _
  %v21 = vld [vmem:[#allocation2] sm:$0xff]
  %v22 = vld [vmem:[#allocation2 + $0x8] sm:$0xff]
  %v23 = vld [vmem:[%s0] sm:$0xf]
  %v24 = vld [vmem:[%s0 + $0x4] sm:$0xf]
  %v25 = vld [vmem:[%s1] sm:$0xf]
  %v26 = vld [vmem:[%s1 + $0x4] sm:$0xf]
  %v27 = vld [vmem:[%s1 + $0x8] sm:$0xf]
  %v28 = vld [vmem:[%s1 + $0xc] sm:$0xf]
  %v29 = vld [vmem:[%s1 + $0x10] sm:$0xf]
  %v30 = vld [vmem:[%s1 + $0x14] sm:$0xf]
  %v31 = vld [vmem:[%s1 + $0x18] sm:$0xf]
  %v32 = vld [vmem:[%s1 + $0x1c] sm:$0xf]
  %v33 = vld [vmem:[%s1 + $0x20] sm:$0xf]
  %v34 = vld [vmem:[%s1 + $0x24] sm:$0xf]
  %v35 = vld [vmem:[%s1 + $0x28] sm:$0xf]
  %v36 = vld [vmem:[%s1 + $0x2c] sm:$0xf]
  %v37 = vld [vmem:[%s1 + $0x30] sm:$0xf]
  %v38 = vld [vmem:[%s1 + $0x34] sm:$0xf]
  %v39 = vld [vmem:[%s1 + $0x38] sm:$0xf]
  %v40 = vld [vmem:[%s1 + $0x3c] sm:$0xf]
  %v43 = vunpack.c.l.b16 %v23
  %v44 = vunpack.c.l.b16 %v24
  %v45 = vpack.c.b16 %v44, %v43
  %v63 = vunpack.c.l.b16 %v25
  %v64 = vunpack.c.l.b16 %v26
  %v65 = vunpack.c.l.b16 %v27
  %v66 = vunpack.c.l.b16 %v28
  %v67 = vunpack.c.l.b16 %v29
  %v68 = vunpack.c.l.b16 %v30
  %v69 = vunpack.c.l.b16 %v31
  %v70 = vunpack.c.l.b16 %v32
  %v71 = vunpack.c.l.b16 %v33
  %v72 = vunpack.c.l.b16 %v34
  %v73 = vunpack.c.l.b16 %v35
  %v74 = vunpack.c.l.b16 %v36
  %v75 = vunpack.c.l.b16 %v37
  %v76 = vunpack.c.l.b16 %v38
  %v77 = vunpack.c.l.b16 %v39
  %v78 = vunpack.c.l.b16 %v40
  %v79 = vpack.c.b16 %v64, %v63
  %v80 = vpack.c.b16 %v66, %v65
  %v81 = vpack.c.b16 %v68, %v67
  %v82 = vpack.c.b16 %v70, %v69
  %v83 = vpack.c.b16 %v72, %v71
  %v84 = vpack.c.b16 %v74, %v73
  %v85 = vpack.c.b16 %v76, %v75
  %v86 = vpack.c.b16 %v78, %v77
  %95 = vmatprep.subr.bf16.mxu0 0
  %96 = vmatpush1.bf16.msra.mxu0 %v86
  %97 = vmatprep.subr.bf16.mxu0 0
  %98 = vmatpush1.bf16.msra.mxu0 %v85
  %99 = vmatprep.subr.bf16.mxu0 0
  %100 = vmatpush1.bf16.msra.mxu0 %v84
  %101 = vmatprep.subr.bf16.mxu0 0
  %102 = vmatpush1.bf16.msra.mxu0 %v83
  %103 = vmatprep.subr.bf16.mxu0 0
  %104 = vmatpush1.bf16.msra.mxu0 %v82
  %105 = vmatprep.subr.bf16.mxu0 0
  %106 = vmatpush1.bf16.msra.mxu0 %v81
  %107 = vmatprep.subr.bf16.mxu0 0
  %108 = vmatpush1.bf16.msra.mxu0 %v80
  %109 = vmatprep.subr.bf16.mxu0 0
  %110 = vmatpush1.bf16.msra.mxu0 %v79
  %111 = vmatprep.subr.bf16.mxu0 0
  %112 = vmatpush2.bf16.msra.mxu0 0
  %113 = vmatprep.subr.bf16.mxu0 0
  %114 = vmatpush2.bf16.msra.mxu0 0
  %115 = vmatprep.subr.bf16.mxu0 0
  %116 = vmatpush2.bf16.msra.mxu0 0
  %117 = vmatprep.subr.bf16.mxu0 0
  %118 = vmatpush2.bf16.msra.mxu0 0
  %119 = vmatprep.subr.bf16.mxu0 0
  %120 = vmatpush2.bf16.msra.mxu0 0
  %121 = vmatprep.subr.bf16.mxu0 0
  %122 = vmatpush2.bf16.msra.mxu0 0
  %123 = vmatprep.subr.bf16.mxu0 0
  %124 = vmatpush2.bf16.msra.mxu0 0
  %125 = vmatprep.subr.bf16.mxu0 0
  %126 = vmatpush2.bf16.msra.mxu0 0
  %127 = vmatprep.mubr.bf16.mxu0 0
  %128 = vmatmul.mubr.bf16.gmra.mxu0 %v45
  %v129 = vpop.f32.mrf.mxu0
  %v130 = vadd.f32 0.0, %v129
  %v131 = vpop.f32.mrf.mxu0
  %v132 = vpop.f32.mrf.mxu0
  %v133 = vadd.f32 0.0, %v132
  %v134 = vpop.f32.mrf.mxu0
  %135 = vdwg.mxu0
  %v136 = vadd.f32 %v21, %v130
  %v137 = vadd.f32 %v22, %v133
  %138 = vst [vmem:[#allocation2] sm:$0xff] %v136
  %139 = vst [vmem:[#allocation2 + $0x8] sm:$0xff] %v137
  // Predicated region
  $region18: #{model_forward.47} parent=0 // pred_check
    %p140 = pneg %p15
  $region19: #{model_forward.47} parent=0 // pred_check_branch
    %142 = sbr.rel (%p140) target = $region21
  $region20: #{model_forward.47} parent=0 // pred_region
    %v143 = vld [vmem:[#allocation2] sm:$0xff]
    %v144 = vld [vmem:[#allocation2 + $0x8] sm:$0xff]
    %v145 = vld [vmem:[%s2] sm:$0x1]
    %v147 = vlaneseq
    %v148 = vshrl.u32 %v147, 7
    %v149 = vsub.s32 0, %v148
    %v150 = vrot.slane %v145, %v149
    %v152 = vadd.f32 %v143, %v150
    %v153 = vadd.f32 %v144, %v150
    %154 = vst [vmem:[%s3] sm:$0xff] %v152
    %155 = vst [vmem:[%s3 + $0x8] sm:$0xff] %v153
  $region21: #{model_forward.47} parent=0 // pred_fallthru
    _
  // Predicated region
  $region22: #{model_forward.47} parent=0 // pred_check
    _
  $region23: #{model_forward.47} parent=0 // pred_check_branch
    %157 = sbr.rel (0) target = $region25
  $region24: #{model_forward.47} parent=0 // pred_region
    _
  $region25: #{model_forward.47} parent=0 // pred_fallthru
    _
  // Predicated region
  $region26: #{model_forward.47} parent=0 // pred_check
    _
  $region27: #{model_forward.47} parent=0 // pred_check_branch
    %159 = sbr.rel (0) target = $region29
  $region28: #{model_forward.47} parent=0 // pred_region
    _
  $region29: #{model_forward.47} parent=0 // pred_fallthru
    _

</llo_original>
